<compile_context>
chip_gen: v6e
topology: v6e:2x2x1
jax: 0.10.0
libtpu: 0.0.40
codegen_flags: <defaults>
</compile_context>

<pallas_src>
import functools

import jax
import jax.numpy as jnp
from jax import lax
from jax.experimental import pallas as pl
from jax.experimental.pallas import tpu as pltpu


def _fused_unet_block_kernel(x_ref, w1_ref, s1_ref, b1_ref,
                             w2_ref, s2_ref, b2_ref, o_ref, q_ref, *, H, W):
    """One grid step = one image; both conv+BN+ReLU layers fused.

    x_ref  : (1, H+2, W+2, Cin)  zero-padded NHWC input image
    w1_ref : (9*Cin, C1)         conv1 weights, K-stacked in (dy, dx, cin) order
    s1/b1  : (1, C1)             folded BN1 scale / bias (conv bias included)
    w2_ref : (9*C1, C2)          conv2 weights, K-stacked
    s2/b2  : (1, C2)             folded BN2 scale / bias
    o_ref  : (1, H, W, C2)       NHWC output image (exact size, no padding)
    q_ref  : (H+2, W+2, C1)      VMEM scratch: zero-ringed padded intermediate
    """
    Cin = x_ref.shape[-1]
    C1 = q_ref.shape[-1]
    C2 = o_ref.shape[-1]
    HW = H * W

    # ---------------- layer 1: conv3x3 + BN + ReLU (ONE matmul) -------------
    # 9 shifted (H, W, Cin) windows concatenated along channels -> K = 9*Cin.
    # (The reshape (H, W, 9Cin) -> (H*W, 9Cin) is relayout-free when W is a
    #  multiple of 8; it is merely a relayout otherwise.)
    taps1 = [x_ref[0, dy:dy + H, dx:dx + W, :]
             for dy in range(3) for dx in range(3)]
    a1 = jnp.concatenate(taps1, axis=-1).reshape(HW, 9 * Cin)
    y1 = jnp.dot(a1, w1_ref[...], preferred_element_type=jnp.float32)
    y1 = jnp.maximum(y1 * s1_ref[...] + b1_ref[...], 0.0)

    # ------ stage the intermediate in VMEM with an explicit zero halo -------
    # Zero only the ring (4 small stores); the interior is fully rewritten
    # each image, so no cross-grid-step state is needed (megacore safe).
    q_ref[0:1, :, :] = jnp.zeros((1, W + 2, C1), jnp.float32)
    q_ref[H + 1:H + 2, :, :] = jnp.zeros((1, W + 2, C1), jnp.float32)
    q_ref[:, 0:1, :] = jnp.zeros((H + 2, 1, C1), jnp.float32)
    q_ref[:, W + 1:W + 2, :] = jnp.zeros((H + 2, 1, C1), jnp.float32)
    q_ref[1:H + 1, 1:W + 1, :] = y1.reshape(H, W, C1)

    # ---------------- layer 2: conv3x3 + BN + ReLU (ONE matmul) -------------
    taps2 = [q_ref[dy:dy + H, dx:dx + W, :]
             for dy in range(3) for dx in range(3)]
    a2 = jnp.concatenate(taps2, axis=-1).reshape(HW, 9 * C1)
    y2 = jnp.dot(a2, w2_ref[...], preferred_element_type=jnp.float32)
    y2 = jnp.maximum(y2 * s2_ref[...] + b2_ref[...], 0.0)
    o_ref[0] = y2.reshape(H, W, C2).astype(o_ref.dtype)


@jax.jit
def unet_block_forward(x_nchw, params, eps=1e-5):
    """Forward pass of UNetBlock (eval-mode BN). Input/output NCHW like PyTorch."""
    N, Cin, H, W = x_nchw.shape
    C1 = params["w1"].shape[3]
    C2 = params["w2"].shape[3]

    # --- XLA glue (input only): NCHW -> NHWC + 3x3 "same" padding ring.
    # XLA fuses the transpose+pad into a single HBM pass.
    x = jnp.transpose(x_nchw, (0, 2, 3, 1)).astype(jnp.float32)
    xp = jnp.pad(x, ((0, 0), (1, 1), (1, 1), (0, 0)))

    # --- fold conv bias + inference BatchNorm into per-channel scale/bias ---
    s1 = params["g1"] / jnp.sqrt(params["rv1"] + eps)
    t1 = params["be1"] + (params["b1"] - params["rm1"]) * s1
    s2 = params["g2"] / jnp.sqrt(params["rv2"] + eps)
    t2 = params["be2"] + (params["b2"] - params["rm2"]) * s2

    # K-stacked weights: (3,3,Cin,Cout) -> (9*Cin, Cout).  Row-major flatten
    # gives (dy, dx, cin) order along K, matching the in-kernel tap concat.
    w1 = params["w1"].reshape(9 * Cin, C1).astype(jnp.float32)
    w2 = params["w2"].reshape(9 * C1, C2).astype(jnp.float32)
    s1 = s1.reshape(1, C1).astype(jnp.float32)
    b1 = t1.reshape(1, C1).astype(jnp.float32)
    s2 = s2.reshape(1, C2).astype(jnp.float32)
    b2 = t2.reshape(1, C2).astype(jnp.float32)

    # VMEM budget: double-buffered input/output blocks + weights + q scratch.
    # (Raise further for large H-tiles on v5e/v6e; v7x physical VMEM is 64 MiB.)
    vmem_need = 4 * (2 * (H + 2) * (W + 2) * Cin            # input block x2
                     + 2 * H * W * C2                        # output block x2
                     + (H + 2) * (W + 2) * C1                # intermediate
                     + 2 * (9 * Cin * C1 + 9 * C1 * C2 + 2 * C1 + 2 * C2))
    vmem_limit = int(min(max(4 * vmem_need, 32 * 1024 * 1024),
                         64 * 1024 * 1024))

    kernel = functools.partial(_fused_unet_block_kernel, H=H, W=W)
    out_nhwc = pl.pallas_call(
        kernel,
        out_shape=jax.ShapeDtypeStruct((N, H, W, C2), jnp.float32),
        grid=(N,),
        in_specs=[
            pl.BlockSpec((1, H + 2, W + 2, Cin), lambda n: (n, 0, 0, 0)),
            pl.BlockSpec((9 * Cin, C1), lambda n: (0, 0)),
            pl.BlockSpec((1, C1), lambda n: (0, 0)),
            pl.BlockSpec((1, C1), lambda n: (0, 0)),
            pl.BlockSpec((9 * C1, C2), lambda n: (0, 0)),
            pl.BlockSpec((1, C2), lambda n: (0, 0)),
            pl.BlockSpec((1, C2), lambda n: (0, 0)),
        ],
        out_specs=pl.BlockSpec((1, H, W, C2), lambda n: (n, 0, 0, 0)),
        scratch_shapes=[
            pltpu.VMEM((H + 2, W + 2, C1), jnp.float32),   # padded intermediate
        ],
        compiler_params=pltpu.CompilerParams(
            dimension_semantics=("parallel",),
            vmem_limit_bytes=vmem_limit),
    )(xp, w1, s1, b1, w2, s2, b2)

    # --- XLA glue (output only): final NHWC -> NCHW transpose ---------------
    return jnp.transpose(out_nhwc, (0, 3, 1, 2))


def init_unet_block_params(key, in_channels, out_channels):
    """Deterministic parameter init mirroring the PyTorch module's shapes."""
    ks = jax.random.split(key, 8)

    def conv_params(kw, kb, cin, cout):
        fan_in = cin * 9
        bound = 1.0 / jnp.sqrt(fan_in)
        w = jax.random.uniform(kw, (3, 3, cin, cout), jnp.float32, -bound, bound)
        b = jax.random.uniform(kb, (cout,), jnp.float32, -bound, bound)
        return w, b

    def bn_params(kg, kb, c):
        gamma = 1.0 + 0.1 * jax.random.normal(kg, (c,), jnp.float32)
        beta = 0.1 * jax.random.normal(kb, (c,), jnp.float32)
        return gamma, beta, jnp.zeros((c,), jnp.float32), jnp.ones((c,), jnp.float32)

    w1, b1 = conv_params(ks[0], ks[1], in_channels, out_channels)
    g1, be1, rm1, rv1 = bn_params(ks[2], ks[3], out_channels)
    w2, b2 = conv_params(ks[4], ks[5], out_channels, out_channels)
    g2, be2, rm2, rv2 = bn_params(ks[6], ks[7], out_channels)
    return dict(w1=w1, b1=b1, g1=g1, be1=be1, rm1=rm1, rv1=rv1,
                w2=w2, b2=b2, g2=g2, be2=be2, rm2=rm2, rv2=rv2)


def _reference_forward(x_nchw, params, eps=1e-5):
    """Pure-JAX (lax.conv) reference for correctness checking."""
    def block(x, w, b, g, be, rm, rv):
        y = lax.conv_general_dilated(
            x, w, window_strides=(1, 1), padding="SAME",
            dimension_numbers=("NHWC", "HWIO", "NHWC"))
        y = y + b
        y = (y - rm) / jnp.sqrt(rv + eps) * g + be
        return jnp.maximum(y, 0.0)

    x = jnp.transpose(x_nchw, (0, 2, 3, 1))
    x = block(x, params["w1"], params["b1"], params["g1"], params["be1"],
              params["rm1"], params["rv1"])
    x = block(x, params["w2"], params["b2"], params["g2"], params["be2"],
              params["rm2"], params["rv2"])
    return jnp.transpose(x, (0, 3, 1, 2))


if __name__ == "__main__":
    key = jax.random.PRNGKey(0)
    k_x, k_p = jax.random.split(key)

    batch, in_channels, out_channels, spatial = 2, 4, 8, 16
    x = jax.random.normal(k_x, (batch, in_channels, spatial, spatial), jnp.float32)
    params = init_unet_block_params(k_p, in_channels, out_channels)

    out = unet_block_forward(x, params)
    out = jax.block_until_ready(out)

    ref = _reference_forward(x, params)
    assert out.shape == (batch, out_channels, spatial, spatial)
    assert jnp.allclose(out, ref, atol=1e-4, rtol=1e-4), "mismatch vs reference"

    print("KERNEL_OK")
</pallas_src>

<mosaic_0001>
module attributes {stable_mosaic.version = 11 : i64} {
  func.func @_fused_unet_block_kernel(%arg0: i32, %arg1: memref<1x18x18x4xf32, #tpu.memory_space<vmem>>, %arg2: memref<36x8xf32, #tpu.memory_space<vmem>>, %arg3: memref<1x8xf32, #tpu.memory_space<vmem>>, %arg4: memref<1x8xf32, #tpu.memory_space<vmem>>, %arg5: memref<72x8xf32, #tpu.memory_space<vmem>>, %arg6: memref<1x8xf32, #tpu.memory_space<vmem>>, %arg7: memref<1x8xf32, #tpu.memory_space<vmem>>, %arg8: memref<1x16x16x8xf32, #tpu.memory_space<vmem>>, %arg9: memref<18x18x8xf32, #tpu.memory_space<vmem>>) attributes {dimension_semantics = [#tpu.dimension_semantics<parallel>], iteration_bounds = array<i64: 2>, scalar_prefetch = 0 : i64, scratch_operands = 1 : i64, tpu.core_type = #tpu.core_type<tc>, window_params = [{transform_indices = @transform_0, window_bounds = array<i64: 1, 18, 18, 4>}, {pipeline_mode = #tpu.pipeline_mode<synchronous>, transform_indices = @transform_1, window_bounds = array<i64: 36, 8>}, {pipeline_mode = #tpu.pipeline_mode<synchronous>, transform_indices = @transform_2, window_bounds = array<i64: 1, 8>}, {pipeline_mode = #tpu.pipeline_mode<synchronous>, transform_indices = @transform_3, window_bounds = array<i64: 1, 8>}, {pipeline_mode = #tpu.pipeline_mode<synchronous>, transform_indices = @transform_4, window_bounds = array<i64: 72, 8>}, {pipeline_mode = #tpu.pipeline_mode<synchronous>, transform_indices = @transform_5, window_bounds = array<i64: 1, 8>}, {pipeline_mode = #tpu.pipeline_mode<synchronous>, transform_indices = @transform_6, window_bounds = array<i64: 1, 8>}, {transform_indices = @transform_7, window_bounds = array<i64: 1, 16, 16, 8>}]} {
    %c0 = arith.constant 0 : index
    %c0_0 = arith.constant 0 : index
    %c0_1 = arith.constant 0 : index
    %c0_2 = arith.constant 0 : index
    %0 = vector.load %arg1[%c0, %c0_0, %c0_1, %c0_2] : memref<1x18x18x4xf32, #tpu.memory_space<vmem>>, vector<1x16x16x4xf32>
    %1 = vector.shape_cast %0 : vector<1x16x16x4xf32> to vector<16x16x4xf32>
    %c0_3 = arith.constant 0 : index
    %c0_4 = arith.constant 0 : index
    %c1 = arith.constant 1 : index
    %c0_5 = arith.constant 0 : index
    %2 = vector.load %arg1[%c0_3, %c0_4, %c1, %c0_5] : memref<1x18x18x4xf32, #tpu.memory_space<vmem>>, vector<1x16x16x4xf32>
    %3 = vector.shape_cast %2 : vector<1x16x16x4xf32> to vector<16x16x4xf32>
    %c0_6 = arith.constant 0 : index
    %c0_7 = arith.constant 0 : index
    %c2 = arith.constant 2 : index
    %c0_8 = arith.constant 0 : index
    %4 = vector.load %arg1[%c0_6, %c0_7, %c2, %c0_8] : memref<1x18x18x4xf32, #tpu.memory_space<vmem>>, vector<1x16x16x4xf32>
    %5 = vector.shape_cast %4 : vector<1x16x16x4xf32> to vector<16x16x4xf32>
    %c0_9 = arith.constant 0 : index
    %c1_10 = arith.constant 1 : index
    %c0_11 = arith.constant 0 : index
    %c0_12 = arith.constant 0 : index
    %6 = vector.load %arg1[%c0_9, %c1_10, %c0_11, %c0_12] : memref<1x18x18x4xf32, #tpu.memory_space<vmem>>, vector<1x16x16x4xf32>
    %7 = vector.shape_cast %6 : vector<1x16x16x4xf32> to vector<16x16x4xf32>
    %c0_13 = arith.constant 0 : index
    %c1_14 = arith.constant 1 : index
    %c1_15 = arith.constant 1 : index
    %c0_16 = arith.constant 0 : index
    %8 = vector.load %arg1[%c0_13, %c1_14, %c1_15, %c0_16] : memref<1x18x18x4xf32, #tpu.memory_space<vmem>>, vector<1x16x16x4xf32>
    %9 = vector.shape_cast %8 : vector<1x16x16x4xf32> to vector<16x16x4xf32>
    %c0_17 = arith.constant 0 : index
    %c1_18 = arith.constant 1 : index
    %c2_19 = arith.constant 2 : index
    %c0_20 = arith.constant 0 : index
    %10 = vector.load %arg1[%c0_17, %c1_18, %c2_19, %c0_20] : memref<1x18x18x4xf32, #tpu.memory_space<vmem>>, vector<1x16x16x4xf32>
    %11 = vector.shape_cast %10 : vector<1x16x16x4xf32> to vector<16x16x4xf32>
    %c0_21 = arith.constant 0 : index
    %c2_22 = arith.constant 2 : index
    %c0_23 = arith.constant 0 : index
    %c0_24 = arith.constant 0 : index
    %12 = vector.load %arg1[%c0_21, %c2_22, %c0_23, %c0_24] : memref<1x18x18x4xf32, #tpu.memory_space<vmem>>, vector<1x16x16x4xf32>
    %13 = vector.shape_cast %12 : vector<1x16x16x4xf32> to vector<16x16x4xf32>
    %c0_25 = arith.constant 0 : index
    %c2_26 = arith.constant 2 : index
    %c1_27 = arith.constant 1 : index
    %c0_28 = arith.constant 0 : index
    %14 = vector.load %arg1[%c0_25, %c2_26, %c1_27, %c0_28] : memref<1x18x18x4xf32, #tpu.memory_space<vmem>>, vector<1x16x16x4xf32>
    %15 = vector.shape_cast %14 : vector<1x16x16x4xf32> to vector<16x16x4xf32>
    %c0_29 = arith.constant 0 : index
    %c2_30 = arith.constant 2 : index
    %c2_31 = arith.constant 2 : index
    %c0_32 = arith.constant 0 : index
    %16 = vector.load %arg1[%c0_29, %c2_30, %c2_31, %c0_32] : memref<1x18x18x4xf32, #tpu.memory_space<vmem>>, vector<1x16x16x4xf32>
    %17 = vector.shape_cast %16 : vector<1x16x16x4xf32> to vector<16x16x4xf32>
    %18 = tpu.concatenate %1, %3, %5, %7, %9, %11, %13, %15, %17 in 2 : vector<16x16x4xf32>, vector<16x16x4xf32>, vector<16x16x4xf32>, vector<16x16x4xf32>, vector<16x16x4xf32>, vector<16x16x4xf32>, vector<16x16x4xf32>, vector<16x16x4xf32>, vector<16x16x4xf32> -> vector<16x16x36xf32>
    %19 = vector.shape_cast %18 : vector<16x16x36xf32> to vector<256x36xf32>
    %c0_33 = arith.constant 0 : index
    %c0_34 = arith.constant 0 : index
    %20 = vector.load %arg2[%c0_33, %c0_34] : memref<36x8xf32, #tpu.memory_space<vmem>>, vector<36x8xf32>
    %cst = arith.constant dense<0.000000e+00> : vector<256x8xf32>
    %21 = tpu.matmul %19, %20, %cst {dimension_numbers = #tpu.dot_dimension_numbers<[1], [0], [0], [1], [0, 0, 1, 1], [], []>} : vector<256x36xf32>, vector<36x8xf32>, vector<256x8xf32> -> vector<256x8xf32>
    %c0_35 = arith.constant 0 : index
    %c0_36 = arith.constant 0 : index
    %22 = vector.load %arg3[%c0_35, %c0_36] : memref<1x8xf32, #tpu.memory_space<vmem>>, vector<1x8xf32>
    %23 = vector.broadcast %22 : vector<1x8xf32> to vector<256x8xf32>
    %24 = arith.mulf %21, %23 : vector<256x8xf32>
    %c0_37 = arith.constant 0 : index
    %c0_38 = arith.constant 0 : index
    %25 = vector.load %arg4[%c0_37, %c0_38] : memref<1x8xf32, #tpu.memory_space<vmem>>, vector<1x8xf32>
    %26 = vector.broadcast %25 : vector<1x8xf32> to vector<256x8xf32>
    %27 = arith.addf %24, %26 : vector<256x8xf32>
    %cst_39 = arith.constant 0.000000e+00 : f32
    %28 = vector.broadcast %cst_39 : f32 to vector<256x8xf32>
    %29 = arith.maximumf %27, %28 : vector<256x8xf32>
    %cst_40 = arith.constant 0.000000e+00 : f32
    %30 = vector.broadcast %cst_40 : f32 to vector<1x18x8xf32>
    %c0_41 = arith.constant 0 : index
    %c0_42 = arith.constant 0 : index
    %c0_43 = arith.constant 0 : index
    %31 = vector.load %arg9[%c0_41, %c0_42, %c0_43] : memref<18x18x8xf32, #tpu.memory_space<vmem>>, vector<1x18x8xf32>
    tpu.vector_store %arg9[%c0_41, %c0_42, %c0_43], %30 {strides = array<i32>} : memref<18x18x8xf32, #tpu.memory_space<vmem>>, vector<1x18x8xf32>,
    %cst_44 = arith.constant 0.000000e+00 : f32
    %32 = vector.broadcast %cst_44 : f32 to vector<1x18x8xf32>
    %c17 = arith.constant 17 : index
    %c0_45 = arith.constant 0 : index
    %c0_46 = arith.constant 0 : index
    %33 = vector.load %arg9[%c17, %c0_45, %c0_46] : memref<18x18x8xf32, #tpu.memory_space<vmem>>, vector<1x18x8xf32>
    tpu.vector_store %arg9[%c17, %c0_45, %c0_46], %32 {strides = array<i32>} : memref<18x18x8xf32, #tpu.memory_space<vmem>>, vector<1x18x8xf32>,
    %cst_47 = arith.constant 0.000000e+00 : f32
    %34 = vector.broadcast %cst_47 : f32 to vector<18x1x8xf32>
    %c0_48 = arith.constant 0 : index
    %c0_49 = arith.constant 0 : index
    %c0_50 = arith.constant 0 : index
    %35 = vector.load %arg9[%c0_48, %c0_49, %c0_50] : memref<18x18x8xf32, #tpu.memory_space<vmem>>, vector<18x1x8xf32>
    tpu.vector_store %arg9[%c0_48, %c0_49, %c0_50], %34 {strides = array<i32>} : memref<18x18x8xf32, #tpu.memory_space<vmem>>, vector<18x1x8xf32>,
    %cst_51 = arith.constant 0.000000e+00 : f32
    %36 = vector.broadcast %cst_51 : f32 to vector<18x1x8xf32>
    %c0_52 = arith.constant 0 : index
    %c17_53 = arith.constant 17 : index
    %c0_54 = arith.constant 0 : index
    %37 = vector.load %arg9[%c0_52, %c17_53, %c0_54] : memref<18x18x8xf32, #tpu.memory_space<vmem>>, vector<18x1x8xf32>
    tpu.vector_store %arg9[%c0_52, %c17_53, %c0_54], %36 {strides = array<i32>} : memref<18x18x8xf32, #tpu.memory_space<vmem>>, vector<18x1x8xf32>,
    %38 = vector.shape_cast %29 : vector<256x8xf32> to vector<16x16x8xf32>
    %c1_55 = arith.constant 1 : index
    %c1_56 = arith.constant 1 : index
    %c0_57 = arith.constant 0 : index
    %39 = vector.load %arg9[%c1_55, %c1_56, %c0_57] : memref<18x18x8xf32, #tpu.memory_space<vmem>>, vector<16x16x8xf32>
    tpu.vector_store %arg9[%c1_55, %c1_56, %c0_57], %38 {strides = array<i32>} : memref<18x18x8xf32, #tpu.memory_space<vmem>>, vector<16x16x8xf32>,
    %c0_58 = arith.constant 0 : index
    %c0_59 = arith.constant 0 : index
    %c0_60 = arith.constant 0 : index
    %40 = vector.load %arg9[%c0_58, %c0_59, %c0_60] : memref<18x18x8xf32, #tpu.memory_space<vmem>>, vector<16x16x8xf32>
    %c0_61 = arith.constant 0 : index
    %c1_62 = arith.constant 1 : index
    %c0_63 = arith.constant 0 : index
    %41 = vector.load %arg9[%c0_61, %c1_62, %c0_63] : memref<18x18x8xf32, #tpu.memory_space<vmem>>, vector<16x16x8xf32>
    %c0_64 = arith.constant 0 : index
    %c2_65 = arith.constant 2 : index
    %c0_66 = arith.constant 0 : index
    %42 = vector.load %arg9[%c0_64, %c2_65, %c0_66] : memref<18x18x8xf32, #tpu.memory_space<vmem>>, vector<16x16x8xf32>
    %c1_67 = arith.constant 1 : index
    %c0_68 = arith.constant 0 : index
    %c0_69 = arith.constant 0 : index
    %43 = vector.load %arg9[%c1_67, %c0_68, %c0_69] : memref<18x18x8xf32, #tpu.memory_space<vmem>>, vector<16x16x8xf32>
    %c1_70 = arith.constant 1 : index
    %c1_71 = arith.constant 1 : index
    %c0_72 = arith.constant 0 : index
    %44 = vector.load %arg9[%c1_70, %c1_71, %c0_72] : memref<18x18x8xf32, #tpu.memory_space<vmem>>, vector<16x16x8xf32>
    %c1_73 = arith.constant 1 : index
    %c2_74 = arith.constant 2 : index
    %c0_75 = arith.constant 0 : index
    %45 = vector.load %arg9[%c1_73, %c2_74, %c0_75] : memref<18x18x8xf32, #tpu.memory_space<vmem>>, vector<16x16x8xf32>
    %c2_76 = arith.constant 2 : index
    %c0_77 = arith.constant 0 : index
    %c0_78 = arith.constant 0 : index
    %46 = vector.load %arg9[%c2_76, %c0_77, %c0_78] : memref<18x18x8xf32, #tpu.memory_space<vmem>>, vector<16x16x8xf32>
    %c2_79 = arith.constant 2 : index
    %c1_80 = arith.constant 1 : index
    %c0_81 = arith.constant 0 : index
    %47 = vector.load %arg9[%c2_79, %c1_80, %c0_81] : memref<18x18x8xf32, #tpu.memory_space<vmem>>, vector<16x16x8xf32>
    %c2_82 = arith.constant 2 : index
    %c2_83 = arith.constant 2 : index
    %c0_84 = arith.constant 0 : index
    %48 = vector.load %arg9[%c2_82, %c2_83, %c0_84] : memref<18x18x8xf32, #tpu.memory_space<vmem>>, vector<16x16x8xf32>
    %49 = tpu.concatenate %40, %41, %42, %43, %44, %45, %46, %47, %48 in 2 : vector<16x16x8xf32>, vector<16x16x8xf32>, vector<16x16x8xf32>, vector<16x16x8xf32>, vector<16x16x8xf32>, vector<16x16x8xf32>, vector<16x16x8xf32>, vector<16x16x8xf32>, vector<16x16x8xf32> -> vector<16x16x72xf32>
    %50 = vector.shape_cast %49 : vector<16x16x72xf32> to vector<256x72xf32>
    %c0_85 = arith.constant 0 : index
    %c0_86 = arith.constant 0 : index
    %51 = vector.load %arg5[%c0_85, %c0_86] : memref<72x8xf32, #tpu.memory_space<vmem>>, vector<72x8xf32>
    %cst_87 = arith.constant dense<0.000000e+00> : vector<256x8xf32>
    %52 = tpu.matmul %50, %51, %cst_87 {dimension_numbers = #tpu.dot_dimension_numbers<[1], [0], [0], [1], [0, 0, 1, 1], [], []>} : vector<256x72xf32>, vector<72x8xf32>, vector<256x8xf32> -> vector<256x8xf32>
    %c0_88 = arith.constant 0 : index
    %c0_89 = arith.constant 0 : index
    %53 = vector.load %arg6[%c0_88, %c0_89] : memref<1x8xf32, #tpu.memory_space<vmem>>, vector<1x8xf32>
    %54 = vector.broadcast %53 : vector<1x8xf32> to vector<256x8xf32>
    %55 = arith.mulf %52, %54 : vector<256x8xf32>
    %c0_90 = arith.constant 0 : index
    %c0_91 = arith.constant 0 : index
    %56 = vector.load %arg7[%c0_90, %c0_91] : memref<1x8xf32, #tpu.memory_space<vmem>>, vector<1x8xf32>
    %57 = vector.broadcast %56 : vector<1x8xf32> to vector<256x8xf32>
    %58 = arith.addf %55, %57 : vector<256x8xf32>
    %cst_92 = arith.constant 0.000000e+00 : f32
    %59 = vector.broadcast %cst_92 : f32 to vector<256x8xf32>
    %60 = arith.maximumf %58, %59 : vector<256x8xf32>
    %61 = vector.shape_cast %60 : vector<256x8xf32> to vector<16x16x8xf32>
    %c0_93 = arith.constant 0 : index
    %c0_94 = arith.constant 0 : index
    %c0_95 = arith.constant 0 : index
    %c0_96 = arith.constant 0 : index
    %62 = vector.load %arg8[%c0_93, %c0_94, %c0_95, %c0_96] : memref<1x16x16x8xf32, #tpu.memory_space<vmem>>, vector<1x16x16x8xf32>
    %63 = vector.shape_cast %62 : vector<1x16x16x8xf32> to vector<16x16x8xf32>
    %64 = vector.shape_cast %61 : vector<16x16x8xf32> to vector<1x16x16x8xf32>
    tpu.vector_store %arg8[%c0_93, %c0_94, %c0_95, %c0_96], %64 {strides = array<i32>} : memref<1x16x16x8xf32, #tpu.memory_space<vmem>>, vector<1x16x16x8xf32>,
    return
  }
  func.func @transform_0(%arg0: i32) -> (i32, i32, i32, i32) {
    %c0_i32 = arith.constant 0 : i32
    %c0_i32_0 = arith.constant 0 : i32
    %c0_i32_1 = arith.constant 0 : i32
    %c0_i32_2 = arith.constant 0 : i32
    return %arg0, %c0_i32, %c0_i32_0, %c0_i32_1 : i32, i32, i32, i32
  }
  func.func @transform_1(%arg0: i32) -> (i32, i32) {
    %c0_i32 = arith.constant 0 : i32
    %c0_i32_0 = arith.constant 0 : i32
    %c0_i32_1 = arith.constant 0 : i32
    return %c0_i32, %c0_i32_0 : i32, i32
  }
  func.func @transform_2(%arg0: i32) -> (i32, i32) {
    %c0_i32 = arith.constant 0 : i32
    %c0_i32_0 = arith.constant 0 : i32
    %c0_i32_1 = arith.constant 0 : i32
    return %c0_i32, %c0_i32_0 : i32, i32
  }
  func.func @transform_3(%arg0: i32) -> (i32, i32) {
    %c0_i32 = arith.constant 0 : i32
    %c0_i32_0 = arith.constant 0 : i32
    %c0_i32_1 = arith.constant 0 : i32
    return %c0_i32, %c0_i32_0 : i32, i32
  }
  func.func @transform_4(%arg0: i32) -> (i32, i32) {
    %c0_i32 = arith.constant 0 : i32
    %c0_i32_0 = arith.constant 0 : i32
    %c0_i32_1 = arith.constant 0 : i32
    return %c0_i32, %c0_i32_0 : i32, i32
  }
  func.func @transform_5(%arg0: i32) -> (i32, i32) {
    %c0_i32 = arith.constant 0 : i32
    %c0_i32_0 = arith.constant 0 : i32
    %c0_i32_1 = arith.constant 0 : i32
    return %c0_i32, %c0_i32_0 : i32, i32
  }
  func.func @transform_6(%arg0: i32) -> (i32, i32) {
    %c0_i32 = arith.constant 0 : i32
    %c0_i32_0 = arith.constant 0 : i32
    %c0_i32_1 = arith.constant 0 : i32
    return %c0_i32, %c0_i32_0 : i32, i32
  }
  func.func @transform_7(%arg0: i32) -> (i32, i32, i32, i32) {
    %c0_i32 = arith.constant 0 : i32
    %c0_i32_0 = arith.constant 0 : i32
    %c0_i32_1 = arith.constant 0 : i32
    %c0_i32_2 = arith.constant 0 : i32
    return %arg0, %c0_i32, %c0_i32_0, %c0_i32_1 : i32, i32, i32, i32
  }
}

</mosaic_0001>

<llo_original>
// kernel: unet_block_forward.1
$region0: #{unet_block_forward.1}
  #allocation0 [shape = 'u32[]', space=smem, size = 0x4, offset = 0x4, fixed_abs, tag = 'smem constant byte address 0x4 - core index']
  #allocation1 [shape = 'u32[144,128]{1,0:T(1,128)}', space=vmem, size = 0x12000, scoped, tag = 'internal scratch']
  #allocation2 [shape = 'f32[18,18,8]{2,1,0:T(8,128)}', space=vmem, size = 0x36000, scoped, tag = 'scratch operand']
  %s0 = inlined_call_operand.vmem [shape: f32[2,18,18,4], index: 0, kind: input, shape index: {}]
  %s1 = inlined_call_operand.vmem [shape: f32[36,8], index: 1, kind: input, shape index: {}]
  %s2 = inlined_call_operand.vmem [shape: f32[1,8], index: 2, kind: input, shape index: {}]
  %s3 = inlined_call_operand.vmem [shape: f32[1,8], index: 3, kind: input, shape index: {}]
  %s4 = inlined_call_operand.vmem [shape: f32[72,8], index: 4, kind: input, shape index: {}]
  %s5 = inlined_call_operand.vmem [shape: f32[1,8], index: 5, kind: input, shape index: {}]
  %s6 = inlined_call_operand.vmem [shape: f32[1,8], index: 6, kind: input, shape index: {}]
  %s7 = inlined_call_operand.vmem [shape: f32[2,16,16,8], index: 7, kind: output, shape index: {}]
  %s8 = sld [smem:[#allocation0]]
  $region61: #{unet_block_forward.1} parent=0
    _
  %s10 = ssub.s32 1, %s8
  %s11 = scalar_select 0, %s10, %s8
  loop: start=0, step=1, limit=4
  $region2: #{unet_block_forward.1} parent=0 // loop_pre_header
    _
  $region3: #{unet_block_forward.1} parent=0 // loop_header
    %s13 = sphi 0, %s17
    %p14 = scmp.ge.s32.totalorder %s13, 4
    %s23 = sphi 0, %s25
    %s26 = sphi 0, %s23
    %s27 = sphi 0, %s26
    %s43 = sphi 0, %s27
    %s47 = sphi 0, %s47
    %s49 = sphi 0, %s47
    %s50 = sphi 0, %s49
    %s64 = sphi 0, %s50
    %s68 = sphi 0, %s68
    %s70 = sphi 0, %s68
    %s71 = sphi 0, %s70
    %s85 = sphi 0, %s71
    %s89 = sphi 0, %s89
    %s91 = sphi 0, %s89
    %s92 = sphi 0, %s91
    %s106 = sphi 0, %s92
    %s110 = sphi 0, %s110
    %s112 = sphi 0, %s110
    %s113 = sphi 0, %s112
    %s127 = sphi 0, %s113
    %s131 = sphi 0, %s131
    %s133 = sphi 0, %s131
    %s134 = sphi 0, %s133
    %s148 = sphi 0, %s134
    %s152 = sphi 0, %s152
    %s154 = sphi 0, %s152
    %s155 = sphi 0, %s154
    %s169 = sphi 0, %s155
    %s175 = sphi 0, %s177
    %s178 = sphi 0, %s175
    %s179 = sphi 0, %s178
    %s195 = sphi 0, %s179
  $region4: #{unet_block_forward.1} parent=0 // loop_header_branch
    %16 = sbr.rel (%p14) target = $region8
  $region5: #{unet_block_forward.1} parent=0 // loop_body
    %s18 = ssub.s32 %s13, 1
    %s19 = ssub.s32 %s13, 2
    %s20 = sadd.s32 %s13, 1
    %s21 = ssub.s32 %s13, %s20
    %p22 = scmp.eq.s32.totalorder %s21, 0
    %s24 = sadd.s32 %s23, 1
    %s25 = scalar_select %p22, %s23, %s24
    %p28 = pneg %p22
    %p29 = scmp.eq.s32.totalorder %s13, 1
    %p30 = por %p28, %p29
    %p31 = scmp.ne.s32.totalorder %s23, %s26
    %p32 = scmp.eq.s32.totalorder %s13, 0
    %p33 = por %p31, %p32
    %p34 = scmp.ne.s32.totalorder %s23, %s26
    %p35 = scmp.eq.s32.totalorder %s18, 1
    %p36 = por %p34, %p35
    %p37 = scmp.ne.s32.totalorder %s26, %s27
    %p38 = scmp.eq.s32.totalorder %s18, 0
    %p39 = por %p37, %p38
    %p40 = scmp.ne.s32.totalorder %s26, %s27
    %p41 = scmp.eq.s32.totalorder %s19, 1
    %p42 = por %p40, %p41
    %p44 = scmp.ne.s32.totalorder %s27, %s43
    %p45 = scmp.eq.s32.totalorder %s19, 0
    %p46 = por %p44, %p45
    %s48 = sadd.s32 %s47, 1
    %p51 = scmp.eq.s32.totalorder %s13, 1
    %p52 = scmp.ne.s32.totalorder %s47, %s49
    %p53 = scmp.eq.s32.totalorder %s13, 0
    %p54 = por %p52, %p53
    %p55 = scmp.ne.s32.totalorder %s47, %s49
    %p56 = scmp.eq.s32.totalorder %s18, 1
    %p57 = por %p55, %p56
    %p58 = scmp.ne.s32.totalorder %s49, %s50
    %p59 = scmp.eq.s32.totalorder %s18, 0
    %p60 = por %p58, %p59
    %p61 = scmp.ne.s32.totalorder %s49, %s50
    %p62 = scmp.eq.s32.totalorder %s19, 1
    %p63 = por %p61, %p62
    %p65 = scmp.ne.s32.totalorder %s50, %s64
    %p66 = scmp.eq.s32.totalorder %s19, 0
    %p67 = por %p65, %p66
    %s69 = sadd.s32 %s68, 1
    %p72 = scmp.eq.s32.totalorder %s13, 1
    %p73 = scmp.ne.s32.totalorder %s68, %s70
    %p74 = scmp.eq.s32.totalorder %s13, 0
    %p75 = por %p73, %p74
    %p76 = scmp.ne.s32.totalorder %s68, %s70
    %p77 = scmp.eq.s32.totalorder %s18, 1
    %p78 = por %p76, %p77
    %p79 = scmp.ne.s32.totalorder %s70, %s71
    %p80 = scmp.eq.s32.totalorder %s18, 0
    %p81 = por %p79, %p80
    %p82 = scmp.ne.s32.totalorder %s70, %s71
    %p83 = scmp.eq.s32.totalorder %s19, 1
    %p84 = por %p82, %p83
    %p86 = scmp.ne.s32.totalorder %s71, %s85
    %p87 = scmp.eq.s32.totalorder %s19, 0
    %p88 = por %p86, %p87
    %s90 = sadd.s32 %s89, 1
    %p93 = scmp.eq.s32.totalorder %s13, 1
    %p94 = scmp.ne.s32.totalorder %s89, %s91
    %p95 = scmp.eq.s32.totalorder %s13, 0
    %p96 = por %p94, %p95
    %p97 = scmp.ne.s32.totalorder %s89, %s91
    %p98 = scmp.eq.s32.totalorder %s18, 1
    %p99 = por %p97, %p98
    %p100 = scmp.ne.s32.totalorder %s91, %s92
    %p101 = scmp.eq.s32.totalorder %s18, 0
    %p102 = por %p100, %p101
    %p103 = scmp.ne.s32.totalorder %s91, %s92
    %p104 = scmp.eq.s32.totalorder %s19, 1
    %p105 = por %p103, %p104
    %p107 = scmp.ne.s32.totalorder %s92, %s106
    %p108 = scmp.eq.s32.totalorder %s19, 0
    %p109 = por %p107, %p108
    %s111 = sadd.s32 %s110, 1
    %p114 = scmp.eq.s32.totalorder %s13, 1
    %p115 = scmp.ne.s32.totalorder %s110, %s112
    %p116 = scmp.eq.s32.totalorder %s13, 0
    %p117 = por %p115, %p116
    %p118 = scmp.ne.s32.totalorder %s110, %s112
    %p119 = scmp.eq.s32.totalorder %s18, 1
    %p120 = por %p118, %p119
    %p121 = scmp.ne.s32.totalorder %s112, %s113
    %p122 = scmp.eq.s32.totalorder %s18, 0
    %p123 = por %p121, %p122
    %p124 = scmp.ne.s32.totalorder %s112, %s113
    %p125 = scmp.eq.s32.totalorder %s19, 1
    %p126 = por %p124, %p125
    %p128 = scmp.ne.s32.totalorder %s113, %s127
    %p129 = scmp.eq.s32.totalorder %s19, 0
    %p130 = por %p128, %p129
    %s132 = sadd.s32 %s131, 1
    %p135 = scmp.eq.s32.totalorder %s13, 1
    %p136 = scmp.ne.s32.totalorder %s131, %s133
    %p137 = scmp.eq.s32.totalorder %s13, 0
    %p138 = por %p136, %p137
    %p139 = scmp.ne.s32.totalorder %s131, %s133
    %p140 = scmp.eq.s32.totalorder %s18, 1
    %p141 = por %p139, %p140
    %p142 = scmp.ne.s32.totalorder %s133, %s134
    %p143 = scmp.eq.s32.totalorder %s18, 0
    %p144 = por %p142, %p143
    %p145 = scmp.ne.s32.totalorder %s133, %s134
    %p146 = scmp.eq.s32.totalorder %s19, 1
    %p147 = por %p145, %p146
    %p149 = scmp.ne.s32.totalorder %s134, %s148
    %p150 = scmp.eq.s32.totalorder %s19, 0
    %p151 = por %p149, %p150
    %s153 = sadd.s32 %s152, 1
    %p156 = scmp.eq.s32.totalorder %s13, 1
    %p157 = scmp.ne.s32.totalorder %s152, %s154
    %p158 = scmp.eq.s32.totalorder %s13, 0
    %p159 = por %p157, %p158
    %p160 = scmp.ne.s32.totalorder %s152, %s154
    %p161 = scmp.eq.s32.totalorder %s18, 1
    %p162 = por %p160, %p161
    %p163 = scmp.ne.s32.totalorder %s154, %s155
    %p164 = scmp.eq.s32.totalorder %s18, 0
    %p165 = por %p163, %p164
    %p166 = scmp.ne.s32.totalorder %s154, %s155
    %p167 = scmp.eq.s32.totalorder %s19, 1
    %p168 = por %p166, %p167
    %p170 = scmp.ne.s32.totalorder %s155, %s169
    %p171 = scmp.eq.s32.totalorder %s19, 0
    %p172 = por %p170, %p171
    %s173 = ssub.s32 %s13, %s20
    %p174 = scmp.eq.s32.totalorder %s173, 0
    %s176 = sadd.s32 %s175, 1
    %s177 = scalar_select %p174, %s175, %s176
    %p180 = pneg %p174
    %p181 = scmp.eq.s32.totalorder %s13, 1
    %p182 = por %p180, %p181
    %p183 = scmp.ne.s32.totalorder %s175, %s178
    %p184 = scmp.eq.s32.totalorder %s13, 0
    %p185 = por %p183, %p184
    %p186 = scmp.ne.s32.totalorder %s175, %s178
    %p187 = scmp.eq.s32.totalorder %s18, 1
    %p188 = por %p186, %p187
    %p189 = scmp.ne.s32.totalorder %s178, %s179
    %p190 = scmp.eq.s32.totalorder %s18, 0
    %p191 = por %p189, %p190
    %p192 = scmp.ne.s32.totalorder %s178, %s179
    %p193 = scmp.eq.s32.totalorder %s19, 1
    %p194 = por %p192, %p193
    %p196 = scmp.ne.s32.totalorder %s179, %s195
    %p197 = scmp.eq.s32.totalorder %s19, 0
    %p198 = por %p196, %p197
    %p199 = scmp.le.s32.totalorder 1, %s13
    %p200 = scmp.lt.s32.totalorder %s13, 3
    %p201 = pnand %p199, %p200
    %p202 = pneg %p201
    // Predicated region
    $region9: #{unet_block_forward.1} parent=5 // pred_check
      _
    $region10: #{unet_block_forward.1} parent=5 // pred_check_branch
      %204 = sbr.rel (%p201) target = $region12
    $region11: #{unet_block_forward.1} parent=5 // pred_region
      %s205 = ssub.s32 %s13, 1
      // Predicated region
      $region13: #{unet_block_forward.1} parent=11 // pred_check
        %p206 = pneg %p60
      $region14: #{unet_block_forward.1} parent=11 // pred_check_branch
        %208 = sbr.rel (%p206) target = $region16
      $region15: #{unet_block_forward.1} parent=11 // pred_region
        _
      $region16: #{unet_block_forward.1} parent=11 // pred_fallthru
        _
      // Predicated region
      $region17: #{unet_block_forward.1} parent=11 // pred_check
        %p209 = pneg %p81
      $region18: #{unet_block_forward.1} parent=11 // pred_check_branch
        %211 = sbr.rel (%p209) target = $region20
      $region19: #{unet_block_forward.1} parent=11 // pred_region
        _
      $region20: #{unet_block_forward.1} parent=11 // pred_fallthru
        _
      // Predicated region
      $region21: #{unet_block_forward.1} parent=11 // pred_check
        %p212 = pneg %p102
      $region22: #{unet_block_forward.1} parent=11 // pred_check_branch
        %214 = sbr.rel (%p212) target = $region24
      $region23: #{unet_block_forward.1} parent=11 // pred_region
        _
      $region24: #{unet_block_forward.1} parent=11 // pred_fallthru
        _
      // Predicated region
      $region25: #{unet_block_forward.1} parent=11 // pred_check
        %p215 = pneg %p123
      $region26: #{unet_block_forward.1} parent=11 // pred_check_branch
        %217 = sbr.rel (%p215) target = $region28
      $region27: #{unet_block_forward.1} parent=11 // pred_region
        _
      $region28: #{unet_block_forward.1} parent=11 // pred_fallthru
        _
      // Predicated region
      $region29: #{unet_block_forward.1} parent=11 // pred_check
        %p218 = pneg %p144
      $region30: #{unet_block_forward.1} parent=11 // pred_check_branch
        %220 = sbr.rel (%p218) target = $region32
      $region31: #{unet_block_forward.1} parent=11 // pred_region
        _
      $region32: #{unet_block_forward.1} parent=11 // pred_fallthru
        _
      // Predicated region
      $region33: #{unet_block_forward.1} parent=11 // pred_check
        %p221 = pneg %p165
      $region34: #{unet_block_forward.1} parent=11 // pred_check_branch
        %223 = sbr.rel (%p221) target = $region36
      $region35: #{unet_block_forward.1} parent=11 // pred_region
        _
      $region36: #{unet_block_forward.1} parent=11 // pred_fallthru
        _
    $region12: #{unet_block_forward.1} parent=5 // pred_fallthru
      _
    %p224 = scmp.lt.s32.totalorder %s13, 2
    // Predicated region
    $region37: #{unet_block_forward.1} parent=5 // pred_check
      %p225 = pneg %p224
    $region38: #{unet_block_forward.1} parent=5 // pred_check_branch
      %227 = sbr.rel (%p225) target = $region40
    $region39: #{unet_block_forward.1} parent=5 // pred_region
      // Predicated region
      $region41: #{unet_block_forward.1} parent=39 // pred_check
        %p228 = pneg %p33
      $region42: #{unet_block_forward.1} parent=39 // pred_check_branch
        %230 = sbr.rel (%p228) target = $region44
      $region43: #{unet_block_forward.1} parent=39 // pred_region
        %p231 = scmp.lt.s32.totalorder %s13, 1
        %s232 = scalar_select %p231, %s13, 1
        %s233 = smul.addr %s232, 54
        %s234 = smul.addr %s233, 8
        %s235 = scalar_lea.vmem %s0, %s234
      $region44: #{unet_block_forward.1} parent=39 // pred_fallthru
        _
    $region40: #{unet_block_forward.1} parent=5 // pred_fallthru
      _
    %p236 = scmp.le.s32.totalorder 1, %s13
    %p237 = scmp.lt.s32.totalorder %s13, 3
    %p238 = pnand %p236, %p237
    %p239 = pneg %p238
    // Predicated region
    $region45: #{unet_block_forward.1} parent=5 // pred_check
      _
    $region46: #{unet_block_forward.1} parent=5 // pred_check_branch
      %241 = sbr.rel (%p238) target = $region48
    $region47: #{unet_block_forward.1} parent=5 // pred_region
      %s242 = ssub.s32 %s13, 1
      %p243 = scmp.lt.s32.totalorder %s18, 1
      %s244 = scalar_select %p243, %s18, 1
      %s245 = smul.addr %s244, 54
      %s246 = smul.addr %s245, 8
      %s247 = scalar_lea.vmem %s0, %s246
      %p248 = pneg %p39
      %p249 = pneg %p36
      %p250 = pneg %p60
      %p251 = pneg %p57
      %p252 = pneg %p81
      %p253 = pneg %p78
      %p254 = pneg %p102
      %p255 = pneg %p99
      %p256 = pneg %p123
      %p257 = pneg %p120
      %p258 = pneg %p144
      %p259 = pneg %p141
      %p260 = pneg %p165
      %p261 = pneg %p162
      %p262 = pneg %p191
      %p263 = pneg %p188
      %p264 = scmp.lt.s32.totalorder %s18, 1
      %s265 = scalar_select %p264, %s18, 1
      %s266 = smul.addr %s265, 32
      %s267 = smul.addr %s266, 8
      %s268 = scalar_lea.vmem %s7, %s267
      %p269 = scmp.lt.s32.totalorder %s18, 1
      %s270 = scalar_select %p269, %s18, 1
      %s271 = smul.addr %s270, 54
      %s272 = smul.addr %s271, 8
      %s273 = scalar_lea.vmem %s0, %s272
      %p274 = scmp.lt.s32.totalorder %s18, 1
      %s275 = scalar_select %p274, %s18, 1
      %s276 = smul.addr %s275, 32
      %s277 = smul.addr %s276, 8
      %s278 = scalar_lea.vmem %s7, %s277
      %v279 = vld [vmem:[%s273] sm:$0xff]
      %v280 = vld [vmem:[%s273 + $0x8] sm:$0xff]
      %v281 = vld [vmem:[%s273 + $0x18] sm:$0xff]
      %v282 = vld [vmem:[%s273 + $0x20] sm:$0xff]
      %v283 = vld [vmem:[%s273 + $0x30] sm:$0xff]
      %v284 = vld [vmem:[%s273 + $0x38] sm:$0xff]
      %v285 = vld [vmem:[%s273 + $0x48] sm:$0xff]
      %v286 = vld [vmem:[%s273 + $0x50] sm:$0xff]
      %v287 = vld [vmem:[%s273 + $0x60] sm:$0xff]
      %v288 = vld [vmem:[%s273 + $0x68] sm:$0xff]
      %v289 = vld [vmem:[%s273 + $0x78] sm:$0xff]
      %v290 = vld [vmem:[%s273 + $0x80] sm:$0xff]
      %v291 = vld [vmem:[%s273 + $0x90] sm:$0xff]
      %v292 = vld [vmem:[%s273 + $0x98] sm:$0xff]
      %v293 = vld [vmem:[%s273 + $0xa8] sm:$0xff]
      %v294 = vld [vmem:[%s273 + $0xb0] sm:$0xff]
      %v295 = vld [vmem:[%s273 + $0xc0] sm:$0xff]
      %v296 = vld [vmem:[%s273 + $0xc8] sm:$0xff]
      %v297 = vld [vmem:[%s273 + $0xd8] sm:$0xff]
      %v298 = vld [vmem:[%s273 + $0xe0] sm:$0xff]
      %v299 = vld [vmem:[%s273 + $0xf0] sm:$0xff]
      %v300 = vld [vmem:[%s273 + $0xf8] sm:$0xff]
      %v301 = vld [vmem:[%s273 + $0x108] sm:$0xff]
      %v302 = vld [vmem:[%s273 + $0x110] sm:$0xff]
      %v303 = vld [vmem:[%s273 + $0x120] sm:$0xff]
      %v304 = vld [vmem:[%s273 + $0x128] sm:$0xff]
      %v305 = vld [vmem:[%s273 + $0x138] sm:$0xff]
      %v306 = vld [vmem:[%s273 + $0x140] sm:$0xff]
      %v307 = vld [vmem:[%s273 + $0x150] sm:$0xff]
      %v308 = vld [vmem:[%s273 + $0x158] sm:$0xff]
      %v309 = vld [vmem:[%s273 + $0x168] sm:$0xff]
      %v310 = vld [vmem:[%s273 + $0x170] sm:$0xff]
      %v311 = vld [vmem:[%s273 + $0x1] sm:$0xff]
      %v312 = vld [vmem:[%s273 + $0x9] sm:$0xff]
      %v313 = vld [vmem:[%s273 + $0x19] sm:$0xff]
      %v314 = vld [vmem:[%s273 + $0x21] sm:$0xff]
      %v315 = vld [vmem:[%s273 + $0x31] sm:$0xff]
      %v316 = vld [vmem:[%s273 + $0x39] sm:$0xff]
      %v317 = vld [vmem:[%s273 + $0x49] sm:$0xff]
      %v318 = vld [vmem:[%s273 + $0x51] sm:$0xff]
      %v319 = vld [vmem:[%s273 + $0x61] sm:$0xff]
      %v320 = vld [vmem:[%s273 + $0x69] sm:$0xff]
      %v321 = vld [vmem:[%s273 + $0x79] sm:$0xff]
      %v322 = vld [vmem:[%s273 + $0x81] sm:$0xff]
      %v323 = vld [vmem:[%s273 + $0x91] sm:$0xff]
      %v324 = vld [vmem:[%s273 + $0x99] sm:$0xff]
      %v325 = vld [vmem:[%s273 + $0xa9] sm:$0xff]
      %v326 = vld [vmem:[%s273 + $0xb1] sm:$0xff]
      %v327 = vld [vmem:[%s273 + $0xc1] sm:$0xff]
      %v328 = vld [vmem:[%s273 + $0xc9] sm:$0xff]
      %v329 = vld [vmem:[%s273 + $0xd9] sm:$0xff]
      %v330 = vld [vmem:[%s273 + $0xe1] sm:$0xff]
      %v331 = vld [vmem:[%s273 + $0xf1] sm:$0xff]
      %v332 = vld [vmem:[%s273 + $0xf9] sm:$0xff]
      %v333 = vld [vmem:[%s273 + $0x109] sm:$0xff]
      %v334 = vld [vmem:[%s273 + $0x111] sm:$0xff]
      %v335 = vld [vmem:[%s273 + $0x121] sm:$0xff]
      %v336 = vld [vmem:[%s273 + $0x129] sm:$0xff]
      %v337 = vld [vmem:[%s273 + $0x139] sm:$0xff]
      %v338 = vld [vmem:[%s273 + $0x141] sm:$0xff]
      %v339 = vld [vmem:[%s273 + $0x151] sm:$0xff]
      %v340 = vld [vmem:[%s273 + $0x159] sm:$0xff]
      %v341 = vld [vmem:[%s273 + $0x169] sm:$0xff]
      %v342 = vld [vmem:[%s273 + $0x171] sm:$0xff]
      %v343 = vld [vmem:[%s273 + $0x2] sm:$0xff]
      %v344 = vld [vmem:[%s273 + $0xa] sm:$0xff]
      %v345 = vld [vmem:[%s273 + $0x1a] sm:$0xff]
      %v346 = vld [vmem:[%s273 + $0x22] sm:$0xff]
      %v347 = vld [vmem:[%s273 + $0x32] sm:$0xff]
      %v348 = vld [vmem:[%s273 + $0x3a] sm:$0xff]
      %v349 = vld [vmem:[%s273 + $0x4a] sm:$0xff]
      %v350 = vld [vmem:[%s273 + $0x52] sm:$0xff]
      %v351 = vld [vmem:[%s273 + $0x62] sm:$0xff]
      %v352 = vld [vmem:[%s273 + $0x6a] sm:$0xff]
      %v353 = vld [vmem:[%s273 + $0x7a] sm:$0xff]
      %v354 = vld [vmem:[%s273 + $0x82] sm:$0xff]
      %v355 = vld [vmem:[%s273 + $0x92] sm:$0xff]
      %v356 = vld [vmem:[%s273 + $0x9a] sm:$0xff]
      %v357 = vld [vmem:[%s273 + $0xaa] sm:$0xff]
      %v358 = vld [vmem:[%s273 + $0xb2] sm:$0xff]
      %v359 = vld [vmem:[%s273 + $0xc2] sm:$0xff]
      %v360 = vld [vmem:[%s273 + $0xca] sm:$0xff]
      %v361 = vld [vmem:[%s273 + $0xda] sm:$0xff]
      %v362 = vld [vmem:[%s273 + $0xe2] sm:$0xff]
      %v363 = vld [vmem:[%s273 + $0xf2] sm:$0xff]
      %v364 = vld [vmem:[%s273 + $0xfa] sm:$0xff]
      %v365 = vld [vmem:[%s273 + $0x10a] sm:$0xff]
      %v366 = vld [vmem:[%s273 + $0x112] sm:$0xff]
      %v367 = vld [vmem:[%s273 + $0x122] sm:$0xff]
      %v368 = vld [vmem:[%s273 + $0x12a] sm:$0xff]
      %v369 = vld [vmem:[%s273 + $0x13a] sm:$0xff]
      %v370 = vld [vmem:[%s273 + $0x142] sm:$0xff]
      %v371 = vld [vmem:[%s273 + $0x152] sm:$0xff]
      %v372 = vld [vmem:[%s273 + $0x15a] sm:$0xff]
      %v373 = vld [vmem:[%s273 + $0x16a] sm:$0xff]
      %v374 = vld [vmem:[%s273 + $0x172] sm:$0xff]
      %s375 = scalar_lea.vmem %s273, 24
      %v376 = vld [vmem:[%s375] sm:$0xff]
      %v377 = vld [vmem:[%s375 + $0x8] sm:$0xff]
      %v378 = vld [vmem:[%s375 + $0x18] sm:$0xff]
      %v379 = vld [vmem:[%s375 + $0x20] sm:$0xff]
      %v380 = vld [vmem:[%s375 + $0x30] sm:$0xff]
      %v381 = vld [vmem:[%s375 + $0x38] sm:$0xff]
      %v382 = vld [vmem:[%s375 + $0x48] sm:$0xff]
      %v383 = vld [vmem:[%s375 + $0x50] sm:$0xff]
      %v384 = vld [vmem:[%s375 + $0x60] sm:$0xff]
      %v385 = vld [vmem:[%s375 + $0x68] sm:$0xff]
      %v386 = vld [vmem:[%s375 + $0x78] sm:$0xff]
      %v387 = vld [vmem:[%s375 + $0x80] sm:$0xff]
      %v388 = vld [vmem:[%s375 + $0x90] sm:$0xff]
      %v389 = vld [vmem:[%s375 + $0x98] sm:$0xff]
      %v390 = vld [vmem:[%s375 + $0xa8] sm:$0xff]
      %v391 = vld [vmem:[%s375 + $0xb0] sm:$0xff]
      %v392 = vld [vmem:[%s375 + $0xc0] sm:$0xff]
      %v393 = vld [vmem:[%s375 + $0xc8] sm:$0xff]
      %v394 = vld [vmem:[%s375 + $0xd8] sm:$0xff]
      %v395 = vld [vmem:[%s375 + $0xe0] sm:$0xff]
      %v396 = vld [vmem:[%s375 + $0xf0] sm:$0xff]
      %v397 = vld [vmem:[%s375 + $0xf8] sm:$0xff]
      %v398 = vld [vmem:[%s375 + $0x108] sm:$0xff]
      %v399 = vld [vmem:[%s375 + $0x110] sm:$0xff]
      %v400 = vld [vmem:[%s375 + $0x120] sm:$0xff]
      %v401 = vld [vmem:[%s375 + $0x128] sm:$0xff]
      %v402 = vld [vmem:[%s375 + $0x138] sm:$0xff]
      %v403 = vld [vmem:[%s375 + $0x140] sm:$0xff]
      %v404 = vld [vmem:[%s375 + $0x150] sm:$0xff]
      %v405 = vld [vmem:[%s375 + $0x158] sm:$0xff]
      %v406 = vld [vmem:[%s375 + $0x168] sm:$0xff]
      %v407 = vld [vmem:[%s375 + $0x170] sm:$0xff]
      %v408 = vld [vmem:[%s375 + $0x1] sm:$0xff]
      %v409 = vld [vmem:[%s375 + $0x9] sm:$0xff]
      %v410 = vld [vmem:[%s375 + $0x19] sm:$0xff]
      %v411 = vld [vmem:[%s375 + $0x21] sm:$0xff]
      %v412 = vld [vmem:[%s375 + $0x31] sm:$0xff]
      %v413 = vld [vmem:[%s375 + $0x39] sm:$0xff]
      %v414 = vld [vmem:[%s375 + $0x49] sm:$0xff]
      %v415 = vld [vmem:[%s375 + $0x51] sm:$0xff]
      %v416 = vld [vmem:[%s375 + $0x61] sm:$0xff]
      %v417 = vld [vmem:[%s375 + $0x69] sm:$0xff]
      %v418 = vld [vmem:[%s375 + $0x79] sm:$0xff]
      %v419 = vld [vmem:[%s375 + $0x81] sm:$0xff]
      %v420 = vld [vmem:[%s375 + $0x91] sm:$0xff]
      %v421 = vld [vmem:[%s375 + $0x99] sm:$0xff]
      %v422 = vld [vmem:[%s375 + $0xa9] sm:$0xff]
      %v423 = vld [vmem:[%s375 + $0xb1] sm:$0xff]
      %v424 = vld [vmem:[%s375 + $0xc1] sm:$0xff]
      %v425 = vld [vmem:[%s375 + $0xc9] sm:$0xff]
      %v426 = vld [vmem:[%s375 + $0xd9] sm:$0xff]
      %v427 = vld [vmem:[%s375 + $0xe1] sm:$0xff]
      %v428 = vld [vmem:[%s375 + $0xf1] sm:$0xff]
      %v429 = vld [vmem:[%s375 + $0xf9] sm:$0xff]
      %v430 = vld [vmem:[%s375 + $0x109] sm:$0xff]
      %v431 = vld [vmem:[%s375 + $0x111] sm:$0xff]
      %v432 = vld [vmem:[%s375 + $0x121] sm:$0xff]
      %v433 = vld [vmem:[%s375 + $0x129] sm:$0xff]
      %v434 = vld [vmem:[%s375 + $0x139] sm:$0xff]
      %v435 = vld [vmem:[%s375 + $0x141] sm:$0xff]
      %v436 = vld [vmem:[%s375 + $0x151] sm:$0xff]
      %v437 = vld [vmem:[%s375 + $0x159] sm:$0xff]
      %v438 = vld [vmem:[%s375 + $0x169] sm:$0xff]
      %v439 = vld [vmem:[%s375 + $0x171] sm:$0xff]
      %v440 = vld [vmem:[%s375 + $0x2] sm:$0xff]
      %v441 = vld [vmem:[%s375 + $0xa] sm:$0xff]
      %v442 = vld [vmem:[%s375 + $0x1a] sm:$0xff]
      %v443 = vld [vmem:[%s375 + $0x22] sm:$0xff]
      %v444 = vld [vmem:[%s375 + $0x32] sm:$0xff]
      %v445 = vld [vmem:[%s375 + $0x3a] sm:$0xff]
      %v446 = vld [vmem:[%s375 + $0x4a] sm:$0xff]
      %v447 = vld [vmem:[%s375 + $0x52] sm:$0xff]
      %v448 = vld [vmem:[%s375 + $0x62] sm:$0xff]
      %v449 = vld [vmem:[%s375 + $0x6a] sm:$0xff]
      %v450 = vld [vmem:[%s375 + $0x7a] sm:$0xff]
      %v451 = vld [vmem:[%s375 + $0x82] sm:$0xff]
      %v452 = vld [vmem:[%s375 + $0x92] sm:$0xff]
      %v453 = vld [vmem:[%s375 + $0x9a] sm:$0xff]
      %v454 = vld [vmem:[%s375 + $0xaa] sm:$0xff]
      %v455 = vld [vmem:[%s375 + $0xb2] sm:$0xff]
      %v456 = vld [vmem:[%s375 + $0xc2] sm:$0xff]
      %v457 = vld [vmem:[%s375 + $0xca] sm:$0xff]
      %v458 = vld [vmem:[%s375 + $0xda] sm:$0xff]
      %v459 = vld [vmem:[%s375 + $0xe2] sm:$0xff]
      %v460 = vld [vmem:[%s375 + $0xf2] sm:$0xff]
      %v461 = vld [vmem:[%s375 + $0xfa] sm:$0xff]
      %v462 = vld [vmem:[%s375 + $0x10a] sm:$0xff]
      %v463 = vld [vmem:[%s375 + $0x112] sm:$0xff]
      %v464 = vld [vmem:[%s375 + $0x122] sm:$0xff]
      %v465 = vld [vmem:[%s375 + $0x12a] sm:$0xff]
      %v466 = vld [vmem:[%s375 + $0x13a] sm:$0xff]
      %v467 = vld [vmem:[%s375 + $0x142] sm:$0xff]
      %v468 = vld [vmem:[%s375 + $0x152] sm:$0xff]
      %v469 = vld [vmem:[%s375 + $0x15a] sm:$0xff]
      %v470 = vld [vmem:[%s375 + $0x16a] sm:$0xff]
      %v471 = vld [vmem:[%s375 + $0x172] sm:$0xff]
      %s472 = scalar_lea.vmem %s273, 48
      %v473 = vld [vmem:[%s472] sm:$0xff]
      %v474 = vld [vmem:[%s472 + $0x8] sm:$0xff]
      %v475 = vld [vmem:[%s472 + $0x18] sm:$0xff]
      %v476 = vld [vmem:[%s472 + $0x20] sm:$0xff]
      %v477 = vld [vmem:[%s472 + $0x30] sm:$0xff]
      %v478 = vld [vmem:[%s472 + $0x38] sm:$0xff]
      %v479 = vld [vmem:[%s472 + $0x48] sm:$0xff]
      %v480 = vld [vmem:[%s472 + $0x50] sm:$0xff]
      %v481 = vld [vmem:[%s472 + $0x60] sm:$0xff]
      %v482 = vld [vmem:[%s472 + $0x68] sm:$0xff]
      %v483 = vld [vmem:[%s472 + $0x78] sm:$0xff]
      %v484 = vld [vmem:[%s472 + $0x80] sm:$0xff]
      %v485 = vld [vmem:[%s472 + $0x90] sm:$0xff]
      %v486 = vld [vmem:[%s472 + $0x98] sm:$0xff]
      %v487 = vld [vmem:[%s472 + $0xa8] sm:$0xff]
      %v488 = vld [vmem:[%s472 + $0xb0] sm:$0xff]
      %v489 = vld [vmem:[%s472 + $0xc0] sm:$0xff]
      %v490 = vld [vmem:[%s472 + $0xc8] sm:$0xff]
      %v491 = vld [vmem:[%s472 + $0xd8] sm:$0xff]
      %v492 = vld [vmem:[%s472 + $0xe0] sm:$0xff]
      %v493 = vld [vmem:[%s472 + $0xf0] sm:$0xff]
      %v494 = vld [vmem:[%s472 + $0xf8] sm:$0xff]
      %v495 = vld [vmem:[%s472 + $0x108] sm:$0xff]
      %v496 = vld [vmem:[%s472 + $0x110] sm:$0xff]
      %v497 = vld [vmem:[%s472 + $0x120] sm:$0xff]
      %v498 = vld [vmem:[%s472 + $0x128] sm:$0xff]
      %v499 = vld [vmem:[%s472 + $0x138] sm:$0xff]
      %v500 = vld [vmem:[%s472 + $0x140] sm:$0xff]
      %v501 = vld [vmem:[%s472 + $0x150] sm:$0xff]
      %v502 = vld [vmem:[%s472 + $0x158] sm:$0xff]
      %v503 = vld [vmem:[%s472 + $0x168] sm:$0xff]
      %v504 = vld [vmem:[%s472 + $0x170] sm:$0xff]
      %v505 = vld [vmem:[%s472 + $0x1] sm:$0xff]
      %v506 = vld [vmem:[%s472 + $0x9] sm:$0xff]
      %v507 = vld [vmem:[%s472 + $0x19] sm:$0xff]
      %v508 = vld [vmem:[%s472 + $0x21] sm:$0xff]
      %v509 = vld [vmem:[%s472 + $0x31] sm:$0xff]
      %v510 = vld [vmem:[%s472 + $0x39] sm:$0xff]
      %v511 = vld [vmem:[%s472 + $0x49] sm:$0xff]
      %v512 = vld [vmem:[%s472 + $0x51] sm:$0xff]
      %v513 = vld [vmem:[%s472 + $0x61] sm:$0xff]
      %v514 = vld [vmem:[%s472 + $0x69] sm:$0xff]
      %v515 = vld [vmem:[%s472 + $0x79] sm:$0xff]
      %v516 = vld [vmem:[%s472 + $0x81] sm:$0xff]
      %v517 = vld [vmem:[%s472 + $0x91] sm:$0xff]
      %v518 = vld [vmem:[%s472 + $0x99] sm:$0xff]
      %v519 = vld [vmem:[%s472 + $0xa9] sm:$0xff]
      %v520 = vld [vmem:[%s472 + $0xb1] sm:$0xff]
      %v521 = vld [vmem:[%s472 + $0xc1] sm:$0xff]
      %v522 = vld [vmem:[%s472 + $0xc9] sm:$0xff]
      %v523 = vld [vmem:[%s472 + $0xd9] sm:$0xff]
      %v524 = vld [vmem:[%s472 + $0xe1] sm:$0xff]
      %v525 = vld [vmem:[%s472 + $0xf1] sm:$0xff]
      %v526 = vld [vmem:[%s472 + $0xf9] sm:$0xff]
      %v527 = vld [vmem:[%s472 + $0x109] sm:$0xff]
      %v528 = vld [vmem:[%s472 + $0x111] sm:$0xff]
      %v529 = vld [vmem:[%s472 + $0x121] sm:$0xff]
      %v530 = vld [vmem:[%s472 + $0x129] sm:$0xff]
      %v531 = vld [vmem:[%s472 + $0x139] sm:$0xff]
      %v532 = vld [vmem:[%s472 + $0x141] sm:$0xff]
      %v533 = vld [vmem:[%s472 + $0x151] sm:$0xff]
      %v534 = vld [vmem:[%s472 + $0x159] sm:$0xff]
      %v535 = vld [vmem:[%s472 + $0x169] sm:$0xff]
      %v536 = vld [vmem:[%s472 + $0x171] sm:$0xff]
      %v537 = vld [vmem:[%s472 + $0x2] sm:$0xff]
      %v538 = vld [vmem:[%s472 + $0xa] sm:$0xff]
      %v539 = vld [vmem:[%s472 + $0x1a] sm:$0xff]
      %v540 = vld [vmem:[%s472 + $0x22] sm:$0xff]
      %v541 = vld [vmem:[%s472 + $0x32] sm:$0xff]
      %v542 = vld [vmem:[%s472 + $0x3a] sm:$0xff]
      %v543 = vld [vmem:[%s472 + $0x4a] sm:$0xff]
      %v544 = vld [vmem:[%s472 + $0x52] sm:$0xff]
      %v545 = vld [vmem:[%s472 + $0x62] sm:$0xff]
      %v546 = vld [vmem:[%s472 + $0x6a] sm:$0xff]
      %v547 = vld [vmem:[%s472 + $0x7a] sm:$0xff]
      %v548 = vld [vmem:[%s472 + $0x82] sm:$0xff]
      %v549 = vld [vmem:[%s472 + $0x92] sm:$0xff]
      %v550 = vld [vmem:[%s472 + $0x9a] sm:$0xff]
      %v551 = vld [vmem:[%s472 + $0xaa] sm:$0xff]
      %v552 = vld [vmem:[%s472 + $0xb2] sm:$0xff]
      %v553 = vld [vmem:[%s472 + $0xc2] sm:$0xff]
      %v554 = vld [vmem:[%s472 + $0xca] sm:$0xff]
      %v555 = vld [vmem:[%s472 + $0xda] sm:$0xff]
      %v556 = vld [vmem:[%s472 + $0xe2] sm:$0xff]
      %v557 = vld [vmem:[%s472 + $0xf2] sm:$0xff]
      %v558 = vld [vmem:[%s472 + $0xfa] sm:$0xff]
      %v559 = vld [vmem:[%s472 + $0x10a] sm:$0xff]
      %v560 = vld [vmem:[%s472 + $0x112] sm:$0xff]
      %v561 = vld [vmem:[%s472 + $0x122] sm:$0xff]
      %v562 = vld [vmem:[%s472 + $0x12a] sm:$0xff]
      %v563 = vld [vmem:[%s472 + $0x13a] sm:$0xff]
      %v564 = vld [vmem:[%s472 + $0x142] sm:$0xff]
      %v565 = vld [vmem:[%s472 + $0x152] sm:$0xff]
      %v566 = vld [vmem:[%s472 + $0x15a] sm:$0xff]
      %v567 = vld [vmem:[%s472 + $0x16a] sm:$0xff]
      %v568 = vld [vmem:[%s472 + $0x172] sm:$0xff]
      %601 = vrot.lane.b32.xlu0 %v311, 4
      %v602 = vpop.permute.xlu0 %601
      %603 = vrot.lane.b32.xlu0 %v312, 4
      %v604 = vpop.permute.xlu0 %603
      %605 = vrot.lane.b32.xlu0 %v313, 4
      %v606 = vpop.permute.xlu0 %605
      %607 = vrot.lane.b32.xlu0 %v314, 4
      %v608 = vpop.permute.xlu0 %607
      %609 = vrot.lane.b32.xlu0 %v315, 4
      %v610 = vpop.permute.xlu0 %609
      %611 = vrot.lane.b32.xlu0 %v316, 4
      %v612 = vpop.permute.xlu0 %611
      %613 = vrot.lane.b32.xlu0 %v317, 4
      %v614 = vpop.permute.xlu0 %613
      %615 = vrot.lane.b32.xlu0 %v318, 4
      %v616 = vpop.permute.xlu0 %615
      %617 = vrot.lane.b32.xlu0 %v319, 4
      %v618 = vpop.permute.xlu0 %617
      %619 = vrot.lane.b32.xlu0 %v320, 4
      %v620 = vpop.permute.xlu0 %619
      %621 = vrot.lane.b32.xlu0 %v321, 4
      %v622 = vpop.permute.xlu0 %621
      %623 = vrot.lane.b32.xlu0 %v322, 4
      %v624 = vpop.permute.xlu0 %623
      %625 = vrot.lane.b32.xlu0 %v323, 4
      %v626 = vpop.permute.xlu0 %625
      %627 = vrot.lane.b32.xlu0 %v324, 4
      %v628 = vpop.permute.xlu0 %627
      %629 = vrot.lane.b32.xlu0 %v325, 4
      %v630 = vpop.permute.xlu0 %629
      %631 = vrot.lane.b32.xlu0 %v326, 4
      %v632 = vpop.permute.xlu0 %631
      %633 = vrot.lane.b32.xlu0 %v327, 4
      %v634 = vpop.permute.xlu0 %633
      %635 = vrot.lane.b32.xlu0 %v328, 4
      %v636 = vpop.permute.xlu0 %635
      %637 = vrot.lane.b32.xlu0 %v329, 4
      %v638 = vpop.permute.xlu0 %637
      %639 = vrot.lane.b32.xlu0 %v330, 4
      %v640 = vpop.permute.xlu0 %639
      %641 = vrot.lane.b32.xlu0 %v331, 4
      %v642 = vpop.permute.xlu0 %641
      %643 = vrot.lane.b32.xlu0 %v332, 4
      %v644 = vpop.permute.xlu0 %643
      %645 = vrot.lane.b32.xlu0 %v333, 4
      %v646 = vpop.permute.xlu0 %645
      %647 = vrot.lane.b32.xlu0 %v334, 4
      %v648 = vpop.permute.xlu0 %647
      %649 = vrot.lane.b32.xlu0 %v335, 4
      %v650 = vpop.permute.xlu0 %649
      %651 = vrot.lane.b32.xlu0 %v336, 4
      %v652 = vpop.permute.xlu0 %651
      %653 = vrot.lane.b32.xlu0 %v337, 4
      %v654 = vpop.permute.xlu0 %653
      %655 = vrot.lane.b32.xlu0 %v338, 4
      %v656 = vpop.permute.xlu0 %655
      %657 = vrot.lane.b32.xlu0 %v339, 4
      %v658 = vpop.permute.xlu0 %657
      %659 = vrot.lane.b32.xlu0 %v340, 4
      %v660 = vpop.permute.xlu0 %659
      %661 = vrot.lane.b32.xlu0 %v341, 4
      %v662 = vpop.permute.xlu0 %661
      %663 = vrot.lane.b32.xlu0 %v342, 4
      %v664 = vpop.permute.xlu0 %663
      %729 = vrot.lane.b32.xlu0 %v343, 8
      %v730 = vpop.permute.xlu0 %729
      %731 = vrot.lane.b32.xlu0 %v344, 8
      %v732 = vpop.permute.xlu0 %731
      %733 = vrot.lane.b32.xlu0 %v345, 8
      %v734 = vpop.permute.xlu0 %733
      %735 = vrot.lane.b32.xlu0 %v346, 8
      %v736 = vpop.permute.xlu0 %735
      %737 = vrot.lane.b32.xlu0 %v347, 8
      %v738 = vpop.permute.xlu0 %737
      %739 = vrot.lane.b32.xlu0 %v348, 8
      %v740 = vpop.permute.xlu0 %739
      %741 = vrot.lane.b32.xlu0 %v349, 8
      %v742 = vpop.permute.xlu0 %741
      %743 = vrot.lane.b32.xlu0 %v350, 8
      %v744 = vpop.permute.xlu0 %743
      %745 = vrot.lane.b32.xlu0 %v351, 8
      %v746 = vpop.permute.xlu0 %745
      %747 = vrot.lane.b32.xlu0 %v352, 8
      %v748 = vpop.permute.xlu0 %747
      %749 = vrot.lane.b32.xlu0 %v353, 8
      %v750 = vpop.permute.xlu0 %749
      %751 = vrot.lane.b32.xlu0 %v354, 8
      %v752 = vpop.permute.xlu0 %751
      %753 = vrot.lane.b32.xlu0 %v355, 8
      %v754 = vpop.permute.xlu0 %753
      %755 = vrot.lane.b32.xlu0 %v356, 8
      %v756 = vpop.permute.xlu0 %755
      %757 = vrot.lane.b32.xlu0 %v357, 8
      %v758 = vpop.permute.xlu0 %757
      %759 = vrot.lane.b32.xlu0 %v358, 8
      %v760 = vpop.permute.xlu0 %759
      %761 = vrot.lane.b32.xlu0 %v359, 8
      %v762 = vpop.permute.xlu0 %761
      %763 = vrot.lane.b32.xlu0 %v360, 8
      %v764 = vpop.permute.xlu0 %763
      %765 = vrot.lane.b32.xlu0 %v361, 8
      %v766 = vpop.permute.xlu0 %765
      %767 = vrot.lane.b32.xlu0 %v362, 8
      %v768 = vpop.permute.xlu0 %767
      %769 = vrot.lane.b32.xlu0 %v363, 8
      %v770 = vpop.permute.xlu0 %769
      %771 = vrot.lane.b32.xlu0 %v364, 8
      %v772 = vpop.permute.xlu0 %771
      %773 = vrot.lane.b32.xlu0 %v365, 8
      %v774 = vpop.permute.xlu0 %773
      %775 = vrot.lane.b32.xlu0 %v366, 8
      %v776 = vpop.permute.xlu0 %775
      %777 = vrot.lane.b32.xlu0 %v367, 8
      %v778 = vpop.permute.xlu0 %777
      %779 = vrot.lane.b32.xlu0 %v368, 8
      %v780 = vpop.permute.xlu0 %779
      %781 = vrot.lane.b32.xlu0 %v369, 8
      %v782 = vpop.permute.xlu0 %781
      %783 = vrot.lane.b32.xlu0 %v370, 8
      %v784 = vpop.permute.xlu0 %783
      %785 = vrot.lane.b32.xlu0 %v371, 8
      %v786 = vpop.permute.xlu0 %785
      %787 = vrot.lane.b32.xlu0 %v372, 8
      %v788 = vpop.permute.xlu0 %787
      %789 = vrot.lane.b32.xlu0 %v373, 8
      %v790 = vpop.permute.xlu0 %789
      %791 = vrot.lane.b32.xlu0 %v374, 8
      %v792 = vpop.permute.xlu0 %791
      %857 = vrot.lane.b32.xlu0 %v376, 12
      %v858 = vpop.permute.xlu0 %857
      %859 = vrot.lane.b32.xlu0 %v377, 12
      %v860 = vpop.permute.xlu0 %859
      %861 = vrot.lane.b32.xlu0 %v378, 12
      %v862 = vpop.permute.xlu0 %861
      %863 = vrot.lane.b32.xlu0 %v379, 12
      %v864 = vpop.permute.xlu0 %863
      %865 = vrot.lane.b32.xlu0 %v380, 12
      %v866 = vpop.permute.xlu0 %865
      %867 = vrot.lane.b32.xlu0 %v381, 12
      %v868 = vpop.permute.xlu0 %867
      %869 = vrot.lane.b32.xlu0 %v382, 12
      %v870 = vpop.permute.xlu0 %869
      %871 = vrot.lane.b32.xlu0 %v383, 12
      %v872 = vpop.permute.xlu0 %871
      %873 = vrot.lane.b32.xlu0 %v384, 12
      %v874 = vpop.permute.xlu0 %873
      %875 = vrot.lane.b32.xlu0 %v385, 12
      %v876 = vpop.permute.xlu0 %875
      %877 = vrot.lane.b32.xlu0 %v386, 12
      %v878 = vpop.permute.xlu0 %877
      %879 = vrot.lane.b32.xlu0 %v387, 12
      %v880 = vpop.permute.xlu0 %879
      %881 = vrot.lane.b32.xlu0 %v388, 12
      %v882 = vpop.permute.xlu0 %881
      %883 = vrot.lane.b32.xlu0 %v389, 12
      %v884 = vpop.permute.xlu0 %883
      %885 = vrot.lane.b32.xlu0 %v390, 12
      %v886 = vpop.permute.xlu0 %885
      %887 = vrot.lane.b32.xlu0 %v391, 12
      %v888 = vpop.permute.xlu0 %887
      %889 = vrot.lane.b32.xlu0 %v392, 12
      %v890 = vpop.permute.xlu0 %889
      %891 = vrot.lane.b32.xlu0 %v393, 12
      %v892 = vpop.permute.xlu0 %891
      %893 = vrot.lane.b32.xlu0 %v394, 12
      %v894 = vpop.permute.xlu0 %893
      %895 = vrot.lane.b32.xlu0 %v395, 12
      %v896 = vpop.permute.xlu0 %895
      %897 = vrot.lane.b32.xlu0 %v396, 12
      %v898 = vpop.permute.xlu0 %897
      %899 = vrot.lane.b32.xlu0 %v397, 12
      %v900 = vpop.permute.xlu0 %899
      %901 = vrot.lane.b32.xlu0 %v398, 12
      %v902 = vpop.permute.xlu0 %901
      %903 = vrot.lane.b32.xlu0 %v399, 12
      %v904 = vpop.permute.xlu0 %903
      %905 = vrot.lane.b32.xlu0 %v400, 12
      %v906 = vpop.permute.xlu0 %905
      %907 = vrot.lane.b32.xlu0 %v401, 12
      %v908 = vpop.permute.xlu0 %907
      %909 = vrot.lane.b32.xlu0 %v402, 12
      %v910 = vpop.permute.xlu0 %909
      %911 = vrot.lane.b32.xlu0 %v403, 12
      %v912 = vpop.permute.xlu0 %911
      %913 = vrot.lane.b32.xlu0 %v404, 12
      %v914 = vpop.permute.xlu0 %913
      %915 = vrot.lane.b32.xlu0 %v405, 12
      %v916 = vpop.permute.xlu0 %915
      %917 = vrot.lane.b32.xlu0 %v406, 12
      %v918 = vpop.permute.xlu0 %917
      %919 = vrot.lane.b32.xlu0 %v407, 12
      %v920 = vpop.permute.xlu0 %919
      %985 = vrot.lane.b32.xlu0 %v408, 16
      %v986 = vpop.permute.xlu0 %985
      %987 = vrot.lane.b32.xlu0 %v409, 16
      %v988 = vpop.permute.xlu0 %987
      %989 = vrot.lane.b32.xlu0 %v410, 16
      %v990 = vpop.permute.xlu0 %989
      %991 = vrot.lane.b32.xlu0 %v411, 16
      %v992 = vpop.permute.xlu0 %991
      %993 = vrot.lane.b32.xlu0 %v412, 16
      %v994 = vpop.permute.xlu0 %993
      %995 = vrot.lane.b32.xlu0 %v413, 16
      %v996 = vpop.permute.xlu0 %995
      %997 = vrot.lane.b32.xlu0 %v414, 16
      %v998 = vpop.permute.xlu0 %997
      %999 = vrot.lane.b32.xlu0 %v415, 16
      %v1000 = vpop.permute.xlu0 %999
      %1001 = vrot.lane.b32.xlu0 %v416, 16
      %v1002 = vpop.permute.xlu0 %1001
      %1003 = vrot.lane.b32.xlu0 %v417, 16
      %v1004 = vpop.permute.xlu0 %1003
      %1005 = vrot.lane.b32.xlu0 %v418, 16
      %v1006 = vpop.permute.xlu0 %1005
      %1007 = vrot.lane.b32.xlu0 %v419, 16
      %v1008 = vpop.permute.xlu0 %1007
      %1009 = vrot.lane.b32.xlu0 %v420, 16
      %v1010 = vpop.permute.xlu0 %1009
      %1011 = vrot.lane.b32.xlu0 %v421, 16
      %v1012 = vpop.permute.xlu0 %1011
      %1013 = vrot.lane.b32.xlu0 %v422, 16
      %v1014 = vpop.permute.xlu0 %1013
      %1015 = vrot.lane.b32.xlu0 %v423, 16
      %v1016 = vpop.permute.xlu0 %1015
      %1017 = vrot.lane.b32.xlu0 %v424, 16
      %v1018 = vpop.permute.xlu0 %1017
      %1019 = vrot.lane.b32.xlu0 %v425, 16
      %v1020 = vpop.permute.xlu0 %1019
      %1021 = vrot.lane.b32.xlu0 %v426, 16
      %v1022 = vpop.permute.xlu0 %1021
      %1023 = vrot.lane.b32.xlu0 %v427, 16
      %v1024 = vpop.permute.xlu0 %1023
      %1025 = vrot.lane.b32.xlu0 %v428, 16
      %v1026 = vpop.permute.xlu0 %1025
      %1027 = vrot.lane.b32.xlu0 %v429, 16
      %v1028 = vpop.permute.xlu0 %1027
      %1029 = vrot.lane.b32.xlu0 %v430, 16
      %v1030 = vpop.permute.xlu0 %1029
      %1031 = vrot.lane.b32.xlu0 %v431, 16
      %v1032 = vpop.permute.xlu0 %1031
      %1033 = vrot.lane.b32.xlu0 %v432, 16
      %v1034 = vpop.permute.xlu0 %1033
      %1035 = vrot.lane.b32.xlu0 %v433, 16
      %v1036 = vpop.permute.xlu0 %1035
      %1037 = vrot.lane.b32.xlu0 %v434, 16
      %v1038 = vpop.permute.xlu0 %1037
      %1039 = vrot.lane.b32.xlu0 %v435, 16
      %v1040 = vpop.permute.xlu0 %1039
      %1041 = vrot.lane.b32.xlu0 %v436, 16
      %v1042 = vpop.permute.xlu0 %1041
      %1043 = vrot.lane.b32.xlu0 %v437, 16
      %v1044 = vpop.permute.xlu0 %1043
      %1045 = vrot.lane.b32.xlu0 %v438, 16
      %v1046 = vpop.permute.xlu0 %1045
      %1047 = vrot.lane.b32.xlu0 %v439, 16
      %v1048 = vpop.permute.xlu0 %1047
      %1113 = vrot.lane.b32.xlu0 %v440, 20
      %v1114 = vpop.permute.xlu0 %1113
      %1115 = vrot.lane.b32.xlu0 %v441, 20
      %v1116 = vpop.permute.xlu0 %1115
      %1117 = vrot.lane.b32.xlu0 %v442, 20
      %v1118 = vpop.permute.xlu0 %1117
      %1119 = vrot.lane.b32.xlu0 %v443, 20
      %v1120 = vpop.permute.xlu0 %1119
      %1121 = vrot.lane.b32.xlu0 %v444, 20
      %v1122 = vpop.permute.xlu0 %1121
      %1123 = vrot.lane.b32.xlu0 %v445, 20
      %v1124 = vpop.permute.xlu0 %1123
      %1125 = vrot.lane.b32.xlu0 %v446, 20
      %v1126 = vpop.permute.xlu0 %1125
      %1127 = vrot.lane.b32.xlu0 %v447, 20
      %v1128 = vpop.permute.xlu0 %1127
      %1129 = vrot.lane.b32.xlu0 %v448, 20
      %v1130 = vpop.permute.xlu0 %1129
      %1131 = vrot.lane.b32.xlu0 %v449, 20
      %v1132 = vpop.permute.xlu0 %1131
      %1133 = vrot.lane.b32.xlu0 %v450, 20
      %v1134 = vpop.permute.xlu0 %1133
      %1135 = vrot.lane.b32.xlu0 %v451, 20
      %v1136 = vpop.permute.xlu0 %1135
      %1137 = vrot.lane.b32.xlu0 %v452, 20
      %v1138 = vpop.permute.xlu0 %1137
      %1139 = vrot.lane.b32.xlu0 %v453, 20
      %v1140 = vpop.permute.xlu0 %1139
      %1141 = vrot.lane.b32.xlu0 %v454, 20
      %v1142 = vpop.permute.xlu0 %1141
      %1143 = vrot.lane.b32.xlu0 %v455, 20
      %v1144 = vpop.permute.xlu0 %1143
      %1145 = vrot.lane.b32.xlu0 %v456, 20
      %v1146 = vpop.permute.xlu0 %1145
      %1147 = vrot.lane.b32.xlu0 %v457, 20
      %v1148 = vpop.permute.xlu0 %1147
      %1149 = vrot.lane.b32.xlu0 %v458, 20
      %v1150 = vpop.permute.xlu0 %1149
      %1151 = vrot.lane.b32.xlu0 %v459, 20
      %v1152 = vpop.permute.xlu0 %1151
      %1153 = vrot.lane.b32.xlu0 %v460, 20
      %v1154 = vpop.permute.xlu0 %1153
      %1155 = vrot.lane.b32.xlu0 %v461, 20
      %v1156 = vpop.permute.xlu0 %1155
      %1157 = vrot.lane.b32.xlu0 %v462, 20
      %v1158 = vpop.permute.xlu0 %1157
      %1159 = vrot.lane.b32.xlu0 %v463, 20
      %v1160 = vpop.permute.xlu0 %1159
      %1161 = vrot.lane.b32.xlu0 %v464, 20
      %v1162 = vpop.permute.xlu0 %1161
      %1163 = vrot.lane.b32.xlu0 %v465, 20
      %v1164 = vpop.permute.xlu0 %1163
      %1165 = vrot.lane.b32.xlu0 %v466, 20
      %v1166 = vpop.permute.xlu0 %1165
      %1167 = vrot.lane.b32.xlu0 %v467, 20
      %v1168 = vpop.permute.xlu0 %1167
      %1169 = vrot.lane.b32.xlu0 %v468, 20
      %v1170 = vpop.permute.xlu0 %1169
      %1171 = vrot.lane.b32.xlu0 %v469, 20
      %v1172 = vpop.permute.xlu0 %1171
      %1173 = vrot.lane.b32.xlu0 %v470, 20
      %v1174 = vpop.permute.xlu0 %1173
      %1175 = vrot.lane.b32.xlu0 %v471, 20
      %v1176 = vpop.permute.xlu0 %1175
      %1241 = vrot.lane.b32.xlu0 %v473, 24
      %v1242 = vpop.permute.xlu0 %1241
      %1243 = vrot.lane.b32.xlu0 %v474, 24
      %v1244 = vpop.permute.xlu0 %1243
      %1245 = vrot.lane.b32.xlu0 %v475, 24
      %v1246 = vpop.permute.xlu0 %1245
      %1247 = vrot.lane.b32.xlu0 %v476, 24
      %v1248 = vpop.permute.xlu0 %1247
      %1249 = vrot.lane.b32.xlu0 %v477, 24
      %v1250 = vpop.permute.xlu0 %1249
      %1251 = vrot.lane.b32.xlu0 %v478, 24
      %v1252 = vpop.permute.xlu0 %1251
      %1253 = vrot.lane.b32.xlu0 %v479, 24
      %v1254 = vpop.permute.xlu0 %1253
      %1255 = vrot.lane.b32.xlu0 %v480, 24
      %v1256 = vpop.permute.xlu0 %1255
      %1257 = vrot.lane.b32.xlu0 %v481, 24
      %v1258 = vpop.permute.xlu0 %1257
      %1259 = vrot.lane.b32.xlu0 %v482, 24
      %v1260 = vpop.permute.xlu0 %1259
      %1261 = vrot.lane.b32.xlu0 %v483, 24
      %v1262 = vpop.permute.xlu0 %1261
      %1263 = vrot.lane.b32.xlu0 %v484, 24
      %v1264 = vpop.permute.xlu0 %1263
      %1265 = vrot.lane.b32.xlu0 %v485, 24
      %v1266 = vpop.permute.xlu0 %1265
      %1267 = vrot.lane.b32.xlu0 %v486, 24
      %v1268 = vpop.permute.xlu0 %1267
      %1269 = vrot.lane.b32.xlu0 %v487, 24
      %v1270 = vpop.permute.xlu0 %1269
      %1271 = vrot.lane.b32.xlu0 %v488, 24
      %v1272 = vpop.permute.xlu0 %1271
      %1273 = vrot.lane.b32.xlu0 %v489, 24
      %v1274 = vpop.permute.xlu0 %1273
      %1275 = vrot.lane.b32.xlu0 %v490, 24
      %v1276 = vpop.permute.xlu0 %1275
      %1277 = vrot.lane.b32.xlu0 %v491, 24
      %v1278 = vpop.permute.xlu0 %1277
      %1279 = vrot.lane.b32.xlu0 %v492, 24
      %v1280 = vpop.permute.xlu0 %1279
      %1281 = vrot.lane.b32.xlu0 %v493, 24
      %v1282 = vpop.permute.xlu0 %1281
      %1283 = vrot.lane.b32.xlu0 %v494, 24
      %v1284 = vpop.permute.xlu0 %1283
      %1285 = vrot.lane.b32.xlu0 %v495, 24
      %v1286 = vpop.permute.xlu0 %1285
      %1287 = vrot.lane.b32.xlu0 %v496, 24
      %v1288 = vpop.permute.xlu0 %1287
      %1289 = vrot.lane.b32.xlu0 %v497, 24
      %v1290 = vpop.permute.xlu0 %1289
      %1291 = vrot.lane.b32.xlu0 %v498, 24
      %v1292 = vpop.permute.xlu0 %1291
      %1293 = vrot.lane.b32.xlu0 %v499, 24
      %v1294 = vpop.permute.xlu0 %1293
      %1295 = vrot.lane.b32.xlu0 %v500, 24
      %v1296 = vpop.permute.xlu0 %1295
      %1297 = vrot.lane.b32.xlu0 %v501, 24
      %v1298 = vpop.permute.xlu0 %1297
      %1299 = vrot.lane.b32.xlu0 %v502, 24
      %v1300 = vpop.permute.xlu0 %1299
      %1301 = vrot.lane.b32.xlu0 %v503, 24
      %v1302 = vpop.permute.xlu0 %1301
      %1303 = vrot.lane.b32.xlu0 %v504, 24
      %v1304 = vpop.permute.xlu0 %1303
      %1369 = vrot.lane.b32.xlu0 %v505, 28
      %v1370 = vpop.permute.xlu0 %1369
      %1371 = vrot.lane.b32.xlu0 %v506, 28
      %v1372 = vpop.permute.xlu0 %1371
      %1373 = vrot.lane.b32.xlu0 %v507, 28
      %v1374 = vpop.permute.xlu0 %1373
      %1375 = vrot.lane.b32.xlu0 %v508, 28
      %v1376 = vpop.permute.xlu0 %1375
      %1377 = vrot.lane.b32.xlu0 %v509, 28
      %v1378 = vpop.permute.xlu0 %1377
      %1379 = vrot.lane.b32.xlu0 %v510, 28
      %v1380 = vpop.permute.xlu0 %1379
      %1381 = vrot.lane.b32.xlu0 %v511, 28
      %v1382 = vpop.permute.xlu0 %1381
      %1383 = vrot.lane.b32.xlu0 %v512, 28
      %v1384 = vpop.permute.xlu0 %1383
      %1385 = vrot.lane.b32.xlu0 %v513, 28
      %v1386 = vpop.permute.xlu0 %1385
      %1387 = vrot.lane.b32.xlu0 %v514, 28
      %v1388 = vpop.permute.xlu0 %1387
      %1389 = vrot.lane.b32.xlu0 %v515, 28
      %v1390 = vpop.permute.xlu0 %1389
      %1391 = vrot.lane.b32.xlu0 %v516, 28
      %v1392 = vpop.permute.xlu0 %1391
      %1393 = vrot.lane.b32.xlu0 %v517, 28
      %v1394 = vpop.permute.xlu0 %1393
      %1395 = vrot.lane.b32.xlu0 %v518, 28
      %v1396 = vpop.permute.xlu0 %1395
      %1397 = vrot.lane.b32.xlu0 %v519, 28
      %v1398 = vpop.permute.xlu0 %1397
      %1399 = vrot.lane.b32.xlu0 %v520, 28
      %v1400 = vpop.permute.xlu0 %1399
      %1401 = vrot.lane.b32.xlu0 %v521, 28
      %v1402 = vpop.permute.xlu0 %1401
      %1403 = vrot.lane.b32.xlu0 %v522, 28
      %v1404 = vpop.permute.xlu0 %1403
      %1405 = vrot.lane.b32.xlu0 %v523, 28
      %v1406 = vpop.permute.xlu0 %1405
      %1407 = vrot.lane.b32.xlu0 %v524, 28
      %v1408 = vpop.permute.xlu0 %1407
      %1409 = vrot.lane.b32.xlu0 %v525, 28
      %v1410 = vpop.permute.xlu0 %1409
      %1411 = vrot.lane.b32.xlu0 %v526, 28
      %v1412 = vpop.permute.xlu0 %1411
      %1413 = vrot.lane.b32.xlu0 %v527, 28
      %v1414 = vpop.permute.xlu0 %1413
      %1415 = vrot.lane.b32.xlu0 %v528, 28
      %v1416 = vpop.permute.xlu0 %1415
      %1417 = vrot.lane.b32.xlu0 %v529, 28
      %v1418 = vpop.permute.xlu0 %1417
      %1419 = vrot.lane.b32.xlu0 %v530, 28
      %v1420 = vpop.permute.xlu0 %1419
      %1421 = vrot.lane.b32.xlu0 %v531, 28
      %v1422 = vpop.permute.xlu0 %1421
      %1423 = vrot.lane.b32.xlu0 %v532, 28
      %v1424 = vpop.permute.xlu0 %1423
      %1425 = vrot.lane.b32.xlu0 %v533, 28
      %v1426 = vpop.permute.xlu0 %1425
      %1427 = vrot.lane.b32.xlu0 %v534, 28
      %v1428 = vpop.permute.xlu0 %1427
      %1429 = vrot.lane.b32.xlu0 %v535, 28
      %v1430 = vpop.permute.xlu0 %1429
      %1431 = vrot.lane.b32.xlu0 %v536, 28
      %v1432 = vpop.permute.xlu0 %1431
      %1497 = vrot.lane.b32.xlu0 %v537, 32
      %v1498 = vpop.permute.xlu0 %1497
      %1499 = vrot.lane.b32.xlu0 %v538, 32
      %v1500 = vpop.permute.xlu0 %1499
      %1501 = vrot.lane.b32.xlu0 %v539, 32
      %v1502 = vpop.permute.xlu0 %1501
      %1503 = vrot.lane.b32.xlu0 %v540, 32
      %v1504 = vpop.permute.xlu0 %1503
      %1505 = vrot.lane.b32.xlu0 %v541, 32
      %v1506 = vpop.permute.xlu0 %1505
      %1507 = vrot.lane.b32.xlu0 %v542, 32
      %v1508 = vpop.permute.xlu0 %1507
      %1509 = vrot.lane.b32.xlu0 %v543, 32
      %v1510 = vpop.permute.xlu0 %1509
      %1511 = vrot.lane.b32.xlu0 %v544, 32
      %v1512 = vpop.permute.xlu0 %1511
      %1513 = vrot.lane.b32.xlu0 %v545, 32
      %v1514 = vpop.permute.xlu0 %1513
      %1515 = vrot.lane.b32.xlu0 %v546, 32
      %v1516 = vpop.permute.xlu0 %1515
      %1517 = vrot.lane.b32.xlu0 %v547, 32
      %v1518 = vpop.permute.xlu0 %1517
      %1519 = vrot.lane.b32.xlu0 %v548, 32
      %v1520 = vpop.permute.xlu0 %1519
      %1521 = vrot.lane.b32.xlu0 %v549, 32
      %v1522 = vpop.permute.xlu0 %1521
      %1523 = vrot.lane.b32.xlu0 %v550, 32
      %v1524 = vpop.permute.xlu0 %1523
      %1525 = vrot.lane.b32.xlu0 %v551, 32
      %v1526 = vpop.permute.xlu0 %1525
      %1527 = vrot.lane.b32.xlu0 %v552, 32
      %v1528 = vpop.permute.xlu0 %1527
      %1529 = vrot.lane.b32.xlu0 %v553, 32
      %v1530 = vpop.permute.xlu0 %1529
      %1531 = vrot.lane.b32.xlu0 %v554, 32
      %v1532 = vpop.permute.xlu0 %1531
      %1533 = vrot.lane.b32.xlu0 %v555, 32
      %v1534 = vpop.permute.xlu0 %1533
      %1535 = vrot.lane.b32.xlu0 %v556, 32
      %v1536 = vpop.permute.xlu0 %1535
      %1537 = vrot.lane.b32.xlu0 %v557, 32
      %v1538 = vpop.permute.xlu0 %1537
      %1539 = vrot.lane.b32.xlu0 %v558, 32
      %v1540 = vpop.permute.xlu0 %1539
      %1541 = vrot.lane.b32.xlu0 %v559, 32
      %v1542 = vpop.permute.xlu0 %1541
      %1543 = vrot.lane.b32.xlu0 %v560, 32
      %v1544 = vpop.permute.xlu0 %1543
      %1545 = vrot.lane.b32.xlu0 %v561, 32
      %v1546 = vpop.permute.xlu0 %1545
      %1547 = vrot.lane.b32.xlu0 %v562, 32
      %v1548 = vpop.permute.xlu0 %1547
      %1549 = vrot.lane.b32.xlu0 %v563, 32
      %v1550 = vpop.permute.xlu0 %1549
      %1551 = vrot.lane.b32.xlu0 %v564, 32
      %v1552 = vpop.permute.xlu0 %1551
      %1553 = vrot.lane.b32.xlu0 %v565, 32
      %v1554 = vpop.permute.xlu0 %1553
      %1555 = vrot.lane.b32.xlu0 %v566, 32
      %v1556 = vpop.permute.xlu0 %1555
      %1557 = vrot.lane.b32.xlu0 %v567, 32
      %v1558 = vpop.permute.xlu0 %1557
      %1559 = vrot.lane.b32.xlu0 %v568, 32
      %v1560 = vpop.permute.xlu0 %1559
      %vm1593 = vcmask 31744
      %v1594 = vsel %vm1593, %v279, %v602
      %v1595 = vsel %vm1593, %v280, %v604
      %v1596 = vsel %vm1593, %v281, %v606
      %v1597 = vsel %vm1593, %v282, %v608
      %v1598 = vsel %vm1593, %v283, %v610
      %v1599 = vsel %vm1593, %v284, %v612
      %v1600 = vsel %vm1593, %v285, %v614
      %v1601 = vsel %vm1593, %v286, %v616
      %v1602 = vsel %vm1593, %v287, %v618
      %v1603 = vsel %vm1593, %v288, %v620
      %v1604 = vsel %vm1593, %v289, %v622
      %v1605 = vsel %vm1593, %v290, %v624
      %v1606 = vsel %vm1593, %v291, %v626
      %v1607 = vsel %vm1593, %v292, %v628
      %v1608 = vsel %vm1593, %v293, %v630
      %v1609 = vsel %vm1593, %v294, %v632
      %v1610 = vsel %vm1593, %v295, %v634
      %v1611 = vsel %vm1593, %v296, %v636
      %v1612 = vsel %vm1593, %v297, %v638
      %v1613 = vsel %vm1593, %v298, %v640
      %v1614 = vsel %vm1593, %v299, %v642
      %v1615 = vsel %vm1593, %v300, %v644
      %v1616 = vsel %vm1593, %v301, %v646
      %v1617 = vsel %vm1593, %v302, %v648
      %v1618 = vsel %vm1593, %v303, %v650
      %v1619 = vsel %vm1593, %v304, %v652
      %v1620 = vsel %vm1593, %v305, %v654
      %v1621 = vsel %vm1593, %v306, %v656
      %v1622 = vsel %vm1593, %v307, %v658
      %v1623 = vsel %vm1593, %v308, %v660
      %v1624 = vsel %vm1593, %v309, %v662
      %v1625 = vsel %vm1593, %v310, %v664
      %vm1626 = vcmask 64512
      %v1627 = vsel %vm1626, %v1594, %v730
      %v1628 = vsel %vm1626, %v1595, %v732
      %v1629 = vsel %vm1626, %v1596, %v734
      %v1630 = vsel %vm1626, %v1597, %v736
      %v1631 = vsel %vm1626, %v1598, %v738
      %v1632 = vsel %vm1626, %v1599, %v740
      %v1633 = vsel %vm1626, %v1600, %v742
      %v1634 = vsel %vm1626, %v1601, %v744
      %v1635 = vsel %vm1626, %v1602, %v746
      %v1636 = vsel %vm1626, %v1603, %v748
      %v1637 = vsel %vm1626, %v1604, %v750
      %v1638 = vsel %vm1626, %v1605, %v752
      %v1639 = vsel %vm1626, %v1606, %v754
      %v1640 = vsel %vm1626, %v1607, %v756
      %v1641 = vsel %vm1626, %v1608, %v758
      %v1642 = vsel %vm1626, %v1609, %v760
      %v1643 = vsel %vm1626, %v1610, %v762
      %v1644 = vsel %vm1626, %v1611, %v764
      %v1645 = vsel %vm1626, %v1612, %v766
      %v1646 = vsel %vm1626, %v1613, %v768
      %v1647 = vsel %vm1626, %v1614, %v770
      %v1648 = vsel %vm1626, %v1615, %v772
      %v1649 = vsel %vm1626, %v1616, %v774
      %v1650 = vsel %vm1626, %v1617, %v776
      %v1651 = vsel %vm1626, %v1618, %v778
      %v1652 = vsel %vm1626, %v1619, %v780
      %v1653 = vsel %vm1626, %v1620, %v782
      %v1654 = vsel %vm1626, %v1621, %v784
      %v1655 = vsel %vm1626, %v1622, %v786
      %v1656 = vsel %vm1626, %v1623, %v788
      %v1657 = vsel %vm1626, %v1624, %v790
      %v1658 = vsel %vm1626, %v1625, %v792
      %vm1659 = vcmask 97280
      %v1660 = vsel %vm1659, %v1627, %v858
      %v1661 = vsel %vm1659, %v1628, %v860
      %v1662 = vsel %vm1659, %v1629, %v862
      %v1663 = vsel %vm1659, %v1630, %v864
      %v1664 = vsel %vm1659, %v1631, %v866
      %v1665 = vsel %vm1659, %v1632, %v868
      %v1666 = vsel %vm1659, %v1633, %v870
      %v1667 = vsel %vm1659, %v1634, %v872
      %v1668 = vsel %vm1659, %v1635, %v874
      %v1669 = vsel %vm1659, %v1636, %v876
      %v1670 = vsel %vm1659, %v1637, %v878
      %v1671 = vsel %vm1659, %v1638, %v880
      %v1672 = vsel %vm1659, %v1639, %v882
      %v1673 = vsel %vm1659, %v1640, %v884
      %v1674 = vsel %vm1659, %v1641, %v886
      %v1675 = vsel %vm1659, %v1642, %v888
      %v1676 = vsel %vm1659, %v1643, %v890
      %v1677 = vsel %vm1659, %v1644, %v892
      %v1678 = vsel %vm1659, %v1645, %v894
      %v1679 = vsel %vm1659, %v1646, %v896
      %v1680 = vsel %vm1659, %v1647, %v898
      %v1681 = vsel %vm1659, %v1648, %v900
      %v1682 = vsel %vm1659, %v1649, %v902
      %v1683 = vsel %vm1659, %v1650, %v904
      %v1684 = vsel %vm1659, %v1651, %v906
      %v1685 = vsel %vm1659, %v1652, %v908
      %v1686 = vsel %vm1659, %v1653, %v910
      %v1687 = vsel %vm1659, %v1654, %v912
      %v1688 = vsel %vm1659, %v1655, %v914
      %v1689 = vsel %vm1659, %v1656, %v916
      %v1690 = vsel %vm1659, %v1657, %v918
      %v1691 = vsel %vm1659, %v1658, %v920
      %vm1692 = vcmask 130048
      %v1693 = vsel %vm1692, %v1660, %v986
      %v1694 = vsel %vm1692, %v1661, %v988
      %v1695 = vsel %vm1692, %v1662, %v990
      %v1696 = vsel %vm1692, %v1663, %v992
      %v1697 = vsel %vm1692, %v1664, %v994
      %v1698 = vsel %vm1692, %v1665, %v996
      %v1699 = vsel %vm1692, %v1666, %v998
      %v1700 = vsel %vm1692, %v1667, %v1000
      %v1701 = vsel %vm1692, %v1668, %v1002
      %v1702 = vsel %vm1692, %v1669, %v1004
      %v1703 = vsel %vm1692, %v1670, %v1006
      %v1704 = vsel %vm1692, %v1671, %v1008
      %v1705 = vsel %vm1692, %v1672, %v1010
      %v1706 = vsel %vm1692, %v1673, %v1012
      %v1707 = vsel %vm1692, %v1674, %v1014
      %v1708 = vsel %vm1692, %v1675, %v1016
      %v1709 = vsel %vm1692, %v1676, %v1018
      %v1710 = vsel %vm1692, %v1677, %v1020
      %v1711 = vsel %vm1692, %v1678, %v1022
      %v1712 = vsel %vm1692, %v1679, %v1024
      %v1713 = vsel %vm1692, %v1680, %v1026
      %v1714 = vsel %vm1692, %v1681, %v1028
      %v1715 = vsel %vm1692, %v1682, %v1030
      %v1716 = vsel %vm1692, %v1683, %v1032
      %v1717 = vsel %vm1692, %v1684, %v1034
      %v1718 = vsel %vm1692, %v1685, %v1036
      %v1719 = vsel %vm1692, %v1686, %v1038
      %v1720 = vsel %vm1692, %v1687, %v1040
      %v1721 = vsel %vm1692, %v1688, %v1042
      %v1722 = vsel %vm1692, %v1689, %v1044
      %v1723 = vsel %vm1692, %v1690, %v1046
      %v1724 = vsel %vm1692, %v1691, %v1048
      %vm1725 = vcmask 162816
      %v1726 = vsel %vm1725, %v1693, %v1114
      %v1727 = vsel %vm1725, %v1694, %v1116
      %v1728 = vsel %vm1725, %v1695, %v1118
      %v1729 = vsel %vm1725, %v1696, %v1120
      %v1730 = vsel %vm1725, %v1697, %v1122
      %v1731 = vsel %vm1725, %v1698, %v1124
      %v1732 = vsel %vm1725, %v1699, %v1126
      %v1733 = vsel %vm1725, %v1700, %v1128
      %v1734 = vsel %vm1725, %v1701, %v1130
      %v1735 = vsel %vm1725, %v1702, %v1132
      %v1736 = vsel %vm1725, %v1703, %v1134
      %v1737 = vsel %vm1725, %v1704, %v1136
      %v1738 = vsel %vm1725, %v1705, %v1138
      %v1739 = vsel %vm1725, %v1706, %v1140
      %v1740 = vsel %vm1725, %v1707, %v1142
      %v1741 = vsel %vm1725, %v1708, %v1144
      %v1742 = vsel %vm1725, %v1709, %v1146
      %v1743 = vsel %vm1725, %v1710, %v1148
      %v1744 = vsel %vm1725, %v1711, %v1150
      %v1745 = vsel %vm1725, %v1712, %v1152
      %v1746 = vsel %vm1725, %v1713, %v1154
      %v1747 = vsel %vm1725, %v1714, %v1156
      %v1748 = vsel %vm1725, %v1715, %v1158
      %v1749 = vsel %vm1725, %v1716, %v1160
      %v1750 = vsel %vm1725, %v1717, %v1162
      %v1751 = vsel %vm1725, %v1718, %v1164
      %v1752 = vsel %vm1725, %v1719, %v1166
      %v1753 = vsel %vm1725, %v1720, %v1168
      %v1754 = vsel %vm1725, %v1721, %v1170
      %v1755 = vsel %vm1725, %v1722, %v1172
      %v1756 = vsel %vm1725, %v1723, %v1174
      %v1757 = vsel %vm1725, %v1724, %v1176
      %vm1758 = vcmask 195584
      %v1759 = vsel %vm1758, %v1726, %v1242
      %v1760 = vsel %vm1758, %v1727, %v1244
      %v1761 = vsel %vm1758, %v1728, %v1246
      %v1762 = vsel %vm1758, %v1729, %v1248
      %v1763 = vsel %vm1758, %v1730, %v1250
      %v1764 = vsel %vm1758, %v1731, %v1252
      %v1765 = vsel %vm1758, %v1732, %v1254
      %v1766 = vsel %vm1758, %v1733, %v1256
      %v1767 = vsel %vm1758, %v1734, %v1258
      %v1768 = vsel %vm1758, %v1735, %v1260
      %v1769 = vsel %vm1758, %v1736, %v1262
      %v1770 = vsel %vm1758, %v1737, %v1264
      %v1771 = vsel %vm1758, %v1738, %v1266
      %v1772 = vsel %vm1758, %v1739, %v1268
      %v1773 = vsel %vm1758, %v1740, %v1270
      %v1774 = vsel %vm1758, %v1741, %v1272
      %v1775 = vsel %vm1758, %v1742, %v1274
      %v1776 = vsel %vm1758, %v1743, %v1276
      %v1777 = vsel %vm1758, %v1744, %v1278
      %v1778 = vsel %vm1758, %v1745, %v1280
      %v1779 = vsel %vm1758, %v1746, %v1282
      %v1780 = vsel %vm1758, %v1747, %v1284
      %v1781 = vsel %vm1758, %v1748, %v1286
      %v1782 = vsel %vm1758, %v1749, %v1288
      %v1783 = vsel %vm1758, %v1750, %v1290
      %v1784 = vsel %vm1758, %v1751, %v1292
      %v1785 = vsel %vm1758, %v1752, %v1294
      %v1786 = vsel %vm1758, %v1753, %v1296
      %v1787 = vsel %vm1758, %v1754, %v1298
      %v1788 = vsel %vm1758, %v1755, %v1300
      %v1789 = vsel %vm1758, %v1756, %v1302
      %v1790 = vsel %vm1758, %v1757, %v1304
      %vm1791 = vcmask 228352
      %v1792 = vsel %vm1791, %v1759, %v1370
      %v1793 = vsel %vm1791, %v1760, %v1372
      %v1794 = vsel %vm1791, %v1761, %v1374
      %v1795 = vsel %vm1791, %v1762, %v1376
      %v1796 = vsel %vm1791, %v1763, %v1378
      %v1797 = vsel %vm1791, %v1764, %v1380
      %v1798 = vsel %vm1791, %v1765, %v1382
      %v1799 = vsel %vm1791, %v1766, %v1384
      %v1800 = vsel %vm1791, %v1767, %v1386
      %v1801 = vsel %vm1791, %v1768, %v1388
      %v1802 = vsel %vm1791, %v1769, %v1390
      %v1803 = vsel %vm1791, %v1770, %v1392
      %v1804 = vsel %vm1791, %v1771, %v1394
      %v1805 = vsel %vm1791, %v1772, %v1396
      %v1806 = vsel %vm1791, %v1773, %v1398
      %v1807 = vsel %vm1791, %v1774, %v1400
      %v1808 = vsel %vm1791, %v1775, %v1402
      %v1809 = vsel %vm1791, %v1776, %v1404
      %v1810 = vsel %vm1791, %v1777, %v1406
      %v1811 = vsel %vm1791, %v1778, %v1408
      %v1812 = vsel %vm1791, %v1779, %v1410
      %v1813 = vsel %vm1791, %v1780, %v1412
      %v1814 = vsel %vm1791, %v1781, %v1414
      %v1815 = vsel %vm1791, %v1782, %v1416
      %v1816 = vsel %vm1791, %v1783, %v1418
      %v1817 = vsel %vm1791, %v1784, %v1420
      %v1818 = vsel %vm1791, %v1785, %v1422
      %v1819 = vsel %vm1791, %v1786, %v1424
      %v1820 = vsel %vm1791, %v1787, %v1426
      %v1821 = vsel %vm1791, %v1788, %v1428
      %v1822 = vsel %vm1791, %v1789, %v1430
      %v1823 = vsel %vm1791, %v1790, %v1432
      %vm1824 = vcmask 261120
      %v1825 = vsel %vm1824, %v1792, %v1498
      %v1826 = vsel %vm1824, %v1793, %v1500
      %v1827 = vsel %vm1824, %v1794, %v1502
      %v1828 = vsel %vm1824, %v1795, %v1504
      %v1829 = vsel %vm1824, %v1796, %v1506
      %v1830 = vsel %vm1824, %v1797, %v1508
      %v1831 = vsel %vm1824, %v1798, %v1510
      %v1832 = vsel %vm1824, %v1799, %v1512
      %v1833 = vsel %vm1824, %v1800, %v1514
      %v1834 = vsel %vm1824, %v1801, %v1516
      %v1835 = vsel %vm1824, %v1802, %v1518
      %v1836 = vsel %vm1824, %v1803, %v1520
      %v1837 = vsel %vm1824, %v1804, %v1522
      %v1838 = vsel %vm1824, %v1805, %v1524
      %v1839 = vsel %vm1824, %v1806, %v1526
      %v1840 = vsel %vm1824, %v1807, %v1528
      %v1841 = vsel %vm1824, %v1808, %v1530
      %v1842 = vsel %vm1824, %v1809, %v1532
      %v1843 = vsel %vm1824, %v1810, %v1534
      %v1844 = vsel %vm1824, %v1811, %v1536
      %v1845 = vsel %vm1824, %v1812, %v1538
      %v1846 = vsel %vm1824, %v1813, %v1540
      %v1847 = vsel %vm1824, %v1814, %v1542
      %v1848 = vsel %vm1824, %v1815, %v1544
      %v1849 = vsel %vm1824, %v1816, %v1546
      %v1850 = vsel %vm1824, %v1817, %v1548
      %v1851 = vsel %vm1824, %v1818, %v1550
      %v1852 = vsel %vm1824, %v1819, %v1552
      %v1853 = vsel %vm1824, %v1820, %v1554
      %v1854 = vsel %vm1824, %v1821, %v1556
      %v1855 = vsel %vm1824, %v1822, %v1558
      %v1856 = vsel %vm1824, %v1823, %v1560
      %v1857 = vld [vmem:[%s1] sm:$0xff]
      %v1858 = vld [vmem:[%s1 + $0x8] sm:$0xff]
      %v1859 = vld [vmem:[%s1 + $0x10] sm:$0xff]
      %v1860 = vld [vmem:[%s1 + $0x18] sm:$0xff]
      %v1861 = vld [vmem:[%s1 + $0x20] sm:$0xf]
      %vm1862 = vcmask 293888
      %v1864 = vsel %vm1862, %v1825, 0
      %v1867 = vsel %vm1862, %v1826, 0
      %v1870 = vsel %vm1862, %v1827, 0
      %v1873 = vsel %vm1862, %v1828, 0
      %v1876 = vsel %vm1862, %v1829, 0
      %v1879 = vsel %vm1862, %v1830, 0
      %v1882 = vsel %vm1862, %v1831, 0
      %v1885 = vsel %vm1862, %v1832, 0
      %v1888 = vsel %vm1862, %v1833, 0
      %v1891 = vsel %vm1862, %v1834, 0
      %v1894 = vsel %vm1862, %v1835, 0
      %v1897 = vsel %vm1862, %v1836, 0
      %v1900 = vsel %vm1862, %v1837, 0
      %v1903 = vsel %vm1862, %v1838, 0
      %v1906 = vsel %vm1862, %v1839, 0
      %v1909 = vsel %vm1862, %v1840, 0
      %v1912 = vsel %vm1862, %v1841, 0
      %v1915 = vsel %vm1862, %v1842, 0
      %v1918 = vsel %vm1862, %v1843, 0
      %v1921 = vsel %vm1862, %v1844, 0
      %v1924 = vsel %vm1862, %v1845, 0
      %v1927 = vsel %vm1862, %v1846, 0
      %v1930 = vsel %vm1862, %v1847, 0
      %v1933 = vsel %vm1862, %v1848, 0
      %v1936 = vsel %vm1862, %v1849, 0
      %v1939 = vsel %vm1862, %v1850, 0
      %v1942 = vsel %vm1862, %v1851, 0
      %v1945 = vsel %vm1862, %v1852, 0
      %v1948 = vsel %vm1862, %v1853, 0
      %v1951 = vsel %vm1862, %v1854, 0
      %v1954 = vsel %vm1862, %v1855, 0
      %v1957 = vsel %vm1862, %v1856, 0
      %vm1959 = vcmask 1043456
      %v1961 = vsel %vm1959, %v1861, 0
      %1963 = vmatprep.subr.mxu0 0.0
      %1964 = vmatpush1.msra.mxu0 0.0
      %1965 = vmatprep.subr.mxu0 0.0
      %1966 = vmatpush1.msra.mxu0 0.0
      %1967 = vmatprep.subr.mxu0 0.0
      %1968 = vmatpush1.msra.mxu0 0.0
      %1969 = vmatprep.subr.mxu0 0.0
      %1970 = vmatpush1.msra.mxu0 0.0
      %1971 = vmatprep.subr.mxu0 0.0
      %1972 = vmatpush1.msra.mxu0 0.0
      %1973 = vmatprep.subr.mxu0 0.0
      %1974 = vmatpush1.msra.mxu0 0.0
      %1975 = vmatprep.subr.mxu0 0.0
      %1976 = vmatpush1.msra.mxu0 0.0
      %1977 = vmatprep.subr.mxu0 0.0
      %1978 = vmatpush1.msra.mxu0 0.0
      %1979 = vmatprep.subr.mxu0 0.0
      %1980 = vmatpush1.msra.mxu0 0.0
      %1981 = vmatprep.subr.mxu0 0.0
      %1982 = vmatpush1.msra.mxu0 0.0
      %1983 = vmatprep.subr.mxu0 0.0
      %1984 = vmatpush1.msra.mxu0 0.0
      %1985 = vmatprep.subr.mxu0 0.0
      %1986 = vmatpush1.msra.mxu0 %v1961
      %1987 = vmatprep.subr.mxu0 0.0
      %1988 = vmatpush1.msra.mxu0 %v1860
      %1989 = vmatprep.subr.mxu0 0.0
      %1990 = vmatpush1.msra.mxu0 %v1859
      %1991 = vmatprep.subr.mxu0 0.0
      %1992 = vmatpush1.msra.mxu0 %v1858
      %1993 = vmatprep.subr.mxu0 0.0
      %1994 = vmatpush1.msra.mxu0 %v1857
      %1995 = vmatprep.subr.mxu0 0.0
      %1996 = vmatpush2.msra.mxu0 0.0
      %1997 = vmatprep.subr.mxu0 0.0
      %1998 = vmatpush2.msra.mxu0 0.0
      %1999 = vmatprep.subr.mxu0 0.0
      %2000 = vmatpush2.msra.mxu0 0.0
      %2001 = vmatprep.subr.mxu0 0.0
      %2002 = vmatpush2.msra.mxu0 0.0
      %2003 = vmatprep.subr.mxu0 0.0
      %2004 = vmatpush2.msra.mxu0 0.0
      %2005 = vmatprep.subr.mxu0 0.0
      %2006 = vmatpush2.msra.mxu0 0.0
      %2007 = vmatprep.subr.mxu0 0.0
      %2008 = vmatpush2.msra.mxu0 0.0
      %2009 = vmatprep.subr.mxu0 0.0
      %2010 = vmatpush2.msra.mxu0 0.0
      %2011 = vmatprep.subr.mxu0 0.0
      %2012 = vmatpush2.msra.mxu0 0.0
      %2013 = vmatprep.subr.mxu0 0.0
      %2014 = vmatpush2.msra.mxu0 0.0
      %2015 = vmatprep.subr.mxu0 0.0
      %2016 = vmatpush2.msra.mxu0 0.0
      %2017 = vmatprep.subr.mxu0 0.0
      %2018 = vmatpush2.msra.mxu0 0.0
      %2019 = vmatprep.subr.mxu0 0.0
      %2020 = vmatpush2.msra.mxu0 0.0
      %2021 = vmatprep.subr.mxu0 0.0
      %2022 = vmatpush2.msra.mxu0 0.0
      %2023 = vmatprep.subr.mxu0 0.0
      %2024 = vmatpush2.msra.mxu0 0.0
      %2025 = vmatprep.subr.mxu0 0.0
      %2026 = vmatpush2.msra.mxu0 0.0
      %2027 = vmatprep.mubr.f32.mxu0 0.0
      %2028 = vmatmul.mubr.f32.gmra.mxu0 %v1864
      %v2029 = vpop.f32.mrf.mxu0
      %v2030 = vadd.f32 0.0, %v2029
      %v2031 = vpop.f32.mrf.mxu0
      %2032 = vmatprep.mubr.f32.mxu0 0.0
      %2033 = vmatmul.mubr.f32.gmra.mxu0 %v1867
      %v2034 = vpop.f32.mrf.mxu0
      %v2035 = vadd.f32 0.0, %v2034
      %v2036 = vpop.f32.mrf.mxu0
      %2037 = vmatprep.mubr.f32.mxu0 0.0
      %2038 = vmatmul.mubr.f32.gmra.mxu0 %v1870
      %v2039 = vpop.f32.mrf.mxu0
      %v2040 = vadd.f32 0.0, %v2039
      %v2041 = vpop.f32.mrf.mxu0
      %2042 = vmatprep.mubr.f32.mxu0 0.0
      %2043 = vmatmul.mubr.f32.gmra.mxu0 %v1873
      %v2044 = vpop.f32.mrf.mxu0
      %v2045 = vadd.f32 0.0, %v2044
      %v2046 = vpop.f32.mrf.mxu0
      %2047 = vmatprep.mubr.f32.mxu0 0.0
      %2048 = vmatmul.mubr.f32.gmra.mxu0 %v1876
      %v2049 = vpop.f32.mrf.mxu0
      %v2050 = vadd.f32 0.0, %v2049
      %v2051 = vpop.f32.mrf.mxu0
      %2052 = vmatprep.mubr.f32.mxu0 0.0
      %2053 = vmatmul.mubr.f32.gmra.mxu0 %v1879
      %v2054 = vpop.f32.mrf.mxu0
      %v2055 = vadd.f32 0.0, %v2054
      %v2056 = vpop.f32.mrf.mxu0
      %2057 = vmatprep.mubr.f32.mxu0 0.0
      %2058 = vmatmul.mubr.f32.gmra.mxu0 %v1882
      %v2059 = vpop.f32.mrf.mxu0
      %v2060 = vadd.f32 0.0, %v2059
      %v2061 = vpop.f32.mrf.mxu0
      %2062 = vmatprep.mubr.f32.mxu0 0.0
      %2063 = vmatmul.mubr.f32.gmra.mxu0 %v1885
      %v2064 = vpop.f32.mrf.mxu0
      %v2065 = vadd.f32 0.0, %v2064
      %v2066 = vpop.f32.mrf.mxu0
      %2067 = vmatprep.mubr.f32.mxu0 0.0
      %2068 = vmatmul.mubr.f32.gmra.mxu0 %v1888
      %v2069 = vpop.f32.mrf.mxu0
      %v2070 = vadd.f32 0.0, %v2069
      %v2071 = vpop.f32.mrf.mxu0
      %2072 = vmatprep.mubr.f32.mxu0 0.0
      %2073 = vmatmul.mubr.f32.gmra.mxu0 %v1891
      %v2074 = vpop.f32.mrf.mxu0
      %v2075 = vadd.f32 0.0, %v2074
      %v2076 = vpop.f32.mrf.mxu0
      %2077 = vmatprep.mubr.f32.mxu0 0.0
      %2078 = vmatmul.mubr.f32.gmra.mxu0 %v1894
      %v2079 = vpop.f32.mrf.mxu0
      %v2080 = vadd.f32 0.0, %v2079
      %v2081 = vpop.f32.mrf.mxu0
      %2082 = vmatprep.mubr.f32.mxu0 0.0
      %2083 = vmatmul.mubr.f32.gmra.mxu0 %v1897
      %v2084 = vpop.f32.mrf.mxu0
      %v2085 = vadd.f32 0.0, %v2084
      %v2086 = vpop.f32.mrf.mxu0
      %2087 = vmatprep.mubr.f32.mxu0 0.0
      %2088 = vmatmul.mubr.f32.gmra.mxu0 %v1900
      %v2089 = vpop.f32.mrf.mxu0
      %v2090 = vadd.f32 0.0, %v2089
      %v2091 = vpop.f32.mrf.mxu0
      %2092 = vmatprep.mubr.f32.mxu0 0.0
      %2093 = vmatmul.mubr.f32.gmra.mxu0 %v1903
      %v2094 = vpop.f32.mrf.mxu0
      %v2095 = vadd.f32 0.0, %v2094
      %v2096 = vpop.f32.mrf.mxu0
      %2097 = vmatprep.mubr.f32.mxu0 0.0
      %2098 = vmatmul.mubr.f32.gmra.mxu0 %v1906
      %v2099 = vpop.f32.mrf.mxu0
      %v2100 = vadd.f32 0.0, %v2099
      %v2101 = vpop.f32.mrf.mxu0
      %2102 = vmatprep.mubr.f32.mxu0 0.0
      %2103 = vmatmul.mubr.f32.gmra.mxu0 %v1909
      %v2104 = vpop.f32.mrf.mxu0
      %v2105 = vadd.f32 0.0, %v2104
      %v2106 = vpop.f32.mrf.mxu0
      %2107 = vmatprep.mubr.f32.mxu0 0.0
      %2108 = vmatmul.mubr.f32.gmra.mxu0 %v1912
      %v2109 = vpop.f32.mrf.mxu0
      %v2110 = vadd.f32 0.0, %v2109
      %v2111 = vpop.f32.mrf.mxu0
      %2112 = vmatprep.mubr.f32.mxu0 0.0
      %2113 = vmatmul.mubr.f32.gmra.mxu0 %v1915
      %v2114 = vpop.f32.mrf.mxu0
      %v2115 = vadd.f32 0.0, %v2114
      %v2116 = vpop.f32.mrf.mxu0
      %2117 = vmatprep.mubr.f32.mxu0 0.0
      %2118 = vmatmul.mubr.f32.gmra.mxu0 %v1918
      %v2119 = vpop.f32.mrf.mxu0
      %v2120 = vadd.f32 0.0, %v2119
      %v2121 = vpop.f32.mrf.mxu0
      %2122 = vmatprep.mubr.f32.mxu0 0.0
      %2123 = vmatmul.mubr.f32.gmra.mxu0 %v1921
      %v2124 = vpop.f32.mrf.mxu0
      %v2125 = vadd.f32 0.0, %v2124
      %v2126 = vpop.f32.mrf.mxu0
      %2127 = vmatprep.mubr.f32.mxu0 0.0
      %2128 = vmatmul.mubr.f32.gmra.mxu0 %v1924
      %v2129 = vpop.f32.mrf.mxu0
      %v2130 = vadd.f32 0.0, %v2129
      %v2131 = vpop.f32.mrf.mxu0
      %2132 = vmatprep.mubr.f32.mxu0 0.0
      %2133 = vmatmul.mubr.f32.gmra.mxu0 %v1927
      %v2134 = vpop.f32.mrf.mxu0
      %v2135 = vadd.f32 0.0, %v2134
      %v2136 = vpop.f32.mrf.mxu0
      %2137 = vmatprep.mubr.f32.mxu0 0.0
      %2138 = vmatmul.mubr.f32.gmra.mxu0 %v1930
      %v2139 = vpop.f32.mrf.mxu0
      %v2140 = vadd.f32 0.0, %v2139
      %v2141 = vpop.f32.mrf.mxu0
      %2142 = vmatprep.mubr.f32.mxu0 0.0
      %2143 = vmatmul.mubr.f32.gmra.mxu0 %v1933
      %v2144 = vpop.f32.mrf.mxu0
      %v2145 = vadd.f32 0.0, %v2144
      %v2146 = vpop.f32.mrf.mxu0
      %2147 = vmatprep.mubr.f32.mxu0 0.0
      %2148 = vmatmul.mubr.f32.gmra.mxu0 %v1936
      %v2149 = vpop.f32.mrf.mxu0
      %v2150 = vadd.f32 0.0, %v2149
      %v2151 = vpop.f32.mrf.mxu0
      %2152 = vmatprep.mubr.f32.mxu0 0.0
      %2153 = vmatmul.mubr.f32.gmra.mxu0 %v1939
      %v2154 = vpop.f32.mrf.mxu0
      %v2155 = vadd.f32 0.0, %v2154
      %v2156 = vpop.f32.mrf.mxu0
      %2157 = vmatprep.mubr.f32.mxu0 0.0
      %2158 = vmatmul.mubr.f32.gmra.mxu0 %v1942
      %v2159 = vpop.f32.mrf.mxu0
      %v2160 = vadd.f32 0.0, %v2159
      %v2161 = vpop.f32.mrf.mxu0
      %2162 = vmatprep.mubr.f32.mxu0 0.0
      %2163 = vmatmul.mubr.f32.gmra.mxu0 %v1945
      %v2164 = vpop.f32.mrf.mxu0
      %v2165 = vadd.f32 0.0, %v2164
      %v2166 = vpop.f32.mrf.mxu0
      %2167 = vmatprep.mubr.f32.mxu0 0.0
      %2168 = vmatmul.mubr.f32.gmra.mxu0 %v1948
      %v2169 = vpop.f32.mrf.mxu0
      %v2170 = vadd.f32 0.0, %v2169
      %v2171 = vpop.f32.mrf.mxu0
      %2172 = vmatprep.mubr.f32.mxu0 0.0
      %2173 = vmatmul.mubr.f32.gmra.mxu0 %v1951
      %v2174 = vpop.f32.mrf.mxu0
      %v2175 = vadd.f32 0.0, %v2174
      %v2176 = vpop.f32.mrf.mxu0
      %2177 = vmatprep.mubr.f32.mxu0 0.0
      %2178 = vmatmul.mubr.f32.gmra.mxu0 %v1954
      %v2179 = vpop.f32.mrf.mxu0
      %v2180 = vadd.f32 0.0, %v2179
      %v2181 = vpop.f32.mrf.mxu0
      %2182 = vmatprep.mubr.f32.mxu0 0.0
      %2183 = vmatmul.mubr.f32.gmra.mxu0 %v1957
      %v2184 = vpop.f32.mrf.mxu0
      %v2185 = vadd.f32 0.0, %v2184
      %v2186 = vpop.f32.mrf.mxu0
      %2187 = vdwg.mxu0
      %v2188 = vld [vmem:[%s2] sm:$0x1]
      %v2190 = vlaneseq
      %v2191 = vshrl.u32 %v2190, 7
      %v2192 = vsub.s32 0, %v2191
      %v2193 = vrot.slane %v2188, %v2192
      %v2195 = vmul.f32 %v2030, %v2193
      %v2196 = vmul.f32 %v2035, %v2193
      %v2197 = vmul.f32 %v2040, %v2193
      %v2198 = vmul.f32 %v2045, %v2193
      %v2199 = vmul.f32 %v2050, %v2193
      %v2200 = vmul.f32 %v2055, %v2193
      %v2201 = vmul.f32 %v2060, %v2193
      %v2202 = vmul.f32 %v2065, %v2193
      %v2203 = vmul.f32 %v2070, %v2193
      %v2204 = vmul.f32 %v2075, %v2193
      %v2205 = vmul.f32 %v2080, %v2193
      %v2206 = vmul.f32 %v2085, %v2193
      %v2207 = vmul.f32 %v2090, %v2193
      %v2208 = vmul.f32 %v2095, %v2193
      %v2209 = vmul.f32 %v2100, %v2193
      %v2210 = vmul.f32 %v2105, %v2193
      %v2211 = vmul.f32 %v2110, %v2193
      %v2212 = vmul.f32 %v2115, %v2193
      %v2213 = vmul.f32 %v2120, %v2193
      %v2214 = vmul.f32 %v2125, %v2193
      %v2215 = vmul.f32 %v2130, %v2193
      %v2216 = vmul.f32 %v2135, %v2193
      %v2217 = vmul.f32 %v2140, %v2193
      %v2218 = vmul.f32 %v2145, %v2193
      %v2219 = vmul.f32 %v2150, %v2193
      %v2220 = vmul.f32 %v2155, %v2193
      %v2221 = vmul.f32 %v2160, %v2193
      %v2222 = vmul.f32 %v2165, %v2193
      %v2223 = vmul.f32 %v2170, %v2193
      %v2224 = vmul.f32 %v2175, %v2193
      %v2225 = vmul.f32 %v2180, %v2193
      %v2226 = vmul.f32 %v2185, %v2193
      %v2227 = vld [vmem:[%s3] sm:$0x1]
      %v2229 = vlaneseq
      %v2230 = vshrl.u32 %v2229, 7
      %v2231 = vsub.s32 0, %v2230
      %v2232 = vrot.slane %v2227, %v2231
      %v2234 = vadd.f32 %v2195, %v2232
      %v2235 = vadd.f32 %v2196, %v2232
      %v2236 = vadd.f32 %v2197, %v2232
      %v2237 = vadd.f32 %v2198, %v2232
      %v2238 = vadd.f32 %v2199, %v2232
      %v2239 = vadd.f32 %v2200, %v2232
      %v2240 = vadd.f32 %v2201, %v2232
      %v2241 = vadd.f32 %v2202, %v2232
      %v2242 = vadd.f32 %v2203, %v2232
      %v2243 = vadd.f32 %v2204, %v2232
      %v2244 = vadd.f32 %v2205, %v2232
      %v2245 = vadd.f32 %v2206, %v2232
      %v2246 = vadd.f32 %v2207, %v2232
      %v2247 = vadd.f32 %v2208, %v2232
      %v2248 = vadd.f32 %v2209, %v2232
      %v2249 = vadd.f32 %v2210, %v2232
      %v2250 = vadd.f32 %v2211, %v2232
      %v2251 = vadd.f32 %v2212, %v2232
      %v2252 = vadd.f32 %v2213, %v2232
      %v2253 = vadd.f32 %v2214, %v2232
      %v2254 = vadd.f32 %v2215, %v2232
      %v2255 = vadd.f32 %v2216, %v2232
      %v2256 = vadd.f32 %v2217, %v2232
      %v2257 = vadd.f32 %v2218, %v2232
      %v2258 = vadd.f32 %v2219, %v2232
      %v2259 = vadd.f32 %v2220, %v2232
      %v2260 = vadd.f32 %v2221, %v2232
      %v2261 = vadd.f32 %v2222, %v2232
      %v2262 = vadd.f32 %v2223, %v2232
      %v2263 = vadd.f32 %v2224, %v2232
      %v2264 = vadd.f32 %v2225, %v2232
      %v2265 = vadd.f32 %v2226, %v2232
      %v2266 = vmax.f32 %v2234, 0.0
      %v2267 = vmax.f32 %v2235, 0.0
      %v2268 = vmax.f32 %v2236, 0.0
      %v2269 = vmax.f32 %v2237, 0.0
      %v2270 = vmax.f32 %v2238, 0.0
      %v2271 = vmax.f32 %v2239, 0.0
      %v2272 = vmax.f32 %v2240, 0.0
      %v2273 = vmax.f32 %v2241, 0.0
      %v2274 = vmax.f32 %v2242, 0.0
      %v2275 = vmax.f32 %v2243, 0.0
      %v2276 = vmax.f32 %v2244, 0.0
      %v2277 = vmax.f32 %v2245, 0.0
      %v2278 = vmax.f32 %v2246, 0.0
      %v2279 = vmax.f32 %v2247, 0.0
      %v2280 = vmax.f32 %v2248, 0.0
      %v2281 = vmax.f32 %v2249, 0.0
      %v2282 = vmax.f32 %v2250, 0.0
      %v2283 = vmax.f32 %v2251, 0.0
      %v2284 = vmax.f32 %v2252, 0.0
      %v2285 = vmax.f32 %v2253, 0.0
      %v2286 = vmax.f32 %v2254, 0.0
      %v2287 = vmax.f32 %v2255, 0.0
      %v2288 = vmax.f32 %v2256, 0.0
      %v2289 = vmax.f32 %v2257, 0.0
      %v2290 = vmax.f32 %v2258, 0.0
      %v2291 = vmax.f32 %v2259, 0.0
      %v2292 = vmax.f32 %v2260, 0.0
      %v2293 = vmax.f32 %v2261, 0.0
      %v2294 = vmax.f32 %v2262, 0.0
      %v2295 = vmax.f32 %v2263, 0.0
      %v2296 = vmax.f32 %v2264, 0.0
      %v2297 = vmax.f32 %v2265, 0.0
      %2298 = vst.msk [vmem:[#allocation2] sm:$0xff] %vm1626, 0.0
      %2299 = vst.msk [vmem:[#allocation2 + $0x8] sm:$0xff] %vm1626, 0.0
      %vm2300 = vcmask 58368
      %2301 = vst.msk [vmem:[#allocation2 + $0x10] sm:$0x3] %vm2300, 0.0
      %s2302 = scalar_lea.vmem [#allocation2], 408
      %2303 = vst.msk [vmem:[%s2302] sm:$0xff] %vm1626, 0.0
      %2304 = vst.msk [vmem:[%s2302 + $0x8] sm:$0xff] %vm1626, 0.0
      %2305 = vst.msk [vmem:[%s2302 + $0x10] sm:$0x3] %vm2300, 0.0
      %vm2306 = vcmask 57344
      %2307 = vst.msk [vmem:[#allocation2] sm:$0x1] %vm2306, 0.0
      %2308 = vst.msk [vmem:[#allocation2 + $0x18] sm:$0x1] %vm2306, 0.0
      %2309 = vst.msk [vmem:[#allocation2 + $0x30] sm:$0x1] %vm2306, 0.0
      %2310 = vst.msk [vmem:[#allocation2 + $0x48] sm:$0x1] %vm2306, 0.0
      %2311 = vst.msk [vmem:[#allocation2 + $0x60] sm:$0x1] %vm2306, 0.0
      %2312 = vst.msk [vmem:[#allocation2 + $0x78] sm:$0x1] %vm2306, 0.0
      %2313 = vst.msk [vmem:[#allocation2 + $0x90] sm:$0x1] %vm2306, 0.0
      %2314 = vst.msk [vmem:[#allocation2 + $0xa8] sm:$0x1] %vm2306, 0.0
      %2315 = vst.msk [vmem:[#allocation2 + $0xc0] sm:$0x1] %vm2306, 0.0
      %2316 = vst.msk [vmem:[#allocation2 + $0xd8] sm:$0x1] %vm2306, 0.0
      %2317 = vst.msk [vmem:[#allocation2 + $0xf0] sm:$0x1] %vm2306, 0.0
      %2318 = vst.msk [vmem:[#allocation2 + $0x108] sm:$0x1] %vm2306, 0.0
      %2319 = vst.msk [vmem:[#allocation2 + $0x120] sm:$0x1] %vm2306, 0.0
      %2320 = vst.msk [vmem:[#allocation2 + $0x138] sm:$0x1] %vm2306, 0.0
      %2321 = vst.msk [vmem:[#allocation2 + $0x150] sm:$0x1] %vm2306, 0.0
      %2322 = vst.msk [vmem:[#allocation2 + $0x168] sm:$0x1] %vm2306, 0.0
      %2323 = vst.msk [vmem:[#allocation2 + $0x180] sm:$0x1] %vm2306, 0.0
      %2324 = vst.msk [vmem:[#allocation2 + $0x198] sm:$0x1] %vm2306, 0.0
      %2325 = vst.msk [vmem:[#allocation2 + $0x11] sm:$0x1] %vm2306, 0.0
      %2326 = vst.msk [vmem:[#allocation2 + $0x29] sm:$0x1] %vm2306, 0.0
      %2327 = vst.msk [vmem:[#allocation2 + $0x41] sm:$0x1] %vm2306, 0.0
      %2328 = vst.msk [vmem:[#allocation2 + $0x59] sm:$0x1] %vm2306, 0.0
      %2329 = vst.msk [vmem:[#allocation2 + $0x71] sm:$0x1] %vm2306, 0.0
      %2330 = vst.msk [vmem:[#allocation2 + $0x89] sm:$0x1] %vm2306, 0.0
      %2331 = vst.msk [vmem:[#allocation2 + $0xa1] sm:$0x1] %vm2306, 0.0
      %2332 = vst.msk [vmem:[#allocation2 + $0xb9] sm:$0x1] %vm2306, 0.0
      %2333 = vst.msk [vmem:[#allocation2 + $0xd1] sm:$0x1] %vm2306, 0.0
      %2334 = vst.msk [vmem:[#allocation2 + $0xe9] sm:$0x1] %vm2306, 0.0
      %2335 = vst.msk [vmem:[#allocation2 + $0x101] sm:$0x1] %vm2306, 0.0
      %2336 = vst.msk [vmem:[#allocation2 + $0x119] sm:$0x1] %vm2306, 0.0
      %2337 = vst.msk [vmem:[#allocation2 + $0x131] sm:$0x1] %vm2306, 0.0
      %2338 = vst.msk [vmem:[#allocation2 + $0x149] sm:$0x1] %vm2306, 0.0
      %2339 = vst.msk [vmem:[#allocation2 + $0x161] sm:$0x1] %vm2306, 0.0
      %2340 = vst.msk [vmem:[#allocation2 + $0x179] sm:$0x1] %vm2306, 0.0
      %2341 = vst.msk [vmem:[#allocation2 + $0x191] sm:$0x1] %vm2306, 0.0
      %2342 = vst.msk [vmem:[#allocation2 + $0x1a9] sm:$0x1] %vm2306, 0.0
      %s2343 = scalar_lea.vmem [#allocation2], 24
      %2344 = vst.msk [vmem:[%s2343 + $0x1] sm:$0xff] %vm1626, %v2266
      %2345 = vst.msk [vmem:[%s2343 + $0x9] sm:$0xff] %vm1626, %v2267
      %2346 = vst.msk [vmem:[%s2343 + $0x19] sm:$0xff] %vm1626, %v2268
      %2347 = vst.msk [vmem:[%s2343 + $0x21] sm:$0xff] %vm1626, %v2269
      %2348 = vst.msk [vmem:[%s2343 + $0x31] sm:$0xff] %vm1626, %v2270
      %2349 = vst.msk [vmem:[%s2343 + $0x39] sm:$0xff] %vm1626, %v2271
      %2350 = vst.msk [vmem:[%s2343 + $0x49] sm:$0xff] %vm1626, %v2272
      %2351 = vst.msk [vmem:[%s2343 + $0x51] sm:$0xff] %vm1626, %v2273
      %2352 = vst.msk [vmem:[%s2343 + $0x61] sm:$0xff] %vm1626, %v2274
      %2353 = vst.msk [vmem:[%s2343 + $0x69] sm:$0xff] %vm1626, %v2275
      %2354 = vst.msk [vmem:[%s2343 + $0x79] sm:$0xff] %vm1626, %v2276
      %2355 = vst.msk [vmem:[%s2343 + $0x81] sm:$0xff] %vm1626, %v2277
      %2356 = vst.msk [vmem:[%s2343 + $0x91] sm:$0xff] %vm1626, %v2278
      %2357 = vst.msk [vmem:[%s2343 + $0x99] sm:$0xff] %vm1626, %v2279
      %2358 = vst.msk [vmem:[%s2343 + $0xa9] sm:$0xff] %vm1626, %v2280
      %2359 = vst.msk [vmem:[%s2343 + $0xb1] sm:$0xff] %vm1626, %v2281
      %2360 = vst.msk [vmem:[%s2343 + $0xc1] sm:$0xff] %vm1626, %v2282
      %2361 = vst.msk [vmem:[%s2343 + $0xc9] sm:$0xff] %vm1626, %v2283
      %2362 = vst.msk [vmem:[%s2343 + $0xd9] sm:$0xff] %vm1626, %v2284
      %2363 = vst.msk [vmem:[%s2343 + $0xe1] sm:$0xff] %vm1626, %v2285
      %2364 = vst.msk [vmem:[%s2343 + $0xf1] sm:$0xff] %vm1626, %v2286
      %2365 = vst.msk [vmem:[%s2343 + $0xf9] sm:$0xff] %vm1626, %v2287
      %2366 = vst.msk [vmem:[%s2343 + $0x109] sm:$0xff] %vm1626, %v2288
      %2367 = vst.msk [vmem:[%s2343 + $0x111] sm:$0xff] %vm1626, %v2289
      %2368 = vst.msk [vmem:[%s2343 + $0x121] sm:$0xff] %vm1626, %v2290
      %2369 = vst.msk [vmem:[%s2343 + $0x129] sm:$0xff] %vm1626, %v2291
      %2370 = vst.msk [vmem:[%s2343 + $0x139] sm:$0xff] %vm1626, %v2292
      %2371 = vst.msk [vmem:[%s2343 + $0x141] sm:$0xff] %vm1626, %v2293
      %2372 = vst.msk [vmem:[%s2343 + $0x151] sm:$0xff] %vm1626, %v2294
      %2373 = vst.msk [vmem:[%s2343 + $0x159] sm:$0xff] %vm1626, %v2295
      %2374 = vst.msk [vmem:[%s2343 + $0x169] sm:$0xff] %vm1626, %v2296
      %2375 = vst.msk [vmem:[%s2343 + $0x171] sm:$0xff] %vm1626, %v2297
      %v2376 = vld [vmem:[#allocation2] sm:$0xff]
      %v2377 = vld [vmem:[#allocation2 + $0x8] sm:$0xff]
      %v2378 = vld [vmem:[#allocation2 + $0x18] sm:$0xff]
      %v2379 = vld [vmem:[#allocation2 + $0x20] sm:$0xff]
      %v2380 = vld [vmem:[#allocation2 + $0x30] sm:$0xff]
      %v2381 = vld [vmem:[#allocation2 + $0x38] sm:$0xff]
      %v2382 = vld [vmem:[#allocation2 + $0x48] sm:$0xff]
      %v2383 = vld [vmem:[#allocation2 + $0x50] sm:$0xff]
      %v2384 = vld [vmem:[#allocation2 + $0x60] sm:$0xff]
      %v2385 = vld [vmem:[#allocation2 + $0x68] sm:$0xff]
      %v2386 = vld [vmem:[#allocation2 + $0x78] sm:$0xff]
      %v2387 = vld [vmem:[#allocation2 + $0x80] sm:$0xff]
      %v2388 = vld [vmem:[#allocation2 + $0x90] sm:$0xff]
      %v2389 = vld [vmem:[#allocation2 + $0x98] sm:$0xff]
      %v2390 = vld [vmem:[#allocation2 + $0xa8] sm:$0xff]
      %v2391 = vld [vmem:[#allocation2 + $0xb0] sm:$0xff]
      %v2392 = vld [vmem:[#allocation2 + $0xc0] sm:$0xff]
      %v2393 = vld [vmem:[#allocation2 + $0xc8] sm:$0xff]
      %v2394 = vld [vmem:[#allocation2 + $0xd8] sm:$0xff]
      %v2395 = vld [vmem:[#allocation2 + $0xe0] sm:$0xff]
      %v2396 = vld [vmem:[#allocation2 + $0xf0] sm:$0xff]
      %v2397 = vld [vmem:[#allocation2 + $0xf8] sm:$0xff]
      %v2398 = vld [vmem:[#allocation2 + $0x108] sm:$0xff]
      %v2399 = vld [vmem:[#allocation2 + $0x110] sm:$0xff]
      %v2400 = vld [vmem:[#allocation2 + $0x120] sm:$0xff]
      %v2401 = vld [vmem:[#allocation2 + $0x128] sm:$0xff]
      %v2402 = vld [vmem:[#allocation2 + $0x138] sm:$0xff]
      %v2403 = vld [vmem:[#allocation2 + $0x140] sm:$0xff]
      %v2404 = vld [vmem:[#allocation2 + $0x150] sm:$0xff]
      %v2405 = vld [vmem:[#allocation2 + $0x158] sm:$0xff]
      %v2406 = vld [vmem:[#allocation2 + $0x168] sm:$0xff]
      %v2407 = vld [vmem:[#allocation2 + $0x170] sm:$0xff]
      %v2408 = vld [vmem:[#allocation2 + $0x1] sm:$0xff]
      %v2409 = vld [vmem:[#allocation2 + $0x9] sm:$0xff]
      %v2410 = vld [vmem:[#allocation2 + $0x19] sm:$0xff]
      %v2411 = vld [vmem:[#allocation2 + $0x21] sm:$0xff]
      %v2412 = vld [vmem:[#allocation2 + $0x31] sm:$0xff]
      %v2413 = vld [vmem:[#allocation2 + $0x39] sm:$0xff]
      %v2414 = vld [vmem:[#allocation2 + $0x49] sm:$0xff]
      %v2415 = vld [vmem:[#allocation2 + $0x51] sm:$0xff]
      %v2416 = vld [vmem:[#allocation2 + $0x61] sm:$0xff]
      %v2417 = vld [vmem:[#allocation2 + $0x69] sm:$0xff]
      %v2418 = vld [vmem:[#allocation2 + $0x79] sm:$0xff]
      %v2419 = vld [vmem:[#allocation2 + $0x81] sm:$0xff]
      %v2420 = vld [vmem:[#allocation2 + $0x91] sm:$0xff]
      %v2421 = vld [vmem:[#allocation2 + $0x99] sm:$0xff]
      %v2422 = vld [vmem:[#allocation2 + $0xa9] sm:$0xff]
      %v2423 = vld [vmem:[#allocation2 + $0xb1] sm:$0xff]
      %v2424 = vld [vmem:[#allocation2 + $0xc1] sm:$0xff]
      %v2425 = vld [vmem:[#allocation2 + $0xc9] sm:$0xff]
      %v2426 = vld [vmem:[#allocation2 + $0xd9] sm:$0xff]
      %v2427 = vld [vmem:[#allocation2 + $0xe1] sm:$0xff]
      %v2428 = vld [vmem:[#allocation2 + $0xf1] sm:$0xff]
      %v2429 = vld [vmem:[#allocation2 + $0xf9] sm:$0xff]
      %v2430 = vld [vmem:[#allocation2 + $0x109] sm:$0xff]
      %v2431 = vld [vmem:[#allocation2 + $0x111] sm:$0xff]
      %v2432 = vld [vmem:[#allocation2 + $0x121] sm:$0xff]
      %v2433 = vld [vmem:[#allocation2 + $0x129] sm:$0xff]
      %v2434 = vld [vmem:[#allocation2 + $0x139] sm:$0xff]
      %v2435 = vld [vmem:[#allocation2 + $0x141] sm:$0xff]
      %v2436 = vld [vmem:[#allocation2 + $0x151] sm:$0xff]
      %v2437 = vld [vmem:[#allocation2 + $0x159] sm:$0xff]
      %v2438 = vld [vmem:[#allocation2 + $0x169] sm:$0xff]
      %v2439 = vld [vmem:[#allocation2 + $0x171] sm:$0xff]
      %v2440 = vld [vmem:[#allocation2 + $0x2] sm:$0xff]
      %v2441 = vld [vmem:[#allocation2 + $0xa] sm:$0xff]
      %v2442 = vld [vmem:[#allocation2 + $0x1a] sm:$0xff]
      %v2443 = vld [vmem:[#allocation2 + $0x22] sm:$0xff]
      %v2444 = vld [vmem:[#allocation2 + $0x32] sm:$0xff]
      %v2445 = vld [vmem:[#allocation2 + $0x3a] sm:$0xff]
      %v2446 = vld [vmem:[#allocation2 + $0x4a] sm:$0xff]
      %v2447 = vld [vmem:[#allocation2 + $0x52] sm:$0xff]
      %v2448 = vld [vmem:[#allocation2 + $0x62] sm:$0xff]
      %v2449 = vld [vmem:[#allocation2 + $0x6a] sm:$0xff]
      %v2450 = vld [vmem:[#allocation2 + $0x7a] sm:$0xff]
      %v2451 = vld [vmem:[#allocation2 + $0x82] sm:$0xff]
      %v2452 = vld [vmem:[#allocation2 + $0x92] sm:$0xff]
      %v2453 = vld [vmem:[#allocation2 + $0x9a] sm:$0xff]
      %v2454 = vld [vmem:[#allocation2 + $0xaa] sm:$0xff]
      %v2455 = vld [vmem:[#allocation2 + $0xb2] sm:$0xff]
      %v2456 = vld [vmem:[#allocation2 + $0xc2] sm:$0xff]
      %v2457 = vld [vmem:[#allocation2 + $0xca] sm:$0xff]
      %v2458 = vld [vmem:[#allocation2 + $0xda] sm:$0xff]
      %v2459 = vld [vmem:[#allocation2 + $0xe2] sm:$0xff]
      %v2460 = vld [vmem:[#allocation2 + $0xf2] sm:$0xff]
      %v2461 = vld [vmem:[#allocation2 + $0xfa] sm:$0xff]
      %v2462 = vld [vmem:[#allocation2 + $0x10a] sm:$0xff]
      %v2463 = vld [vmem:[#allocation2 + $0x112] sm:$0xff]
      %v2464 = vld [vmem:[#allocation2 + $0x122] sm:$0xff]
      %v2465 = vld [vmem:[#allocation2 + $0x12a] sm:$0xff]
      %v2466 = vld [vmem:[#allocation2 + $0x13a] sm:$0xff]
      %v2467 = vld [vmem:[#allocation2 + $0x142] sm:$0xff]
      %v2468 = vld [vmem:[#allocation2 + $0x152] sm:$0xff]
      %v2469 = vld [vmem:[#allocation2 + $0x15a] sm:$0xff]
      %v2470 = vld [vmem:[#allocation2 + $0x16a] sm:$0xff]
      %v2471 = vld [vmem:[#allocation2 + $0x172] sm:$0xff]
      %v2472 = vld [vmem:[%s2343] sm:$0xff]
      %v2473 = vld [vmem:[%s2343 + $0x8] sm:$0xff]
      %v2474 = vld [vmem:[%s2343 + $0x18] sm:$0xff]
      %v2475 = vld [vmem:[%s2343 + $0x20] sm:$0xff]
      %v2476 = vld [vmem:[%s2343 + $0x30] sm:$0xff]
      %v2477 = vld [vmem:[%s2343 + $0x38] sm:$0xff]
      %v2478 = vld [vmem:[%s2343 + $0x48] sm:$0xff]
      %v2479 = vld [vmem:[%s2343 + $0x50] sm:$0xff]
      %v2480 = vld [vmem:[%s2343 + $0x60] sm:$0xff]
      %v2481 = vld [vmem:[%s2343 + $0x68] sm:$0xff]
      %v2482 = vld [vmem:[%s2343 + $0x78] sm:$0xff]
      %v2483 = vld [vmem:[%s2343 + $0x80] sm:$0xff]
      %v2484 = vld [vmem:[%s2343 + $0x90] sm:$0xff]
      %v2485 = vld [vmem:[%s2343 + $0x98] sm:$0xff]
      %v2486 = vld [vmem:[%s2343 + $0xa8] sm:$0xff]
      %v2487 = vld [vmem:[%s2343 + $0xb0] sm:$0xff]
      %v2488 = vld [vmem:[%s2343 + $0xc0] sm:$0xff]
      %v2489 = vld [vmem:[%s2343 + $0xc8] sm:$0xff]
      %v2490 = vld [vmem:[%s2343 + $0xd8] sm:$0xff]
      %v2491 = vld [vmem:[%s2343 + $0xe0] sm:$0xff]
      %v2492 = vld [vmem:[%s2343 + $0xf0] sm:$0xff]
      %v2493 = vld [vmem:[%s2343 + $0xf8] sm:$0xff]
      %v2494 = vld [vmem:[%s2343 + $0x108] sm:$0xff]
      %v2495 = vld [vmem:[%s2343 + $0x110] sm:$0xff]
      %v2496 = vld [vmem:[%s2343 + $0x120] sm:$0xff]
      %v2497 = vld [vmem:[%s2343 + $0x128] sm:$0xff]
      %v2498 = vld [vmem:[%s2343 + $0x138] sm:$0xff]
      %v2499 = vld [vmem:[%s2343 + $0x140] sm:$0xff]
      %v2500 = vld [vmem:[%s2343 + $0x150] sm:$0xff]
      %v2501 = vld [vmem:[%s2343 + $0x158] sm:$0xff]
      %v2502 = vld [vmem:[%s2343 + $0x168] sm:$0xff]
      %v2503 = vld [vmem:[%s2343 + $0x170] sm:$0xff]
      %v2504 = vld [vmem:[%s2343 + $0x1] sm:$0xff]
      %v2505 = vld [vmem:[%s2343 + $0x9] sm:$0xff]
      %v2506 = vld [vmem:[%s2343 + $0x19] sm:$0xff]
      %v2507 = vld [vmem:[%s2343 + $0x21] sm:$0xff]
      %v2508 = vld [vmem:[%s2343 + $0x31] sm:$0xff]
      %v2509 = vld [vmem:[%s2343 + $0x39] sm:$0xff]
      %v2510 = vld [vmem:[%s2343 + $0x49] sm:$0xff]
      %v2511 = vld [vmem:[%s2343 + $0x51] sm:$0xff]
      %v2512 = vld [vmem:[%s2343 + $0x61] sm:$0xff]
      %v2513 = vld [vmem:[%s2343 + $0x69] sm:$0xff]
      %v2514 = vld [vmem:[%s2343 + $0x79] sm:$0xff]
      %v2515 = vld [vmem:[%s2343 + $0x81] sm:$0xff]
      %v2516 = vld [vmem:[%s2343 + $0x91] sm:$0xff]
      %v2517 = vld [vmem:[%s2343 + $0x99] sm:$0xff]
      %v2518 = vld [vmem:[%s2343 + $0xa9] sm:$0xff]
      %v2519 = vld [vmem:[%s2343 + $0xb1] sm:$0xff]
      %v2520 = vld [vmem:[%s2343 + $0xc1] sm:$0xff]
      %v2521 = vld [vmem:[%s2343 + $0xc9] sm:$0xff]
      %v2522 = vld [vmem:[%s2343 + $0xd9] sm:$0xff]
      %v2523 = vld [vmem:[%s2343 + $0xe1] sm:$0xff]
      %v2524 = vld [vmem:[%s2343 + $0xf1] sm:$0xff]
      %v2525 = vld [vmem:[%s2343 + $0xf9] sm:$0xff]
      %v2526 = vld [vmem:[%s2343 + $0x109] sm:$0xff]
      %v2527 = vld [vmem:[%s2343 + $0x111] sm:$0xff]
      %v2528 = vld [vmem:[%s2343 + $0x121] sm:$0xff]
      %v2529 = vld [vmem:[%s2343 + $0x129] sm:$0xff]
      %v2530 = vld [vmem:[%s2343 + $0x139] sm:$0xff]
      %v2531 = vld [vmem:[%s2343 + $0x141] sm:$0xff]
      %v2532 = vld [vmem:[%s2343 + $0x151] sm:$0xff]
      %v2533 = vld [vmem:[%s2343 + $0x159] sm:$0xff]
      %v2534 = vld [vmem:[%s2343 + $0x169] sm:$0xff]
      %v2535 = vld [vmem:[%s2343 + $0x171] sm:$0xff]
      %v2536 = vld [vmem:[%s2343 + $0x2] sm:$0xff]
      %v2537 = vld [vmem:[%s2343 + $0xa] sm:$0xff]
      %v2538 = vld [vmem:[%s2343 + $0x1a] sm:$0xff]
      %v2539 = vld [vmem:[%s2343 + $0x22] sm:$0xff]
      %v2540 = vld [vmem:[%s2343 + $0x32] sm:$0xff]
      %v2541 = vld [vmem:[%s2343 + $0x3a] sm:$0xff]
      %v2542 = vld [vmem:[%s2343 + $0x4a] sm:$0xff]
      %v2543 = vld [vmem:[%s2343 + $0x52] sm:$0xff]
      %v2544 = vld [vmem:[%s2343 + $0x62] sm:$0xff]
      %v2545 = vld [vmem:[%s2343 + $0x6a] sm:$0xff]
      %v2546 = vld [vmem:[%s2343 + $0x7a] sm:$0xff]
      %v2547 = vld [vmem:[%s2343 + $0x82] sm:$0xff]
      %v2548 = vld [vmem:[%s2343 + $0x92] sm:$0xff]
      %v2549 = vld [vmem:[%s2343 + $0x9a] sm:$0xff]
      %v2550 = vld [vmem:[%s2343 + $0xaa] sm:$0xff]
      %v2551 = vld [vmem:[%s2343 + $0xb2] sm:$0xff]
      %v2552 = vld [vmem:[%s2343 + $0xc2] sm:$0xff]
      %v2553 = vld [vmem:[%s2343 + $0xca] sm:$0xff]
      %v2554 = vld [vmem:[%s2343 + $0xda] sm:$0xff]
      %v2555 = vld [vmem:[%s2343 + $0xe2] sm:$0xff]
      %v2556 = vld [vmem:[%s2343 + $0xf2] sm:$0xff]
      %v2557 = vld [vmem:[%s2343 + $0xfa] sm:$0xff]
      %v2558 = vld [vmem:[%s2343 + $0x10a] sm:$0xff]
      %v2559 = vld [vmem:[%s2343 + $0x112] sm:$0xff]
      %v2560 = vld [vmem:[%s2343 + $0x122] sm:$0xff]
      %v2561 = vld [vmem:[%s2343 + $0x12a] sm:$0xff]
      %v2562 = vld [vmem:[%s2343 + $0x13a] sm:$0xff]
      %v2563 = vld [vmem:[%s2343 + $0x142] sm:$0xff]
      %v2564 = vld [vmem:[%s2343 + $0x152] sm:$0xff]
      %v2565 = vld [vmem:[%s2343 + $0x15a] sm:$0xff]
      %v2566 = vld [vmem:[%s2343 + $0x16a] sm:$0xff]
      %v2567 = vld [vmem:[%s2343 + $0x172] sm:$0xff]
      %s2568 = scalar_lea.vmem [#allocation2], 48
      %v2569 = vld [vmem:[%s2568] sm:$0xff]
      %v2570 = vld [vmem:[%s2568 + $0x8] sm:$0xff]
      %v2571 = vld [vmem:[%s2568 + $0x18] sm:$0xff]
      %v2572 = vld [vmem:[%s2568 + $0x20] sm:$0xff]
      %v2573 = vld [vmem:[%s2568 + $0x30] sm:$0xff]
      %v2574 = vld [vmem:[%s2568 + $0x38] sm:$0xff]
      %v2575 = vld [vmem:[%s2568 + $0x48] sm:$0xff]
      %v2576 = vld [vmem:[%s2568 + $0x50] sm:$0xff]
      %v2577 = vld [vmem:[%s2568 + $0x60] sm:$0xff]
      %v2578 = vld [vmem:[%s2568 + $0x68] sm:$0xff]
      %v2579 = vld [vmem:[%s2568 + $0x78] sm:$0xff]
      %v2580 = vld [vmem:[%s2568 + $0x80] sm:$0xff]
      %v2581 = vld [vmem:[%s2568 + $0x90] sm:$0xff]
      %v2582 = vld [vmem:[%s2568 + $0x98] sm:$0xff]
      %v2583 = vld [vmem:[%s2568 + $0xa8] sm:$0xff]
      %v2584 = vld [vmem:[%s2568 + $0xb0] sm:$0xff]
      %v2585 = vld [vmem:[%s2568 + $0xc0] sm:$0xff]
      %v2586 = vld [vmem:[%s2568 + $0xc8] sm:$0xff]
      %v2587 = vld [vmem:[%s2568 + $0xd8] sm:$0xff]
      %v2588 = vld [vmem:[%s2568 + $0xe0] sm:$0xff]
      %v2589 = vld [vmem:[%s2568 + $0xf0] sm:$0xff]
      %v2590 = vld [vmem:[%s2568 + $0xf8] sm:$0xff]
      %v2591 = vld [vmem:[%s2568 + $0x108] sm:$0xff]
      %v2592 = vld [vmem:[%s2568 + $0x110] sm:$0xff]
      %v2593 = vld [vmem:[%s2568 + $0x120] sm:$0xff]
      %v2594 = vld [vmem:[%s2568 + $0x128] sm:$0xff]
      %v2595 = vld [vmem:[%s2568 + $0x138] sm:$0xff]
      %v2596 = vld [vmem:[%s2568 + $0x140] sm:$0xff]
      %v2597 = vld [vmem:[%s2568 + $0x150] sm:$0xff]
      %v2598 = vld [vmem:[%s2568 + $0x158] sm:$0xff]
      %v2599 = vld [vmem:[%s2568 + $0x168] sm:$0xff]
      %v2600 = vld [vmem:[%s2568 + $0x170] sm:$0xff]
      %v2601 = vld [vmem:[%s2568 + $0x1] sm:$0xff]
      %v2602 = vld [vmem:[%s2568 + $0x9] sm:$0xff]
      %v2603 = vld [vmem:[%s2568 + $0x19] sm:$0xff]
      %v2604 = vld [vmem:[%s2568 + $0x21] sm:$0xff]
      %v2605 = vld [vmem:[%s2568 + $0x31] sm:$0xff]
      %v2606 = vld [vmem:[%s2568 + $0x39] sm:$0xff]
      %v2607 = vld [vmem:[%s2568 + $0x49] sm:$0xff]
      %v2608 = vld [vmem:[%s2568 + $0x51] sm:$0xff]
      %v2609 = vld [vmem:[%s2568 + $0x61] sm:$0xff]
      %v2610 = vld [vmem:[%s2568 + $0x69] sm:$0xff]
      %v2611 = vld [vmem:[%s2568 + $0x79] sm:$0xff]
      %v2612 = vld [vmem:[%s2568 + $0x81] sm:$0xff]
      %v2613 = vld [vmem:[%s2568 + $0x91] sm:$0xff]
      %v2614 = vld [vmem:[%s2568 + $0x99] sm:$0xff]
      %v2615 = vld [vmem:[%s2568 + $0xa9] sm:$0xff]
      %v2616 = vld [vmem:[%s2568 + $0xb1] sm:$0xff]
      %v2617 = vld [vmem:[%s2568 + $0xc1] sm:$0xff]
      %v2618 = vld [vmem:[%s2568 + $0xc9] sm:$0xff]
      %v2619 = vld [vmem:[%s2568 + $0xd9] sm:$0xff]
      %v2620 = vld [vmem:[%s2568 + $0xe1] sm:$0xff]
      %v2621 = vld [vmem:[%s2568 + $0xf1] sm:$0xff]
      %v2622 = vld [vmem:[%s2568 + $0xf9] sm:$0xff]
      %v2623 = vld [vmem:[%s2568 + $0x109] sm:$0xff]
      %v2624 = vld [vmem:[%s2568 + $0x111] sm:$0xff]
      %v2625 = vld [vmem:[%s2568 + $0x121] sm:$0xff]
      %v2626 = vld [vmem:[%s2568 + $0x129] sm:$0xff]
      %v2627 = vld [vmem:[%s2568 + $0x139] sm:$0xff]
      %v2628 = vld [vmem:[%s2568 + $0x141] sm:$0xff]
      %v2629 = vld [vmem:[%s2568 + $0x151] sm:$0xff]
      %v2630 = vld [vmem:[%s2568 + $0x159] sm:$0xff]
      %v2631 = vld [vmem:[%s2568 + $0x169] sm:$0xff]
      %v2632 = vld [vmem:[%s2568 + $0x171] sm:$0xff]
      %v2633 = vld [vmem:[%s2568 + $0x2] sm:$0xff]
      %v2634 = vld [vmem:[%s2568 + $0xa] sm:$0xff]
      %v2635 = vld [vmem:[%s2568 + $0x1a] sm:$0xff]
      %v2636 = vld [vmem:[%s2568 + $0x22] sm:$0xff]
      %v2637 = vld [vmem:[%s2568 + $0x32] sm:$0xff]
      %v2638 = vld [vmem:[%s2568 + $0x3a] sm:$0xff]
      %v2639 = vld [vmem:[%s2568 + $0x4a] sm:$0xff]
      %v2640 = vld [vmem:[%s2568 + $0x52] sm:$0xff]
      %v2641 = vld [vmem:[%s2568 + $0x62] sm:$0xff]
      %v2642 = vld [vmem:[%s2568 + $0x6a] sm:$0xff]
      %v2643 = vld [vmem:[%s2568 + $0x7a] sm:$0xff]
      %v2644 = vld [vmem:[%s2568 + $0x82] sm:$0xff]
      %v2645 = vld [vmem:[%s2568 + $0x92] sm:$0xff]
      %v2646 = vld [vmem:[%s2568 + $0x9a] sm:$0xff]
      %v2647 = vld [vmem:[%s2568 + $0xaa] sm:$0xff]
      %v2648 = vld [vmem:[%s2568 + $0xb2] sm:$0xff]
      %v2649 = vld [vmem:[%s2568 + $0xc2] sm:$0xff]
      %v2650 = vld [vmem:[%s2568 + $0xca] sm:$0xff]
      %v2651 = vld [vmem:[%s2568 + $0xda] sm:$0xff]
      %v2652 = vld [vmem:[%s2568 + $0xe2] sm:$0xff]
      %v2653 = vld [vmem:[%s2568 + $0xf2] sm:$0xff]
      %v2654 = vld [vmem:[%s2568 + $0xfa] sm:$0xff]
      %v2655 = vld [vmem:[%s2568 + $0x10a] sm:$0xff]
      %v2656 = vld [vmem:[%s2568 + $0x112] sm:$0xff]
      %v2657 = vld [vmem:[%s2568 + $0x122] sm:$0xff]
      %v2658 = vld [vmem:[%s2568 + $0x12a] sm:$0xff]
      %v2659 = vld [vmem:[%s2568 + $0x13a] sm:$0xff]
      %v2660 = vld [vmem:[%s2568 + $0x142] sm:$0xff]
      %v2661 = vld [vmem:[%s2568 + $0x152] sm:$0xff]
      %v2662 = vld [vmem:[%s2568 + $0x15a] sm:$0xff]
      %v2663 = vld [vmem:[%s2568 + $0x16a] sm:$0xff]
      %v2664 = vld [vmem:[%s2568 + $0x172] sm:$0xff]
      %2697 = vrot.lane.b32.xlu0 %v2408, 8
      %v2698 = vpop.permute.xlu0 %2697
      %2699 = vrot.lane.b32.xlu0 %v2409, 8
      %v2700 = vpop.permute.xlu0 %2699
      %2701 = vrot.lane.b32.xlu0 %v2410, 8
      %v2702 = vpop.permute.xlu0 %2701
      %2703 = vrot.lane.b32.xlu0 %v2411, 8
      %v2704 = vpop.permute.xlu0 %2703
      %2705 = vrot.lane.b32.xlu0 %v2412, 8
      %v2706 = vpop.permute.xlu0 %2705
      %2707 = vrot.lane.b32.xlu0 %v2413, 8
      %v2708 = vpop.permute.xlu0 %2707
      %2709 = vrot.lane.b32.xlu0 %v2414, 8
      %v2710 = vpop.permute.xlu0 %2709
      %2711 = vrot.lane.b32.xlu0 %v2415, 8
      %v2712 = vpop.permute.xlu0 %2711
      %2713 = vrot.lane.b32.xlu0 %v2416, 8
      %v2714 = vpop.permute.xlu0 %2713
      %2715 = vrot.lane.b32.xlu0 %v2417, 8
      %v2716 = vpop.permute.xlu0 %2715
      %2717 = vrot.lane.b32.xlu0 %v2418, 8
      %v2718 = vpop.permute.xlu0 %2717
      %2719 = vrot.lane.b32.xlu0 %v2419, 8
      %v2720 = vpop.permute.xlu0 %2719
      %2721 = vrot.lane.b32.xlu0 %v2420, 8
      %v2722 = vpop.permute.xlu0 %2721
      %2723 = vrot.lane.b32.xlu0 %v2421, 8
      %v2724 = vpop.permute.xlu0 %2723
      %2725 = vrot.lane.b32.xlu0 %v2422, 8
      %v2726 = vpop.permute.xlu0 %2725
      %2727 = vrot.lane.b32.xlu0 %v2423, 8
      %v2728 = vpop.permute.xlu0 %2727
      %2729 = vrot.lane.b32.xlu0 %v2424, 8
      %v2730 = vpop.permute.xlu0 %2729
      %2731 = vrot.lane.b32.xlu0 %v2425, 8
      %v2732 = vpop.permute.xlu0 %2731
      %2733 = vrot.lane.b32.xlu0 %v2426, 8
      %v2734 = vpop.permute.xlu0 %2733
      %2735 = vrot.lane.b32.xlu0 %v2427, 8
      %v2736 = vpop.permute.xlu0 %2735
      %2737 = vrot.lane.b32.xlu0 %v2428, 8
      %v2738 = vpop.permute.xlu0 %2737
      %2739 = vrot.lane.b32.xlu0 %v2429, 8
      %v2740 = vpop.permute.xlu0 %2739
      %2741 = vrot.lane.b32.xlu0 %v2430, 8
      %v2742 = vpop.permute.xlu0 %2741
      %2743 = vrot.lane.b32.xlu0 %v2431, 8
      %v2744 = vpop.permute.xlu0 %2743
      %2745 = vrot.lane.b32.xlu0 %v2432, 8
      %v2746 = vpop.permute.xlu0 %2745
      %2747 = vrot.lane.b32.xlu0 %v2433, 8
      %v2748 = vpop.permute.xlu0 %2747
      %2749 = vrot.lane.b32.xlu0 %v2434, 8
      %v2750 = vpop.permute.xlu0 %2749
      %2751 = vrot.lane.b32.xlu0 %v2435, 8
      %v2752 = vpop.permute.xlu0 %2751
      %2753 = vrot.lane.b32.xlu0 %v2436, 8
      %v2754 = vpop.permute.xlu0 %2753
      %2755 = vrot.lane.b32.xlu0 %v2437, 8
      %v2756 = vpop.permute.xlu0 %2755
      %2757 = vrot.lane.b32.xlu0 %v2438, 8
      %v2758 = vpop.permute.xlu0 %2757
      %2759 = vrot.lane.b32.xlu0 %v2439, 8
      %v2760 = vpop.permute.xlu0 %2759
      %2825 = vrot.lane.b32.xlu0 %v2440, 16
      %v2826 = vpop.permute.xlu0 %2825
      %2827 = vrot.lane.b32.xlu0 %v2441, 16
      %v2828 = vpop.permute.xlu0 %2827
      %2829 = vrot.lane.b32.xlu0 %v2442, 16
      %v2830 = vpop.permute.xlu0 %2829
      %2831 = vrot.lane.b32.xlu0 %v2443, 16
      %v2832 = vpop.permute.xlu0 %2831
      %2833 = vrot.lane.b32.xlu0 %v2444, 16
      %v2834 = vpop.permute.xlu0 %2833
      %2835 = vrot.lane.b32.xlu0 %v2445, 16
      %v2836 = vpop.permute.xlu0 %2835
      %2837 = vrot.lane.b32.xlu0 %v2446, 16
      %v2838 = vpop.permute.xlu0 %2837
      %2839 = vrot.lane.b32.xlu0 %v2447, 16
      %v2840 = vpop.permute.xlu0 %2839
      %2841 = vrot.lane.b32.xlu0 %v2448, 16
      %v2842 = vpop.permute.xlu0 %2841
      %2843 = vrot.lane.b32.xlu0 %v2449, 16
      %v2844 = vpop.permute.xlu0 %2843
      %2845 = vrot.lane.b32.xlu0 %v2450, 16
      %v2846 = vpop.permute.xlu0 %2845
      %2847 = vrot.lane.b32.xlu0 %v2451, 16
      %v2848 = vpop.permute.xlu0 %2847
      %2849 = vrot.lane.b32.xlu0 %v2452, 16
      %v2850 = vpop.permute.xlu0 %2849
      %2851 = vrot.lane.b32.xlu0 %v2453, 16
      %v2852 = vpop.permute.xlu0 %2851
      %2853 = vrot.lane.b32.xlu0 %v2454, 16
      %v2854 = vpop.permute.xlu0 %2853
      %2855 = vrot.lane.b32.xlu0 %v2455, 16
      %v2856 = vpop.permute.xlu0 %2855
      %2857 = vrot.lane.b32.xlu0 %v2456, 16
      %v2858 = vpop.permute.xlu0 %2857
      %2859 = vrot.lane.b32.xlu0 %v2457, 16
      %v2860 = vpop.permute.xlu0 %2859
      %2861 = vrot.lane.b32.xlu0 %v2458, 16
      %v2862 = vpop.permute.xlu0 %2861
      %2863 = vrot.lane.b32.xlu0 %v2459, 16
      %v2864 = vpop.permute.xlu0 %2863
      %2865 = vrot.lane.b32.xlu0 %v2460, 16
      %v2866 = vpop.permute.xlu0 %2865
      %2867 = vrot.lane.b32.xlu0 %v2461, 16
      %v2868 = vpop.permute.xlu0 %2867
      %2869 = vrot.lane.b32.xlu0 %v2462, 16
      %v2870 = vpop.permute.xlu0 %2869
      %2871 = vrot.lane.b32.xlu0 %v2463, 16
      %v2872 = vpop.permute.xlu0 %2871
      %2873 = vrot.lane.b32.xlu0 %v2464, 16
      %v2874 = vpop.permute.xlu0 %2873
      %2875 = vrot.lane.b32.xlu0 %v2465, 16
      %v2876 = vpop.permute.xlu0 %2875
      %2877 = vrot.lane.b32.xlu0 %v2466, 16
      %v2878 = vpop.permute.xlu0 %2877
      %2879 = vrot.lane.b32.xlu0 %v2467, 16
      %v2880 = vpop.permute.xlu0 %2879
      %2881 = vrot.lane.b32.xlu0 %v2468, 16
      %v2882 = vpop.permute.xlu0 %2881
      %2883 = vrot.lane.b32.xlu0 %v2469, 16
      %v2884 = vpop.permute.xlu0 %2883
      %2885 = vrot.lane.b32.xlu0 %v2470, 16
      %v2886 = vpop.permute.xlu0 %2885
      %2887 = vrot.lane.b32.xlu0 %v2471, 16
      %v2888 = vpop.permute.xlu0 %2887
      %2953 = vrot.lane.b32.xlu0 %v2472, 24
      %v2954 = vpop.permute.xlu0 %2953
      %2955 = vrot.lane.b32.xlu0 %v2473, 24
      %v2956 = vpop.permute.xlu0 %2955
      %2957 = vrot.lane.b32.xlu0 %v2474, 24
      %v2958 = vpop.permute.xlu0 %2957
      %2959 = vrot.lane.b32.xlu0 %v2475, 24
      %v2960 = vpop.permute.xlu0 %2959
      %2961 = vrot.lane.b32.xlu0 %v2476, 24
      %v2962 = vpop.permute.xlu0 %2961
      %2963 = vrot.lane.b32.xlu0 %v2477, 24
      %v2964 = vpop.permute.xlu0 %2963
      %2965 = vrot.lane.b32.xlu0 %v2478, 24
      %v2966 = vpop.permute.xlu0 %2965
      %2967 = vrot.lane.b32.xlu0 %v2479, 24
      %v2968 = vpop.permute.xlu0 %2967
      %2969 = vrot.lane.b32.xlu0 %v2480, 24
      %v2970 = vpop.permute.xlu0 %2969
      %2971 = vrot.lane.b32.xlu0 %v2481, 24
      %v2972 = vpop.permute.xlu0 %2971
      %2973 = vrot.lane.b32.xlu0 %v2482, 24
      %v2974 = vpop.permute.xlu0 %2973
      %2975 = vrot.lane.b32.xlu0 %v2483, 24
      %v2976 = vpop.permute.xlu0 %2975
      %2977 = vrot.lane.b32.xlu0 %v2484, 24
      %v2978 = vpop.permute.xlu0 %2977
      %2979 = vrot.lane.b32.xlu0 %v2485, 24
      %v2980 = vpop.permute.xlu0 %2979
      %2981 = vrot.lane.b32.xlu0 %v2486, 24
      %v2982 = vpop.permute.xlu0 %2981
      %2983 = vrot.lane.b32.xlu0 %v2487, 24
      %v2984 = vpop.permute.xlu0 %2983
      %2985 = vrot.lane.b32.xlu0 %v2488, 24
      %v2986 = vpop.permute.xlu0 %2985
      %2987 = vrot.lane.b32.xlu0 %v2489, 24
      %v2988 = vpop.permute.xlu0 %2987
      %2989 = vrot.lane.b32.xlu0 %v2490, 24
      %v2990 = vpop.permute.xlu0 %2989
      %2991 = vrot.lane.b32.xlu0 %v2491, 24
      %v2992 = vpop.permute.xlu0 %2991
      %2993 = vrot.lane.b32.xlu0 %v2492, 24
      %v2994 = vpop.permute.xlu0 %2993
      %2995 = vrot.lane.b32.xlu0 %v2493, 24
      %v2996 = vpop.permute.xlu0 %2995
      %2997 = vrot.lane.b32.xlu0 %v2494, 24
      %v2998 = vpop.permute.xlu0 %2997
      %2999 = vrot.lane.b32.xlu0 %v2495, 24
      %v3000 = vpop.permute.xlu0 %2999
      %3001 = vrot.lane.b32.xlu0 %v2496, 24
      %v3002 = vpop.permute.xlu0 %3001
      %3003 = vrot.lane.b32.xlu0 %v2497, 24
      %v3004 = vpop.permute.xlu0 %3003
      %3005 = vrot.lane.b32.xlu0 %v2498, 24
      %v3006 = vpop.permute.xlu0 %3005
      %3007 = vrot.lane.b32.xlu0 %v2499, 24
      %v3008 = vpop.permute.xlu0 %3007
      %3009 = vrot.lane.b32.xlu0 %v2500, 24
      %v3010 = vpop.permute.xlu0 %3009
      %3011 = vrot.lane.b32.xlu0 %v2501, 24
      %v3012 = vpop.permute.xlu0 %3011
      %3013 = vrot.lane.b32.xlu0 %v2502, 24
      %v3014 = vpop.permute.xlu0 %3013
      %3015 = vrot.lane.b32.xlu0 %v2503, 24
      %v3016 = vpop.permute.xlu0 %3015
      %3081 = vrot.lane.b32.xlu0 %v2504, 32
      %v3082 = vpop.permute.xlu0 %3081
      %3083 = vrot.lane.b32.xlu0 %v2505, 32
      %v3084 = vpop.permute.xlu0 %3083
      %3085 = vrot.lane.b32.xlu0 %v2506, 32
      %v3086 = vpop.permute.xlu0 %3085
      %3087 = vrot.lane.b32.xlu0 %v2507, 32
      %v3088 = vpop.permute.xlu0 %3087
      %3089 = vrot.lane.b32.xlu0 %v2508, 32
      %v3090 = vpop.permute.xlu0 %3089
      %3091 = vrot.lane.b32.xlu0 %v2509, 32
      %v3092 = vpop.permute.xlu0 %3091
      %3093 = vrot.lane.b32.xlu0 %v2510, 32
      %v3094 = vpop.permute.xlu0 %3093
      %3095 = vrot.lane.b32.xlu0 %v2511, 32
      %v3096 = vpop.permute.xlu0 %3095
      %3097 = vrot.lane.b32.xlu0 %v2512, 32
      %v3098 = vpop.permute.xlu0 %3097
      %3099 = vrot.lane.b32.xlu0 %v2513, 32
      %v3100 = vpop.permute.xlu0 %3099
      %3101 = vrot.lane.b32.xlu0 %v2514, 32
      %v3102 = vpop.permute.xlu0 %3101
      %3103 = vrot.lane.b32.xlu0 %v2515, 32
      %v3104 = vpop.permute.xlu0 %3103
      %3105 = vrot.lane.b32.xlu0 %v2516, 32
      %v3106 = vpop.permute.xlu0 %3105
      %3107 = vrot.lane.b32.xlu0 %v2517, 32
      %v3108 = vpop.permute.xlu0 %3107
      %3109 = vrot.lane.b32.xlu0 %v2518, 32
      %v3110 = vpop.permute.xlu0 %3109
      %3111 = vrot.lane.b32.xlu0 %v2519, 32
      %v3112 = vpop.permute.xlu0 %3111
      %3113 = vrot.lane.b32.xlu0 %v2520, 32
      %v3114 = vpop.permute.xlu0 %3113
      %3115 = vrot.lane.b32.xlu0 %v2521, 32
      %v3116 = vpop.permute.xlu0 %3115
      %3117 = vrot.lane.b32.xlu0 %v2522, 32
      %v3118 = vpop.permute.xlu0 %3117
      %3119 = vrot.lane.b32.xlu0 %v2523, 32
      %v3120 = vpop.permute.xlu0 %3119
      %3121 = vrot.lane.b32.xlu0 %v2524, 32
      %v3122 = vpop.permute.xlu0 %3121
      %3123 = vrot.lane.b32.xlu0 %v2525, 32
      %v3124 = vpop.permute.xlu0 %3123
      %3125 = vrot.lane.b32.xlu0 %v2526, 32
      %v3126 = vpop.permute.xlu0 %3125
      %3127 = vrot.lane.b32.xlu0 %v2527, 32
      %v3128 = vpop.permute.xlu0 %3127
      %3129 = vrot.lane.b32.xlu0 %v2528, 32
      %v3130 = vpop.permute.xlu0 %3129
      %3131 = vrot.lane.b32.xlu0 %v2529, 32
      %v3132 = vpop.permute.xlu0 %3131
      %3133 = vrot.lane.b32.xlu0 %v2530, 32
      %v3134 = vpop.permute.xlu0 %3133
      %3135 = vrot.lane.b32.xlu0 %v2531, 32
      %v3136 = vpop.permute.xlu0 %3135
      %3137 = vrot.lane.b32.xlu0 %v2532, 32
      %v3138 = vpop.permute.xlu0 %3137
      %3139 = vrot.lane.b32.xlu0 %v2533, 32
      %v3140 = vpop.permute.xlu0 %3139
      %3141 = vrot.lane.b32.xlu0 %v2534, 32
      %v3142 = vpop.permute.xlu0 %3141
      %3143 = vrot.lane.b32.xlu0 %v2535, 32
      %v3144 = vpop.permute.xlu0 %3143
      %3209 = vrot.lane.b32.xlu0 %v2536, 40
      %v3210 = vpop.permute.xlu0 %3209
      %3211 = vrot.lane.b32.xlu0 %v2537, 40
      %v3212 = vpop.permute.xlu0 %3211
      %3213 = vrot.lane.b32.xlu0 %v2538, 40
      %v3214 = vpop.permute.xlu0 %3213
      %3215 = vrot.lane.b32.xlu0 %v2539, 40
      %v3216 = vpop.permute.xlu0 %3215
      %3217 = vrot.lane.b32.xlu0 %v2540, 40
      %v3218 = vpop.permute.xlu0 %3217
      %3219 = vrot.lane.b32.xlu0 %v2541, 40
      %v3220 = vpop.permute.xlu0 %3219
      %3221 = vrot.lane.b32.xlu0 %v2542, 40
      %v3222 = vpop.permute.xlu0 %3221
      %3223 = vrot.lane.b32.xlu0 %v2543, 40
      %v3224 = vpop.permute.xlu0 %3223
      %3225 = vrot.lane.b32.xlu0 %v2544, 40
      %v3226 = vpop.permute.xlu0 %3225
      %3227 = vrot.lane.b32.xlu0 %v2545, 40
      %v3228 = vpop.permute.xlu0 %3227
      %3229 = vrot.lane.b32.xlu0 %v2546, 40
      %v3230 = vpop.permute.xlu0 %3229
      %3231 = vrot.lane.b32.xlu0 %v2547, 40
      %v3232 = vpop.permute.xlu0 %3231
      %3233 = vrot.lane.b32.xlu0 %v2548, 40
      %v3234 = vpop.permute.xlu0 %3233
      %3235 = vrot.lane.b32.xlu0 %v2549, 40
      %v3236 = vpop.permute.xlu0 %3235
      %3237 = vrot.lane.b32.xlu0 %v2550, 40
      %v3238 = vpop.permute.xlu0 %3237
      %3239 = vrot.lane.b32.xlu0 %v2551, 40
      %v3240 = vpop.permute.xlu0 %3239
      %3241 = vrot.lane.b32.xlu0 %v2552, 40
      %v3242 = vpop.permute.xlu0 %3241
      %3243 = vrot.lane.b32.xlu0 %v2553, 40
      %v3244 = vpop.permute.xlu0 %3243
      %3245 = vrot.lane.b32.xlu0 %v2554, 40
      %v3246 = vpop.permute.xlu0 %3245
      %3247 = vrot.lane.b32.xlu0 %v2555, 40
      %v3248 = vpop.permute.xlu0 %3247
      %3249 = vrot.lane.b32.xlu0 %v2556, 40
      %v3250 = vpop.permute.xlu0 %3249
      %3251 = vrot.lane.b32.xlu0 %v2557, 40
      %v3252 = vpop.permute.xlu0 %3251
      %3253 = vrot.lane.b32.xlu0 %v2558, 40
      %v3254 = vpop.permute.xlu0 %3253
      %3255 = vrot.lane.b32.xlu0 %v2559, 40
      %v3256 = vpop.permute.xlu0 %3255
      %3257 = vrot.lane.b32.xlu0 %v2560, 40
      %v3258 = vpop.permute.xlu0 %3257
      %3259 = vrot.lane.b32.xlu0 %v2561, 40
      %v3260 = vpop.permute.xlu0 %3259
      %3261 = vrot.lane.b32.xlu0 %v2562, 40
      %v3262 = vpop.permute.xlu0 %3261
      %3263 = vrot.lane.b32.xlu0 %v2563, 40
      %v3264 = vpop.permute.xlu0 %3263
      %3265 = vrot.lane.b32.xlu0 %v2564, 40
      %v3266 = vpop.permute.xlu0 %3265
      %3267 = vrot.lane.b32.xlu0 %v2565, 40
      %v3268 = vpop.permute.xlu0 %3267
      %3269 = vrot.lane.b32.xlu0 %v2566, 40
      %v3270 = vpop.permute.xlu0 %3269
      %3271 = vrot.lane.b32.xlu0 %v2567, 40
      %v3272 = vpop.permute.xlu0 %3271
      %3337 = vrot.lane.b32.xlu0 %v2569, 48
      %v3338 = vpop.permute.xlu0 %3337
      %3339 = vrot.lane.b32.xlu0 %v2570, 48
      %v3340 = vpop.permute.xlu0 %3339
      %3341 = vrot.lane.b32.xlu0 %v2571, 48
      %v3342 = vpop.permute.xlu0 %3341
      %3343 = vrot.lane.b32.xlu0 %v2572, 48
      %v3344 = vpop.permute.xlu0 %3343
      %3345 = vrot.lane.b32.xlu0 %v2573, 48
      %v3346 = vpop.permute.xlu0 %3345
      %3347 = vrot.lane.b32.xlu0 %v2574, 48
      %v3348 = vpop.permute.xlu0 %3347
      %3349 = vrot.lane.b32.xlu0 %v2575, 48
      %v3350 = vpop.permute.xlu0 %3349
      %3351 = vrot.lane.b32.xlu0 %v2576, 48
      %v3352 = vpop.permute.xlu0 %3351
      %3353 = vrot.lane.b32.xlu0 %v2577, 48
      %v3354 = vpop.permute.xlu0 %3353
      %3355 = vrot.lane.b32.xlu0 %v2578, 48
      %v3356 = vpop.permute.xlu0 %3355
      %3357 = vrot.lane.b32.xlu0 %v2579, 48
      %v3358 = vpop.permute.xlu0 %3357
      %3359 = vrot.lane.b32.xlu0 %v2580, 48
      %v3360 = vpop.permute.xlu0 %3359
      %3361 = vrot.lane.b32.xlu0 %v2581, 48
      %v3362 = vpop.permute.xlu0 %3361
      %3363 = vrot.lane.b32.xlu0 %v2582, 48
      %v3364 = vpop.permute.xlu0 %3363
      %3365 = vrot.lane.b32.xlu0 %v2583, 48
      %v3366 = vpop.permute.xlu0 %3365
      %3367 = vrot.lane.b32.xlu0 %v2584, 48
      %v3368 = vpop.permute.xlu0 %3367
      %3369 = vrot.lane.b32.xlu0 %v2585, 48
      %v3370 = vpop.permute.xlu0 %3369
      %3371 = vrot.lane.b32.xlu0 %v2586, 48
      %v3372 = vpop.permute.xlu0 %3371
      %3373 = vrot.lane.b32.xlu0 %v2587, 48
      %v3374 = vpop.permute.xlu0 %3373
      %3375 = vrot.lane.b32.xlu0 %v2588, 48
      %v3376 = vpop.permute.xlu0 %3375
      %3377 = vrot.lane.b32.xlu0 %v2589, 48
      %v3378 = vpop.permute.xlu0 %3377
      %3379 = vrot.lane.b32.xlu0 %v2590, 48
      %v3380 = vpop.permute.xlu0 %3379
      %3381 = vrot.lane.b32.xlu0 %v2591, 48
      %v3382 = vpop.permute.xlu0 %3381
      %3383 = vrot.lane.b32.xlu0 %v2592, 48
      %v3384 = vpop.permute.xlu0 %3383
      %3385 = vrot.lane.b32.xlu0 %v2593, 48
      %v3386 = vpop.permute.xlu0 %3385
      %3387 = vrot.lane.b32.xlu0 %v2594, 48
      %v3388 = vpop.permute.xlu0 %3387
      %3389 = vrot.lane.b32.xlu0 %v2595, 48
      %v3390 = vpop.permute.xlu0 %3389
      %3391 = vrot.lane.b32.xlu0 %v2596, 48
      %v3392 = vpop.permute.xlu0 %3391
      %3393 = vrot.lane.b32.xlu0 %v2597, 48
      %v3394 = vpop.permute.xlu0 %3393
      %3395 = vrot.lane.b32.xlu0 %v2598, 48
      %v3396 = vpop.permute.xlu0 %3395
      %3397 = vrot.lane.b32.xlu0 %v2599, 48
      %v3398 = vpop.permute.xlu0 %3397
      %3399 = vrot.lane.b32.xlu0 %v2600, 48
      %v3400 = vpop.permute.xlu0 %3399
      %3465 = vrot.lane.b32.xlu0 %v2601, 56
      %v3466 = vpop.permute.xlu0 %3465
      %3467 = vrot.lane.b32.xlu0 %v2602, 56
      %v3468 = vpop.permute.xlu0 %3467
      %3469 = vrot.lane.b32.xlu0 %v2603, 56
      %v3470 = vpop.permute.xlu0 %3469
      %3471 = vrot.lane.b32.xlu0 %v2604, 56
      %v3472 = vpop.permute.xlu0 %3471
      %3473 = vrot.lane.b32.xlu0 %v2605, 56
      %v3474 = vpop.permute.xlu0 %3473
      %3475 = vrot.lane.b32.xlu0 %v2606, 56
      %v3476 = vpop.permute.xlu0 %3475
      %3477 = vrot.lane.b32.xlu0 %v2607, 56
      %v3478 = vpop.permute.xlu0 %3477
      %3479 = vrot.lane.b32.xlu0 %v2608, 56
      %v3480 = vpop.permute.xlu0 %3479
      %3481 = vrot.lane.b32.xlu0 %v2609, 56
      %v3482 = vpop.permute.xlu0 %3481
      %3483 = vrot.lane.b32.xlu0 %v2610, 56
      %v3484 = vpop.permute.xlu0 %3483
      %3485 = vrot.lane.b32.xlu0 %v2611, 56
      %v3486 = vpop.permute.xlu0 %3485
      %3487 = vrot.lane.b32.xlu0 %v2612, 56
      %v3488 = vpop.permute.xlu0 %3487
      %3489 = vrot.lane.b32.xlu0 %v2613, 56
      %v3490 = vpop.permute.xlu0 %3489
      %3491 = vrot.lane.b32.xlu0 %v2614, 56
      %v3492 = vpop.permute.xlu0 %3491
      %3493 = vrot.lane.b32.xlu0 %v2615, 56
      %v3494 = vpop.permute.xlu0 %3493
      %3495 = vrot.lane.b32.xlu0 %v2616, 56
      %v3496 = vpop.permute.xlu0 %3495
      %3497 = vrot.lane.b32.xlu0 %v2617, 56
      %v3498 = vpop.permute.xlu0 %3497
      %3499 = vrot.lane.b32.xlu0 %v2618, 56
      %v3500 = vpop.permute.xlu0 %3499
      %3501 = vrot.lane.b32.xlu0 %v2619, 56
      %v3502 = vpop.permute.xlu0 %3501
      %3503 = vrot.lane.b32.xlu0 %v2620, 56
      %v3504 = vpop.permute.xlu0 %3503
      %3505 = vrot.lane.b32.xlu0 %v2621, 56
      %v3506 = vpop.permute.xlu0 %3505
      %3507 = vrot.lane.b32.xlu0 %v2622, 56
      %v3508 = vpop.permute.xlu0 %3507
      %3509 = vrot.lane.b32.xlu0 %v2623, 56
      %v3510 = vpop.permute.xlu0 %3509
      %3511 = vrot.lane.b32.xlu0 %v2624, 56
      %v3512 = vpop.permute.xlu0 %3511
      %3513 = vrot.lane.b32.xlu0 %v2625, 56
      %v3514 = vpop.permute.xlu0 %3513
      %3515 = vrot.lane.b32.xlu0 %v2626, 56
      %v3516 = vpop.permute.xlu0 %3515
      %3517 = vrot.lane.b32.xlu0 %v2627, 56
      %v3518 = vpop.permute.xlu0 %3517
      %3519 = vrot.lane.b32.xlu0 %v2628, 56
      %v3520 = vpop.permute.xlu0 %3519
      %3521 = vrot.lane.b32.xlu0 %v2629, 56
      %v3522 = vpop.permute.xlu0 %3521
      %3523 = vrot.lane.b32.xlu0 %v2630, 56
      %v3524 = vpop.permute.xlu0 %3523
      %3525 = vrot.lane.b32.xlu0 %v2631, 56
      %v3526 = vpop.permute.xlu0 %3525
      %3527 = vrot.lane.b32.xlu0 %v2632, 56
      %v3528 = vpop.permute.xlu0 %3527
      %3593 = vrot.lane.b32.xlu0 %v2633, 64
      %v3594 = vpop.permute.xlu0 %3593
      %3595 = vrot.lane.b32.xlu0 %v2634, 64
      %v3596 = vpop.permute.xlu0 %3595
      %3597 = vrot.lane.b32.xlu0 %v2635, 64
      %v3598 = vpop.permute.xlu0 %3597
      %3599 = vrot.lane.b32.xlu0 %v2636, 64
      %v3600 = vpop.permute.xlu0 %3599
      %3601 = vrot.lane.b32.xlu0 %v2637, 64
      %v3602 = vpop.permute.xlu0 %3601
      %3603 = vrot.lane.b32.xlu0 %v2638, 64
      %v3604 = vpop.permute.xlu0 %3603
      %3605 = vrot.lane.b32.xlu0 %v2639, 64
      %v3606 = vpop.permute.xlu0 %3605
      %3607 = vrot.lane.b32.xlu0 %v2640, 64
      %v3608 = vpop.permute.xlu0 %3607
      %3609 = vrot.lane.b32.xlu0 %v2641, 64
      %v3610 = vpop.permute.xlu0 %3609
      %3611 = vrot.lane.b32.xlu0 %v2642, 64
      %v3612 = vpop.permute.xlu0 %3611
      %3613 = vrot.lane.b32.xlu0 %v2643, 64
      %v3614 = vpop.permute.xlu0 %3613
      %3615 = vrot.lane.b32.xlu0 %v2644, 64
      %v3616 = vpop.permute.xlu0 %3615
      %3617 = vrot.lane.b32.xlu0 %v2645, 64
      %v3618 = vpop.permute.xlu0 %3617
      %3619 = vrot.lane.b32.xlu0 %v2646, 64
      %v3620 = vpop.permute.xlu0 %3619
      %3621 = vrot.lane.b32.xlu0 %v2647, 64
      %v3622 = vpop.permute.xlu0 %3621
      %3623 = vrot.lane.b32.xlu0 %v2648, 64
      %v3624 = vpop.permute.xlu0 %3623
      %3625 = vrot.lane.b32.xlu0 %v2649, 64
      %v3626 = vpop.permute.xlu0 %3625
      %3627 = vrot.lane.b32.xlu0 %v2650, 64
      %v3628 = vpop.permute.xlu0 %3627
      %3629 = vrot.lane.b32.xlu0 %v2651, 64
      %v3630 = vpop.permute.xlu0 %3629
      %3631 = vrot.lane.b32.xlu0 %v2652, 64
      %v3632 = vpop.permute.xlu0 %3631
      %3633 = vrot.lane.b32.xlu0 %v2653, 64
      %v3634 = vpop.permute.xlu0 %3633
      %3635 = vrot.lane.b32.xlu0 %v2654, 64
      %v3636 = vpop.permute.xlu0 %3635
      %3637 = vrot.lane.b32.xlu0 %v2655, 64
      %v3638 = vpop.permute.xlu0 %3637
      %3639 = vrot.lane.b32.xlu0 %v2656, 64
      %v3640 = vpop.permute.xlu0 %3639
      %3641 = vrot.lane.b32.xlu0 %v2657, 64
      %v3642 = vpop.permute.xlu0 %3641
      %3643 = vrot.lane.b32.xlu0 %v2658, 64
      %v3644 = vpop.permute.xlu0 %3643
      %3645 = vrot.lane.b32.xlu0 %v2659, 64
      %v3646 = vpop.permute.xlu0 %3645
      %3647 = vrot.lane.b32.xlu0 %v2660, 64
      %v3648 = vpop.permute.xlu0 %3647
      %3649 = vrot.lane.b32.xlu0 %v2661, 64
      %v3650 = vpop.permute.xlu0 %3649
      %3651 = vrot.lane.b32.xlu0 %v2662, 64
      %v3652 = vpop.permute.xlu0 %3651
      %3653 = vrot.lane.b32.xlu0 %v2663, 64
      %v3654 = vpop.permute.xlu0 %3653
      %3655 = vrot.lane.b32.xlu0 %v2664, 64
      %v3656 = vpop.permute.xlu0 %3655
      %v3689 = vsel %vm1626, %v2376, %v2698
      %v3690 = vsel %vm1626, %v2377, %v2700
      %v3691 = vsel %vm1626, %v2378, %v2702
      %v3692 = vsel %vm1626, %v2379, %v2704
      %v3693 = vsel %vm1626, %v2380, %v2706
      %v3694 = vsel %vm1626, %v2381, %v2708
      %v3695 = vsel %vm1626, %v2382, %v2710
      %v3696 = vsel %vm1626, %v2383, %v2712
      %v3697 = vsel %vm1626, %v2384, %v2714
      %v3698 = vsel %vm1626, %v2385, %v2716
      %v3699 = vsel %vm1626, %v2386, %v2718
      %v3700 = vsel %vm1626, %v2387, %v2720
      %v3701 = vsel %vm1626, %v2388, %v2722
      %v3702 = vsel %vm1626, %v2389, %v2724
      %v3703 = vsel %vm1626, %v2390, %v2726
      %v3704 = vsel %vm1626, %v2391, %v2728
      %v3705 = vsel %vm1626, %v2392, %v2730
      %v3706 = vsel %vm1626, %v2393, %v2732
      %v3707 = vsel %vm1626, %v2394, %v2734
      %v3708 = vsel %vm1626, %v2395, %v2736
      %v3709 = vsel %vm1626, %v2396, %v2738
      %v3710 = vsel %vm1626, %v2397, %v2740
      %v3711 = vsel %vm1626, %v2398, %v2742
      %v3712 = vsel %vm1626, %v2399, %v2744
      %v3713 = vsel %vm1626, %v2400, %v2746
      %v3714 = vsel %vm1626, %v2401, %v2748
      %v3715 = vsel %vm1626, %v2402, %v2750
      %v3716 = vsel %vm1626, %v2403, %v2752
      %v3717 = vsel %vm1626, %v2404, %v2754
      %v3718 = vsel %vm1626, %v2405, %v2756
      %v3719 = vsel %vm1626, %v2406, %v2758
      %v3720 = vsel %vm1626, %v2407, %v2760
      %v3721 = vsel %vm1692, %v3689, %v2826
      %v3722 = vsel %vm1692, %v3690, %v2828
      %v3723 = vsel %vm1692, %v3691, %v2830
      %v3724 = vsel %vm1692, %v3692, %v2832
      %v3725 = vsel %vm1692, %v3693, %v2834
      %v3726 = vsel %vm1692, %v3694, %v2836
      %v3727 = vsel %vm1692, %v3695, %v2838
      %v3728 = vsel %vm1692, %v3696, %v2840
      %v3729 = vsel %vm1692, %v3697, %v2842
      %v3730 = vsel %vm1692, %v3698, %v2844
      %v3731 = vsel %vm1692, %v3699, %v2846
      %v3732 = vsel %vm1692, %v3700, %v2848
      %v3733 = vsel %vm1692, %v3701, %v2850
      %v3734 = vsel %vm1692, %v3702, %v2852
      %v3735 = vsel %vm1692, %v3703, %v2854
      %v3736 = vsel %vm1692, %v3704, %v2856
      %v3737 = vsel %vm1692, %v3705, %v2858
      %v3738 = vsel %vm1692, %v3706, %v2860
      %v3739 = vsel %vm1692, %v3707, %v2862
      %v3740 = vsel %vm1692, %v3708, %v2864
      %v3741 = vsel %vm1692, %v3709, %v2866
      %v3742 = vsel %vm1692, %v3710, %v2868
      %v3743 = vsel %vm1692, %v3711, %v2870
      %v3744 = vsel %vm1692, %v3712, %v2872
      %v3745 = vsel %vm1692, %v3713, %v2874
      %v3746 = vsel %vm1692, %v3714, %v2876
      %v3747 = vsel %vm1692, %v3715, %v2878
      %v3748 = vsel %vm1692, %v3716, %v2880
      %v3749 = vsel %vm1692, %v3717, %v2882
      %v3750 = vsel %vm1692, %v3718, %v2884
      %v3751 = vsel %vm1692, %v3719, %v2886
      %v3752 = vsel %vm1692, %v3720, %v2888
      %v3753 = vsel %vm1758, %v3721, %v2954
      %v3754 = vsel %vm1758, %v3722, %v2956
      %v3755 = vsel %vm1758, %v3723, %v2958
      %v3756 = vsel %vm1758, %v3724, %v2960
      %v3757 = vsel %vm1758, %v3725, %v2962
      %v3758 = vsel %vm1758, %v3726, %v2964
      %v3759 = vsel %vm1758, %v3727, %v2966
      %v3760 = vsel %vm1758, %v3728, %v2968
      %v3761 = vsel %vm1758, %v3729, %v2970
      %v3762 = vsel %vm1758, %v3730, %v2972
      %v3763 = vsel %vm1758, %v3731, %v2974
      %v3764 = vsel %vm1758, %v3732, %v2976
      %v3765 = vsel %vm1758, %v3733, %v2978
      %v3766 = vsel %vm1758, %v3734, %v2980
      %v3767 = vsel %vm1758, %v3735, %v2982
      %v3768 = vsel %vm1758, %v3736, %v2984
      %v3769 = vsel %vm1758, %v3737, %v2986
      %v3770 = vsel %vm1758, %v3738, %v2988
      %v3771 = vsel %vm1758, %v3739, %v2990
      %v3772 = vsel %vm1758, %v3740, %v2992
      %v3773 = vsel %vm1758, %v3741, %v2994
      %v3774 = vsel %vm1758, %v3742, %v2996
      %v3775 = vsel %vm1758, %v3743, %v2998
      %v3776 = vsel %vm1758, %v3744, %v3000
      %v3777 = vsel %vm1758, %v3745, %v3002
      %v3778 = vsel %vm1758, %v3746, %v3004
      %v3779 = vsel %vm1758, %v3747, %v3006
      %v3780 = vsel %vm1758, %v3748, %v3008
      %v3781 = vsel %vm1758, %v3749, %v3010
      %v3782 = vsel %vm1758, %v3750, %v3012
      %v3783 = vsel %vm1758, %v3751, %v3014
      %v3784 = vsel %vm1758, %v3752, %v3016
      %v3785 = vsel %vm1824, %v3753, %v3082
      %v3786 = vsel %vm1824, %v3754, %v3084
      %v3787 = vsel %vm1824, %v3755, %v3086
      %v3788 = vsel %vm1824, %v3756, %v3088
      %v3789 = vsel %vm1824, %v3757, %v3090
      %v3790 = vsel %vm1824, %v3758, %v3092
      %v3791 = vsel %vm1824, %v3759, %v3094
      %v3792 = vsel %vm1824, %v3760, %v3096
      %v3793 = vsel %vm1824, %v3761, %v3098
      %v3794 = vsel %vm1824, %v3762, %v3100
      %v3795 = vsel %vm1824, %v3763, %v3102
      %v3796 = vsel %vm1824, %v3764, %v3104
      %v3797 = vsel %vm1824, %v3765, %v3106
      %v3798 = vsel %vm1824, %v3766, %v3108
      %v3799 = vsel %vm1824, %v3767, %v3110
      %v3800 = vsel %vm1824, %v3768, %v3112
      %v3801 = vsel %vm1824, %v3769, %v3114
      %v3802 = vsel %vm1824, %v3770, %v3116
      %v3803 = vsel %vm1824, %v3771, %v3118
      %v3804 = vsel %vm1824, %v3772, %v3120
      %v3805 = vsel %vm1824, %v3773, %v3122
      %v3806 = vsel %vm1824, %v3774, %v3124
      %v3807 = vsel %vm1824, %v3775, %v3126
      %v3808 = vsel %vm1824, %v3776, %v3128
      %v3809 = vsel %vm1824, %v3777, %v3130
      %v3810 = vsel %vm1824, %v3778, %v3132
      %v3811 = vsel %vm1824, %v3779, %v3134
      %v3812 = vsel %vm1824, %v3780, %v3136
      %v3813 = vsel %vm1824, %v3781, %v3138
      %v3814 = vsel %vm1824, %v3782, %v3140
      %v3815 = vsel %vm1824, %v3783, %v3142
      %v3816 = vsel %vm1824, %v3784, %v3144
      %vm3817 = vcmask 326656
      %v3818 = vsel %vm3817, %v3785, %v3210
      %v3819 = vsel %vm3817, %v3786, %v3212
      %v3820 = vsel %vm3817, %v3787, %v3214
      %v3821 = vsel %vm3817, %v3788, %v3216
      %v3822 = vsel %vm3817, %v3789, %v3218
      %v3823 = vsel %vm3817, %v3790, %v3220
      %v3824 = vsel %vm3817, %v3791, %v3222
      %v3825 = vsel %vm3817, %v3792, %v3224
      %v3826 = vsel %vm3817, %v3793, %v3226
      %v3827 = vsel %vm3817, %v3794, %v3228
      %v3828 = vsel %vm3817, %v3795, %v3230
      %v3829 = vsel %vm3817, %v3796, %v3232
      %v3830 = vsel %vm3817, %v3797, %v3234
      %v3831 = vsel %vm3817, %v3798, %v3236
      %v3832 = vsel %vm3817, %v3799, %v3238
      %v3833 = vsel %vm3817, %v3800, %v3240
      %v3834 = vsel %vm3817, %v3801, %v3242
      %v3835 = vsel %vm3817, %v3802, %v3244
      %v3836 = vsel %vm3817, %v3803, %v3246
      %v3837 = vsel %vm3817, %v3804, %v3248
      %v3838 = vsel %vm3817, %v3805, %v3250
      %v3839 = vsel %vm3817, %v3806, %v3252
      %v3840 = vsel %vm3817, %v3807, %v3254
      %v3841 = vsel %vm3817, %v3808, %v3256
      %v3842 = vsel %vm3817, %v3809, %v3258
      %v3843 = vsel %vm3817, %v3810, %v3260
      %v3844 = vsel %vm3817, %v3811, %v3262
      %v3845 = vsel %vm3817, %v3812, %v3264
      %v3846 = vsel %vm3817, %v3813, %v3266
      %v3847 = vsel %vm3817, %v3814, %v3268
      %v3848 = vsel %vm3817, %v3815, %v3270
      %v3849 = vsel %vm3817, %v3816, %v3272
      %vm3850 = vcmask 392192
      %v3851 = vsel %vm3850, %v3818, %v3338
      %v3852 = vsel %vm3850, %v3819, %v3340
      %v3853 = vsel %vm3850, %v3820, %v3342
      %v3854 = vsel %vm3850, %v3821, %v3344
      %v3855 = vsel %vm3850, %v3822, %v3346
      %v3856 = vsel %vm3850, %v3823, %v3348
      %v3857 = vsel %vm3850, %v3824, %v3350
      %v3858 = vsel %vm3850, %v3825, %v3352
      %v3859 = vsel %vm3850, %v3826, %v3354
      %v3860 = vsel %vm3850, %v3827, %v3356
      %v3861 = vsel %vm3850, %v3828, %v3358
      %v3862 = vsel %vm3850, %v3829, %v3360
      %v3863 = vsel %vm3850, %v3830, %v3362
      %v3864 = vsel %vm3850, %v3831, %v3364
      %v3865 = vsel %vm3850, %v3832, %v3366
      %v3866 = vsel %vm3850, %v3833, %v3368
      %v3867 = vsel %vm3850, %v3834, %v3370
      %v3868 = vsel %vm3850, %v3835, %v3372
      %v3869 = vsel %vm3850, %v3836, %v3374
      %v3870 = vsel %vm3850, %v3837, %v3376
      %v3871 = vsel %vm3850, %v3838, %v3378
      %v3872 = vsel %vm3850, %v3839, %v3380
      %v3873 = vsel %vm3850, %v3840, %v3382
      %v3874 = vsel %vm3850, %v3841, %v3384
      %v3875 = vsel %vm3850, %v3842, %v3386
      %v3876 = vsel %vm3850, %v3843, %v3388
      %v3877 = vsel %vm3850, %v3844, %v3390
      %v3878 = vsel %vm3850, %v3845, %v3392
      %v3879 = vsel %vm3850, %v3846, %v3394
      %v3880 = vsel %vm3850, %v3847, %v3396
      %v3881 = vsel %vm3850, %v3848, %v3398
      %v3882 = vsel %vm3850, %v3849, %v3400
      %vm3883 = vcmask 457728
      %v3884 = vsel %vm3883, %v3851, %v3466
      %v3885 = vsel %vm3883, %v3852, %v3468
      %v3886 = vsel %vm3883, %v3853, %v3470
      %v3887 = vsel %vm3883, %v3854, %v3472
      %v3888 = vsel %vm3883, %v3855, %v3474
      %v3889 = vsel %vm3883, %v3856, %v3476
      %v3890 = vsel %vm3883, %v3857, %v3478
      %v3891 = vsel %vm3883, %v3858, %v3480
      %v3892 = vsel %vm3883, %v3859, %v3482
      %v3893 = vsel %vm3883, %v3860, %v3484
      %v3894 = vsel %vm3883, %v3861, %v3486
      %v3895 = vsel %vm3883, %v3862, %v3488
      %v3896 = vsel %vm3883, %v3863, %v3490
      %v3897 = vsel %vm3883, %v3864, %v3492
      %v3898 = vsel %vm3883, %v3865, %v3494
      %v3899 = vsel %vm3883, %v3866, %v3496
      %v3900 = vsel %vm3883, %v3867, %v3498
      %v3901 = vsel %vm3883, %v3868, %v3500
      %v3902 = vsel %vm3883, %v3869, %v3502
      %v3903 = vsel %vm3883, %v3870, %v3504
      %v3904 = vsel %vm3883, %v3871, %v3506
      %v3905 = vsel %vm3883, %v3872, %v3508
      %v3906 = vsel %vm3883, %v3873, %v3510
      %v3907 = vsel %vm3883, %v3874, %v3512
      %v3908 = vsel %vm3883, %v3875, %v3514
      %v3909 = vsel %vm3883, %v3876, %v3516
      %v3910 = vsel %vm3883, %v3877, %v3518
      %v3911 = vsel %vm3883, %v3878, %v3520
      %v3912 = vsel %vm3883, %v3879, %v3522
      %v3913 = vsel %vm3883, %v3880, %v3524
      %v3914 = vsel %vm3883, %v3881, %v3526
      %v3915 = vsel %vm3883, %v3882, %v3528
      %vm3916 = vcmask 523264
      %v3917 = vsel %vm3916, %v3884, %v3594
      %v3918 = vsel %vm3916, %v3885, %v3596
      %v3919 = vsel %vm3916, %v3886, %v3598
      %v3920 = vsel %vm3916, %v3887, %v3600
      %v3921 = vsel %vm3916, %v3888, %v3602
      %v3922 = vsel %vm3916, %v3889, %v3604
      %v3923 = vsel %vm3916, %v3890, %v3606
      %v3924 = vsel %vm3916, %v3891, %v3608
      %v3925 = vsel %vm3916, %v3892, %v3610
      %v3926 = vsel %vm3916, %v3893, %v3612
      %v3927 = vsel %vm3916, %v3894, %v3614
      %v3928 = vsel %vm3916, %v3895, %v3616
      %v3929 = vsel %vm3916, %v3896, %v3618
      %v3930 = vsel %vm3916, %v3897, %v3620
      %v3931 = vsel %vm3916, %v3898, %v3622
      %v3932 = vsel %vm3916, %v3899, %v3624
      %v3933 = vsel %vm3916, %v3900, %v3626
      %v3934 = vsel %vm3916, %v3901, %v3628
      %v3935 = vsel %vm3916, %v3902, %v3630
      %v3936 = vsel %vm3916, %v3903, %v3632
      %v3937 = vsel %vm3916, %v3904, %v3634
      %v3938 = vsel %vm3916, %v3905, %v3636
      %v3939 = vsel %vm3916, %v3906, %v3638
      %v3940 = vsel %vm3916, %v3907, %v3640
      %v3941 = vsel %vm3916, %v3908, %v3642
      %v3942 = vsel %vm3916, %v3909, %v3644
      %v3943 = vsel %vm3916, %v3910, %v3646
      %v3944 = vsel %vm3916, %v3911, %v3648
      %v3945 = vsel %vm3916, %v3912, %v3650
      %v3946 = vsel %vm3916, %v3913, %v3652
      %v3947 = vsel %vm3916, %v3914, %v3654
      %v3948 = vsel %vm3916, %v3915, %v3656
      %v3949 = vld [vmem:[%s4] sm:$0xff]
      %v3950 = vld [vmem:[%s4 + $0x8] sm:$0xff]
      %v3951 = vld [vmem:[%s4 + $0x10] sm:$0xff]
      %v3952 = vld [vmem:[%s4 + $0x18] sm:$0xff]
      %v3953 = vld [vmem:[%s4 + $0x20] sm:$0xff]
      %v3954 = vld [vmem:[%s4 + $0x28] sm:$0xff]
      %v3955 = vld [vmem:[%s4 + $0x30] sm:$0xff]
      %v3956 = vld [vmem:[%s4 + $0x38] sm:$0xff]
      %v3957 = vld [vmem:[%s4 + $0x40] sm:$0xff]
      %vm3958 = vcmask 588800
      %v3960 = vsel %vm3958, %v3917, 0
      %v3963 = vsel %vm3958, %v3918, 0
      %v3966 = vsel %vm3958, %v3919, 0
      %v3969 = vsel %vm3958, %v3920, 0
      %v3972 = vsel %vm3958, %v3921, 0
      %v3975 = vsel %vm3958, %v3922, 0
      %v3978 = vsel %vm3958, %v3923, 0
      %v3981 = vsel %vm3958, %v3924, 0
      %v3984 = vsel %vm3958, %v3925, 0
      %v3987 = vsel %vm3958, %v3926, 0
      %v3990 = vsel %vm3958, %v3927, 0
      %v3993 = vsel %vm3958, %v3928, 0
      %v3996 = vsel %vm3958, %v3929, 0
      %v3999 = vsel %vm3958, %v3930, 0
      %v4002 = vsel %vm3958, %v3931, 0
      %v4005 = vsel %vm3958, %v3932, 0
      %v4008 = vsel %vm3958, %v3933, 0
      %v4011 = vsel %vm3958, %v3934, 0
      %v4014 = vsel %vm3958, %v3935, 0
      %v4017 = vsel %vm3958, %v3936, 0
      %v4020 = vsel %vm3958, %v3937, 0
      %v4023 = vsel %vm3958, %v3938, 0
      %v4026 = vsel %vm3958, %v3939, 0
      %v4029 = vsel %vm3958, %v3940, 0
      %v4032 = vsel %vm3958, %v3941, 0
      %v4035 = vsel %vm3958, %v3942, 0
      %v4038 = vsel %vm3958, %v3943, 0
      %v4041 = vsel %vm3958, %v3944, 0
      %v4044 = vsel %vm3958, %v3945, 0
      %v4047 = vsel %vm3958, %v3946, 0
      %v4050 = vsel %vm3958, %v3947, 0
      %v4053 = vsel %vm3958, %v3948, 0
      %4055 = vmatprep.subr.mxu0 0.0
      %4056 = vmatpush1.msra.mxu0 0.0
      %4057 = vmatprep.subr.mxu0 0.0
      %4058 = vmatpush1.msra.mxu0 0.0
      %4059 = vmatprep.subr.mxu0 0.0
      %4060 = vmatpush1.msra.mxu0 0.0
      %4061 = vmatprep.subr.mxu0 0.0
      %4062 = vmatpush1.msra.mxu0 0.0
      %4063 = vmatprep.subr.mxu0 0.0
      %4064 = vmatpush1.msra.mxu0 0.0
      %4065 = vmatprep.subr.mxu0 0.0
      %4066 = vmatpush1.msra.mxu0 0.0
      %4067 = vmatprep.subr.mxu0 0.0
      %4068 = vmatpush1.msra.mxu0 0.0
      %4069 = vmatprep.subr.mxu0 0.0
      %4070 = vmatpush1.msra.mxu0 %v3957
      %4071 = vmatprep.subr.mxu0 0.0
      %4072 = vmatpush1.msra.mxu0 %v3956
      %4073 = vmatprep.subr.mxu0 0.0
      %4074 = vmatpush1.msra.mxu0 %v3955
      %4075 = vmatprep.subr.mxu0 0.0
      %4076 = vmatpush1.msra.mxu0 %v3954
      %4077 = vmatprep.subr.mxu0 0.0
      %4078 = vmatpush1.msra.mxu0 %v3953
      %4079 = vmatprep.subr.mxu0 0.0
      %4080 = vmatpush1.msra.mxu0 %v3952
      %4081 = vmatprep.subr.mxu0 0.0
      %4082 = vmatpush1.msra.mxu0 %v3951
      %4083 = vmatprep.subr.mxu0 0.0
      %4084 = vmatpush1.msra.mxu0 %v3950
      %4085 = vmatprep.subr.mxu0 0.0
      %4086 = vmatpush1.msra.mxu0 %v3949
      %4087 = vmatprep.subr.mxu0 0.0
      %4088 = vmatpush2.msra.mxu0 0.0
      %4089 = vmatprep.subr.mxu0 0.0
      %4090 = vmatpush2.msra.mxu0 0.0
      %4091 = vmatprep.subr.mxu0 0.0
      %4092 = vmatpush2.msra.mxu0 0.0
      %4093 = vmatprep.subr.mxu0 0.0
      %4094 = vmatpush2.msra.mxu0 0.0
      %4095 = vmatprep.subr.mxu0 0.0
      %4096 = vmatpush2.msra.mxu0 0.0
      %4097 = vmatprep.subr.mxu0 0.0
      %4098 = vmatpush2.msra.mxu0 0.0
      %4099 = vmatprep.subr.mxu0 0.0
      %4100 = vmatpush2.msra.mxu0 0.0
      %4101 = vmatprep.subr.mxu0 0.0
      %4102 = vmatpush2.msra.mxu0 0.0
      %4103 = vmatprep.subr.mxu0 0.0
      %4104 = vmatpush2.msra.mxu0 0.0
      %4105 = vmatprep.subr.mxu0 0.0
      %4106 = vmatpush2.msra.mxu0 0.0
      %4107 = vmatprep.subr.mxu0 0.0
      %4108 = vmatpush2.msra.mxu0 0.0
      %4109 = vmatprep.subr.mxu0 0.0
      %4110 = vmatpush2.msra.mxu0 0.0
      %4111 = vmatprep.subr.mxu0 0.0
      %4112 = vmatpush2.msra.mxu0 0.0
      %4113 = vmatprep.subr.mxu0 0.0
      %4114 = vmatpush2.msra.mxu0 0.0
      %4115 = vmatprep.subr.mxu0 0.0
      %4116 = vmatpush2.msra.mxu0 0.0
      %4117 = vmatprep.subr.mxu0 0.0
      %4118 = vmatpush2.msra.mxu0 0.0
      %4119 = vmatprep.mubr.f32.mxu0 0.0
      %4120 = vmatmul.mubr.f32.gmra.mxu0 %v3960
      %v4121 = vpop.f32.mrf.mxu0
      %v4122 = vadd.f32 0.0, %v4121
      %v4123 = vpop.f32.mrf.mxu0
      %4124 = vmatprep.mubr.f32.mxu0 0.0
      %4125 = vmatmul.mubr.f32.gmra.mxu0 %v3963
      %v4126 = vpop.f32.mrf.mxu0
      %v4127 = vadd.f32 0.0, %v4126
      %v4128 = vpop.f32.mrf.mxu0
      %4129 = vmatprep.mubr.f32.mxu0 0.0
      %4130 = vmatmul.mubr.f32.gmra.mxu0 %v3966
      %v4131 = vpop.f32.mrf.mxu0
      %v4132 = vadd.f32 0.0, %v4131
      %v4133 = vpop.f32.mrf.mxu0
      %4134 = vmatprep.mubr.f32.mxu0 0.0
      %4135 = vmatmul.mubr.f32.gmra.mxu0 %v3969
      %v4136 = vpop.f32.mrf.mxu0
      %v4137 = vadd.f32 0.0, %v4136
      %v4138 = vpop.f32.mrf.mxu0
      %4139 = vmatprep.mubr.f32.mxu0 0.0
      %4140 = vmatmul.mubr.f32.gmra.mxu0 %v3972
      %v4141 = vpop.f32.mrf.mxu0
      %v4142 = vadd.f32 0.0, %v4141
      %v4143 = vpop.f32.mrf.mxu0
      %4144 = vmatprep.mubr.f32.mxu0 0.0
      %4145 = vmatmul.mubr.f32.gmra.mxu0 %v3975
      %v4146 = vpop.f32.mrf.mxu0
      %v4147 = vadd.f32 0.0, %v4146
      %v4148 = vpop.f32.mrf.mxu0
      %4149 = vmatprep.mubr.f32.mxu0 0.0
      %4150 = vmatmul.mubr.f32.gmra.mxu0 %v3978
      %v4151 = vpop.f32.mrf.mxu0
      %v4152 = vadd.f32 0.0, %v4151
      %v4153 = vpop.f32.mrf.mxu0
      %4154 = vmatprep.mubr.f32.mxu0 0.0
      %4155 = vmatmul.mubr.f32.gmra.mxu0 %v3981
      %v4156 = vpop.f32.mrf.mxu0
      %v4157 = vadd.f32 0.0, %v4156
      %v4158 = vpop.f32.mrf.mxu0
      %4159 = vmatprep.mubr.f32.mxu0 0.0
      %4160 = vmatmul.mubr.f32.gmra.mxu0 %v3984
      %v4161 = vpop.f32.mrf.mxu0
      %v4162 = vadd.f32 0.0, %v4161
      %v4163 = vpop.f32.mrf.mxu0
      %4164 = vmatprep.mubr.f32.mxu0 0.0
      %4165 = vmatmul.mubr.f32.gmra.mxu0 %v3987
      %v4166 = vpop.f32.mrf.mxu0
      %v4167 = vadd.f32 0.0, %v4166
      %v4168 = vpop.f32.mrf.mxu0
      %4169 = vmatprep.mubr.f32.mxu0 0.0
      %4170 = vmatmul.mubr.f32.gmra.mxu0 %v3990
      %v4171 = vpop.f32.mrf.mxu0
      %v4172 = vadd.f32 0.0, %v4171
      %v4173 = vpop.f32.mrf.mxu0
      %4174 = vmatprep.mubr.f32.mxu0 0.0
      %4175 = vmatmul.mubr.f32.gmra.mxu0 %v3993
      %v4176 = vpop.f32.mrf.mxu0
      %v4177 = vadd.f32 0.0, %v4176
      %v4178 = vpop.f32.mrf.mxu0
      %4179 = vmatprep.mubr.f32.mxu0 0.0
      %4180 = vmatmul.mubr.f32.gmra.mxu0 %v3996
      %v4181 = vpop.f32.mrf.mxu0
      %v4182 = vadd.f32 0.0, %v4181
      %v4183 = vpop.f32.mrf.mxu0
      %4184 = vmatprep.mubr.f32.mxu0 0.0
      %4185 = vmatmul.mubr.f32.gmra.mxu0 %v3999
      %v4186 = vpop.f32.mrf.mxu0
      %v4187 = vadd.f32 0.0, %v4186
      %v4188 = vpop.f32.mrf.mxu0
      %4189 = vmatprep.mubr.f32.mxu0 0.0
      %4190 = vmatmul.mubr.f32.gmra.mxu0 %v4002
      %v4191 = vpop.f32.mrf.mxu0
      %v4192 = vadd.f32 0.0, %v4191
      %v4193 = vpop.f32.mrf.mxu0
      %4194 = vmatprep.mubr.f32.mxu0 0.0
      %4195 = vmatmul.mubr.f32.gmra.mxu0 %v4005
      %v4196 = vpop.f32.mrf.mxu0
      %v4197 = vadd.f32 0.0, %v4196
      %v4198 = vpop.f32.mrf.mxu0
      %4199 = vmatprep.mubr.f32.mxu0 0.0
      %4200 = vmatmul.mubr.f32.gmra.mxu0 %v4008
      %v4201 = vpop.f32.mrf.mxu0
      %v4202 = vadd.f32 0.0, %v4201
      %v4203 = vpop.f32.mrf.mxu0
      %4204 = vmatprep.mubr.f32.mxu0 0.0
      %4205 = vmatmul.mubr.f32.gmra.mxu0 %v4011
      %v4206 = vpop.f32.mrf.mxu0
      %v4207 = vadd.f32 0.0, %v4206
      %v4208 = vpop.f32.mrf.mxu0
      %4209 = vmatprep.mubr.f32.mxu0 0.0
      %4210 = vmatmul.mubr.f32.gmra.mxu0 %v4014
      %v4211 = vpop.f32.mrf.mxu0
      %v4212 = vadd.f32 0.0, %v4211
      %v4213 = vpop.f32.mrf.mxu0
      %4214 = vmatprep.mubr.f32.mxu0 0.0
      %4215 = vmatmul.mubr.f32.gmra.mxu0 %v4017
      %v4216 = vpop.f32.mrf.mxu0
      %v4217 = vadd.f32 0.0, %v4216
      %v4218 = vpop.f32.mrf.mxu0
      %4219 = vmatprep.mubr.f32.mxu0 0.0
      %4220 = vmatmul.mubr.f32.gmra.mxu0 %v4020
      %v4221 = vpop.f32.mrf.mxu0
      %v4222 = vadd.f32 0.0, %v4221
      %v4223 = vpop.f32.mrf.mxu0
      %4224 = vmatprep.mubr.f32.mxu0 0.0
      %4225 = vmatmul.mubr.f32.gmra.mxu0 %v4023
      %v4226 = vpop.f32.mrf.mxu0
      %v4227 = vadd.f32 0.0, %v4226
      %v4228 = vpop.f32.mrf.mxu0
      %4229 = vmatprep.mubr.f32.mxu0 0.0
      %4230 = vmatmul.mubr.f32.gmra.mxu0 %v4026
      %v4231 = vpop.f32.mrf.mxu0
      %v4232 = vadd.f32 0.0, %v4231
      %v4233 = vpop.f32.mrf.mxu0
      %4234 = vmatprep.mubr.f32.mxu0 0.0
      %4235 = vmatmul.mubr.f32.gmra.mxu0 %v4029
      %v4236 = vpop.f32.mrf.mxu0
      %v4237 = vadd.f32 0.0, %v4236
      %v4238 = vpop.f32.mrf.mxu0
      %4239 = vmatprep.mubr.f32.mxu0 0.0
      %4240 = vmatmul.mubr.f32.gmra.mxu0 %v4032
      %v4241 = vpop.f32.mrf.mxu0
      %v4242 = vadd.f32 0.0, %v4241
      %v4243 = vpop.f32.mrf.mxu0
      %4244 = vmatprep.mubr.f32.mxu0 0.0
      %4245 = vmatmul.mubr.f32.gmra.mxu0 %v4035
      %v4246 = vpop.f32.mrf.mxu0
      %v4247 = vadd.f32 0.0, %v4246
      %v4248 = vpop.f32.mrf.mxu0
      %4249 = vmatprep.mubr.f32.mxu0 0.0
      %4250 = vmatmul.mubr.f32.gmra.mxu0 %v4038
      %v4251 = vpop.f32.mrf.mxu0
      %v4252 = vadd.f32 0.0, %v4251
      %v4253 = vpop.f32.mrf.mxu0
      %4254 = vmatprep.mubr.f32.mxu0 0.0
      %4255 = vmatmul.mubr.f32.gmra.mxu0 %v4041
      %v4256 = vpop.f32.mrf.mxu0
      %v4257 = vadd.f32 0.0, %v4256
      %v4258 = vpop.f32.mrf.mxu0
      %4259 = vmatprep.mubr.f32.mxu0 0.0
      %4260 = vmatmul.mubr.f32.gmra.mxu0 %v4044
      %v4261 = vpop.f32.mrf.mxu0
      %v4262 = vadd.f32 0.0, %v4261
      %v4263 = vpop.f32.mrf.mxu0
      %4264 = vmatprep.mubr.f32.mxu0 0.0
      %4265 = vmatmul.mubr.f32.gmra.mxu0 %v4047
      %v4266 = vpop.f32.mrf.mxu0
      %v4267 = vadd.f32 0.0, %v4266
      %v4268 = vpop.f32.mrf.mxu0
      %4269 = vmatprep.mubr.f32.mxu0 0.0
      %4270 = vmatmul.mubr.f32.gmra.mxu0 %v4050
      %v4271 = vpop.f32.mrf.mxu0
      %v4272 = vadd.f32 0.0, %v4271
      %v4273 = vpop.f32.mrf.mxu0
      %4274 = vmatprep.mubr.f32.mxu0 0.0
      %4275 = vmatmul.mubr.f32.gmra.mxu0 %v4053
      %v4276 = vpop.f32.mrf.mxu0
      %v4277 = vadd.f32 0.0, %v4276
      %v4278 = vpop.f32.mrf.mxu0
      %4279 = vdwg.mxu0
      %v4280 = vld [vmem:[%s5] sm:$0x1]
      %v4282 = vlaneseq
      %v4283 = vshrl.u32 %v4282, 7
      %v4284 = vsub.s32 0, %v4283
      %v4285 = vrot.slane %v4280, %v4284
      %v4287 = vmul.f32 %v4122, %v4285
      %v4288 = vmul.f32 %v4127, %v4285
      %v4289 = vmul.f32 %v4132, %v4285
      %v4290 = vmul.f32 %v4137, %v4285
      %v4291 = vmul.f32 %v4142, %v4285
      %v4292 = vmul.f32 %v4147, %v4285
      %v4293 = vmul.f32 %v4152, %v4285
      %v4294 = vmul.f32 %v4157, %v4285
      %v4295 = vmul.f32 %v4162, %v4285
      %v4296 = vmul.f32 %v4167, %v4285
      %v4297 = vmul.f32 %v4172, %v4285
      %v4298 = vmul.f32 %v4177, %v4285
      %v4299 = vmul.f32 %v4182, %v4285
      %v4300 = vmul.f32 %v4187, %v4285
      %v4301 = vmul.f32 %v4192, %v4285
      %v4302 = vmul.f32 %v4197, %v4285
      %v4303 = vmul.f32 %v4202, %v4285
      %v4304 = vmul.f32 %v4207, %v4285
      %v4305 = vmul.f32 %v4212, %v4285
      %v4306 = vmul.f32 %v4217, %v4285
      %v4307 = vmul.f32 %v4222, %v4285
      %v4308 = vmul.f32 %v4227, %v4285
      %v4309 = vmul.f32 %v4232, %v4285
      %v4310 = vmul.f32 %v4237, %v4285
      %v4311 = vmul.f32 %v4242, %v4285
      %v4312 = vmul.f32 %v4247, %v4285
      %v4313 = vmul.f32 %v4252, %v4285
      %v4314 = vmul.f32 %v4257, %v4285
      %v4315 = vmul.f32 %v4262, %v4285
      %v4316 = vmul.f32 %v4267, %v4285
      %v4317 = vmul.f32 %v4272, %v4285
      %v4318 = vmul.f32 %v4277, %v4285
      %v4319 = vld [vmem:[%s6] sm:$0x1]
      %v4321 = vlaneseq
      %v4322 = vshrl.u32 %v4321, 7
      %v4323 = vsub.s32 0, %v4322
      %v4324 = vrot.slane %v4319, %v4323
      %v4326 = vadd.f32 %v4287, %v4324
      %v4327 = vadd.f32 %v4288, %v4324
      %v4328 = vadd.f32 %v4289, %v4324
      %v4329 = vadd.f32 %v4290, %v4324
      %v4330 = vadd.f32 %v4291, %v4324
      %v4331 = vadd.f32 %v4292, %v4324
      %v4332 = vadd.f32 %v4293, %v4324
      %v4333 = vadd.f32 %v4294, %v4324
      %v4334 = vadd.f32 %v4295, %v4324
      %v4335 = vadd.f32 %v4296, %v4324
      %v4336 = vadd.f32 %v4297, %v4324
      %v4337 = vadd.f32 %v4298, %v4324
      %v4338 = vadd.f32 %v4299, %v4324
      %v4339 = vadd.f32 %v4300, %v4324
      %v4340 = vadd.f32 %v4301, %v4324
      %v4341 = vadd.f32 %v4302, %v4324
      %v4342 = vadd.f32 %v4303, %v4324
      %v4343 = vadd.f32 %v4304, %v4324
      %v4344 = vadd.f32 %v4305, %v4324
      %v4345 = vadd.f32 %v4306, %v4324
      %v4346 = vadd.f32 %v4307, %v4324
      %v4347 = vadd.f32 %v4308, %v4324
      %v4348 = vadd.f32 %v4309, %v4324
      %v4349 = vadd.f32 %v4310, %v4324
      %v4350 = vadd.f32 %v4311, %v4324
      %v4351 = vadd.f32 %v4312, %v4324
      %v4352 = vadd.f32 %v4313, %v4324
      %v4353 = vadd.f32 %v4314, %v4324
      %v4354 = vadd.f32 %v4315, %v4324
      %v4355 = vadd.f32 %v4316, %v4324
      %v4356 = vadd.f32 %v4317, %v4324
      %v4357 = vadd.f32 %v4318, %v4324
      %v4358 = vmax.f32 %v4326, 0.0
      %v4359 = vmax.f32 %v4327, 0.0
      %v4360 = vmax.f32 %v4328, 0.0
      %v4361 = vmax.f32 %v4329, 0.0
      %v4362 = vmax.f32 %v4330, 0.0
      %v4363 = vmax.f32 %v4331, 0.0
      %v4364 = vmax.f32 %v4332, 0.0
      %v4365 = vmax.f32 %v4333, 0.0
      %v4366 = vmax.f32 %v4334, 0.0
      %v4367 = vmax.f32 %v4335, 0.0
      %v4368 = vmax.f32 %v4336, 0.0
      %v4369 = vmax.f32 %v4337, 0.0
      %v4370 = vmax.f32 %v4338, 0.0
      %v4371 = vmax.f32 %v4339, 0.0
      %v4372 = vmax.f32 %v4340, 0.0
      %v4373 = vmax.f32 %v4341, 0.0
      %v4374 = vmax.f32 %v4342, 0.0
      %v4375 = vmax.f32 %v4343, 0.0
      %v4376 = vmax.f32 %v4344, 0.0
      %v4377 = vmax.f32 %v4345, 0.0
      %v4378 = vmax.f32 %v4346, 0.0
      %v4379 = vmax.f32 %v4347, 0.0
      %v4380 = vmax.f32 %v4348, 0.0
      %v4381 = vmax.f32 %v4349, 0.0
      %v4382 = vmax.f32 %v4350, 0.0
      %v4383 = vmax.f32 %v4351, 0.0
      %v4384 = vmax.f32 %v4352, 0.0
      %v4385 = vmax.f32 %v4353, 0.0
      %v4386 = vmax.f32 %v4354, 0.0
      %v4387 = vmax.f32 %v4355, 0.0
      %v4388 = vmax.f32 %v4356, 0.0
      %v4389 = vmax.f32 %v4357, 0.0
      %4390 = vst.msk [vmem:[%s278] sm:$0xff] %vm1626, %v4358
      %4391 = vst.msk [vmem:[%s278 + $0x8] sm:$0xff] %vm1626, %v4359
      %4392 = vst.msk [vmem:[%s278 + $0x10] sm:$0xff] %vm1626, %v4360
      %4393 = vst.msk [vmem:[%s278 + $0x18] sm:$0xff] %vm1626, %v4361
      %4394 = vst.msk [vmem:[%s278 + $0x20] sm:$0xff] %vm1626, %v4362
      %4395 = vst.msk [vmem:[%s278 + $0x28] sm:$0xff] %vm1626, %v4363
      %4396 = vst.msk [vmem:[%s278 + $0x30] sm:$0xff] %vm1626, %v4364
      %4397 = vst.msk [vmem:[%s278 + $0x38] sm:$0xff] %vm1626, %v4365
      %4398 = vst.msk [vmem:[%s278 + $0x40] sm:$0xff] %vm1626, %v4366
      %4399 = vst.msk [vmem:[%s278 + $0x48] sm:$0xff] %vm1626, %v4367
      %4400 = vst.msk [vmem:[%s278 + $0x50] sm:$0xff] %vm1626, %v4368
      %4401 = vst.msk [vmem:[%s278 + $0x58] sm:$0xff] %vm1626, %v4369
      %4402 = vst.msk [vmem:[%s278 + $0x60] sm:$0xff] %vm1626, %v4370
      %4403 = vst.msk [vmem:[%s278 + $0x68] sm:$0xff] %vm1626, %v4371
      %4404 = vst.msk [vmem:[%s278 + $0x70] sm:$0xff] %vm1626, %v4372
      %4405 = vst.msk [vmem:[%s278 + $0x78] sm:$0xff] %vm1626, %v4373
      %4406 = vst.msk [vmem:[%s278 + $0x80] sm:$0xff] %vm1626, %v4374
      %4407 = vst.msk [vmem:[%s278 + $0x88] sm:$0xff] %vm1626, %v4375
      %4408 = vst.msk [vmem:[%s278 + $0x90] sm:$0xff] %vm1626, %v4376
      %4409 = vst.msk [vmem:[%s278 + $0x98] sm:$0xff] %vm1626, %v4377
      %4410 = vst.msk [vmem:[%s278 + $0xa0] sm:$0xff] %vm1626, %v4378
      %4411 = vst.msk [vmem:[%s278 + $0xa8] sm:$0xff] %vm1626, %v4379
      %4412 = vst.msk [vmem:[%s278 + $0xb0] sm:$0xff] %vm1626, %v4380
      %4413 = vst.msk [vmem:[%s278 + $0xb8] sm:$0xff] %vm1626, %v4381
      %4414 = vst.msk [vmem:[%s278 + $0xc0] sm:$0xff] %vm1626, %v4382
      %4415 = vst.msk [vmem:[%s278 + $0xc8] sm:$0xff] %vm1626, %v4383
      %4416 = vst.msk [vmem:[%s278 + $0xd0] sm:$0xff] %vm1626, %v4384
      %4417 = vst.msk [vmem:[%s278 + $0xd8] sm:$0xff] %vm1626, %v4385
      %4418 = vst.msk [vmem:[%s278 + $0xe0] sm:$0xff] %vm1626, %v4386
      %4419 = vst.msk [vmem:[%s278 + $0xe8] sm:$0xff] %vm1626, %v4387
      %4420 = vst.msk [vmem:[%s278 + $0xf0] sm:$0xff] %vm1626, %v4388
      %4421 = vst.msk [vmem:[%s278 + $0xf8] sm:$0xff] %vm1626, %v4389
      %p4422 = scmp.lt.s32.totalorder %s18, 1
      %s4423 = scalar_select %p4422, %s18, 1
      %s4424 = smul.addr %s4423, 32
      %s4425 = smul.addr %s4424, 8
      %s4426 = scalar_lea.vmem %s7, %s4425
      // Predicated region
      $region49: #{unet_block_forward.1} parent=47 // pred_check
        %p4427 = pneg %p188
      $region50: #{unet_block_forward.1} parent=47 // pred_check_branch
        %4429 = sbr.rel (%p4427) target = $region52
      $region51: #{unet_block_forward.1} parent=47 // pred_region
        _
      $region52: #{unet_block_forward.1} parent=47 // pred_fallthru
        _
    $region48: #{unet_block_forward.1} parent=5 // pred_fallthru
      _
    %p4430 = scmp.le.s32.totalorder 2, %s13
    // Predicated region
    $region53: #{unet_block_forward.1} parent=5 // pred_check
      %p4431 = pneg %p4430
    $region54: #{unet_block_forward.1} parent=5 // pred_check_branch
      %4433 = sbr.rel (%p4431) target = $region56
    $region55: #{unet_block_forward.1} parent=5 // pred_region
      %s4434 = ssub.s32 %s13, 2
      // Predicated region
      $region57: #{unet_block_forward.1} parent=55 // pred_check
        %p4435 = pneg %p194
      $region58: #{unet_block_forward.1} parent=55 // pred_check_branch
        %4437 = sbr.rel (%p4435) target = $region60
      $region59: #{unet_block_forward.1} parent=55 // pred_region
        %p4438 = scmp.lt.s32.totalorder %s19, 1
        %s4439 = scalar_select %p4438, %s19, 1
        %s4440 = smul.addr %s4439, 32
        %s4441 = smul.addr %s4440, 8
        %s4442 = scalar_lea.vmem %s7, %s4441
      $region60: #{unet_block_forward.1} parent=55 // pred_fallthru
        _
    $region56: #{unet_block_forward.1} parent=5 // pred_fallthru
      _
  $region6: #{unet_block_forward.1} parent=0 // loop_footer
    %s17 = sadd.s32 1, %s13
  $region7: #{unet_block_forward.1} parent=0 // loop_footer_branch
    %12 = sbr.rel target = $region3
  $region8: #{unet_block_forward.1} parent=0 // loop_exit
    _

</llo_original>
